<compile_context>
chip_gen: v7x
topology: tpu7x:2x2x1
jax: 0.10.0
libtpu: 0.0.40
codegen_flags: <defaults>
</compile_context>

<pallas_src>
import numpy as np
import jax
import jax.numpy as jnp
from jax import lax
from jax.experimental import pallas as pl
from jax.experimental.pallas import tpu as pltpu

# ----------------------------------------------------------------------------
# Network geometry (fixed by the PyTorch Net)
# ----------------------------------------------------------------------------
K = 5                          # conv kernel size
H0, W0, C0 = 32, 32, 3         # input image
C1, OH1, OW1 = 6, 28, 28       # conv1 output
PH1, PW1 = 14, 14              # pool1 output
C2, OH2, OW2 = 16, 10, 10      # conv2 output
PH2, PW2 = 5, 5                # pool2 output
F1, F2, F3 = 120, 84, 10       # fc widths
FPAD = 128                     # lane-dense padded fc width


# ----------------------------------------------------------------------------
# Fused Pallas kernel: whole network for one image per grid step
# ----------------------------------------------------------------------------
def _lenet_kernel(x_ref, w1_ref, b1_ref, w2_ref, b2_ref, r1_ref, r2_ref,
                  wf1_ref, bf1_ref, wf2_ref, bf2_ref, wf3_ref, bf3_ref,
                  out_ref):
    f32, bf16 = jnp.float32, jnp.bfloat16

    # ---- conv1 + bias + ReLU + 2x2 max-pool --------------------------------
    # x_ref holds one image as (C0*H0, W0): rows = ci*32 + h, lanes = w.
    # For each width-pool phase s (ow = 2*owp + s) accumulate banded matmuls
    # over (kh, ci); the width phase of the pool is folded into w1_ref, so the
    # max over s finishes width pooling.
    z1 = None
    for s in range(2):
        acc = jnp.zeros((OH1, PW1 * C1), f32)
        for kh in range(K):
            for ci in range(C0):
                idx = (s * K + kh) * C0 + ci
                xs = x_ref[ci * H0 + kh: ci * H0 + kh + OH1, :].astype(bf16)
                acc = acc + jnp.dot(xs, w1_ref[idx],
                                    preferred_element_type=f32)
        zs = jnp.maximum(acc + b1_ref[...], 0.0)       # fp32 epilogue
        z1 = zs if z1 is None else jnp.maximum(z1, zs)
    # Height phase of the pool: 0/1 row-selection matmuls (rows 2i and 2i+1).
    z1b = z1.astype(bf16)
    p1 = jnp.maximum(jnp.dot(r1_ref[0], z1b, preferred_element_type=f32),
                     jnp.dot(r1_ref[1], z1b, preferred_element_type=f32))
    # p1: (14, 14*6), layout [h, w*6 + c]

    # ---- conv2 + bias + ReLU + 2x2 max-pool --------------------------------
    z2 = None
    for s in range(2):
        acc = jnp.zeros((OH2, PW2 * C2), f32)
        for kh in range(K):
            xs = p1[kh: kh + OH2, :].astype(bf16)
            acc = acc + jnp.dot(xs, w2_ref[s * K + kh],
                                preferred_element_type=f32)
        zs = jnp.maximum(acc + b2_ref[...], 0.0)
        z2 = zs if z2 is None else jnp.maximum(z2, zs)
    z2b = z2.astype(bf16)
    p2 = jnp.maximum(jnp.dot(r2_ref[0], z2b, preferred_element_type=f32),
                     jnp.dot(r2_ref[1], z2b, preferred_element_type=f32))
    # p2: (5, 5*16), layout [h, w*16 + c]

    # ---- fc1 + ReLU: PyTorch's view(-1, 400) flatten order is folded into a
    #      row permutation of wf1; contract the (5, 80) tile block by block. --
    acc = jnp.zeros((1, FPAD), f32)
    for h in range(PH2):
        acc = acc + jnp.dot(p2[h: h + 1, :].astype(bf16), wf1_ref[h],
                            preferred_element_type=f32)
    f1 = jnp.maximum(acc + bf1_ref[...], 0.0).astype(bf16)          # (1,128)

    # ---- fc2 + ReLU, fc3 ---------------------------------------------------
    f2 = jnp.maximum(jnp.dot(f1, wf2_ref[...], preferred_element_type=f32)
                     + bf2_ref[...], 0.0).astype(bf16)              # (1,128)
    out = jnp.dot(f2, wf3_ref[...], preferred_element_type=f32) + bf3_ref[...]
    out_ref[...] = out.astype(out_ref.dtype)                        # (1,10)


# ----------------------------------------------------------------------------
# Parameter construction / one-time repacking (init-time only)
# ----------------------------------------------------------------------------
def init_params(key):
    """Deterministic synthetic parameters with PyTorch Net's shapes."""
    ks = jax.random.split(key, 10)
    p = {}
    p["conv1_w"] = 0.05 * jax.random.normal(ks[0], (6, 3, 5, 5), jnp.float32)
    p["conv1_b"] = 0.05 * jax.random.normal(ks[1], (6,), jnp.float32)
    p["conv2_w"] = 0.05 * jax.random.normal(ks[2], (16, 6, 5, 5), jnp.float32)
    p["conv2_b"] = 0.05 * jax.random.normal(ks[3], (16,), jnp.float32)
    p["fc1_w"] = 0.05 * jax.random.normal(ks[4], (120, 400), jnp.float32)
    p["fc1_b"] = 0.05 * jax.random.normal(ks[5], (120,), jnp.float32)
    p["fc2_w"] = 0.05 * jax.random.normal(ks[6], (84, 120), jnp.float32)
    p["fc2_b"] = 0.05 * jax.random.normal(ks[7], (84,), jnp.float32)
    p["fc3_w"] = 0.05 * jax.random.normal(ks[8], (10, 84), jnp.float32)
    p["fc3_b"] = 0.05 * jax.random.normal(ks[9], (10,), jnp.float32)
    return p


def prepare_params(p):
    """One-time repack of the PyTorch-shaped params into banded / pool-fused /
    lane-padded matrices consumed by the fused kernel (hoisted out of the
    forward path)."""
    f32 = np.float32
    w1 = np.asarray(p["conv1_w"], f32); b1 = np.asarray(p["conv1_b"], f32)
    w2 = np.asarray(p["conv2_w"], f32); b2 = np.asarray(p["conv2_b"], f32)
    fc1w = np.asarray(p["fc1_w"], f32); fc1b = np.asarray(p["fc1_b"], f32)
    fc2w = np.asarray(p["fc2_w"], f32); fc2b = np.asarray(p["fc2_b"], f32)
    fc3w = np.asarray(p["fc3_w"], f32); fc3b = np.asarray(p["fc3_b"], f32)

    # conv1 banded weights with width-pool phase folded in:
    #   W1[s, kh, ci][w_in, owp*C1 + co] = w1[co, ci, kh, kw], w_in = 2*owp+s+kw
    W1 = np.zeros((2, K, C0, W0, PW1 * C1), f32)
    for s in range(2):
        for kh in range(K):
            for ci in range(C0):
                for owp in range(PW1):
                    for kw in range(K):
                        W1[s, kh, ci, 2 * owp + s + kw,
                           owp * C1:(owp + 1) * C1] = w1[:, ci, kh, kw]
    W1 = W1.reshape(2 * K * C0, W0, PW1 * C1)
    b1t = np.tile(b1, PW1).reshape(1, PW1 * C1)

    # conv2 banded weights (input lane layout = w*C1 + ci):
    W2 = np.zeros((2, K, PW1 * C1, PW2 * C2), f32)
    for s in range(2):
        for kh in range(K):
            for owp in range(PW2):
                for kw in range(K):
                    w_in = 2 * owp + s + kw
                    for ci in range(C1):
                        W2[s, kh, w_in * C1 + ci,
                           owp * C2:(owp + 1) * C2] = w2[:, ci, kh, kw]
    W2 = W2.reshape(2 * K, PW1 * C1, PW2 * C2)
    b2t = np.tile(b2, PW2).reshape(1, PW2 * C2)

    # 0/1 row-selection matrices for the height phase of the two pools.
    R1 = np.zeros((2, PH1, OH1), f32)
    R2 = np.zeros((2, PH2, OH2), f32)
    for r in range(2):
        R1[r, np.arange(PH1), 2 * np.arange(PH1) + r] = 1.0
        R2[r, np.arange(PH2), 2 * np.arange(PH2) + r] = 1.0

    # fc1: fold PyTorch's view(-1, 400) (c, h, w) flatten order into a row
    # permutation of the (pre-transposed) weight; pad outputs to 128 lanes.
    perm = np.zeros(PH2 * PW2 * C2, np.int64)
    for h in range(PH2):
        for w in range(PW2):
            for c in range(C2):
                perm[h * (PW2 * C2) + w * C2 + c] = c * (PH2 * PW2) + h * PW2 + w
    Wfc1 = np.zeros((PH2 * PW2 * C2, FPAD), f32)
    Wfc1[:, :F1] = fc1w[:, perm].T
    Wfc1 = Wfc1.reshape(PH2, PW2 * C2, FPAD)
    bfc1 = np.zeros((1, FPAD), f32); bfc1[0, :F1] = fc1b

    Wfc2 = np.zeros((FPAD, FPAD), f32); Wfc2[:F1, :F2] = fc2w.T
    bfc2 = np.zeros((1, FPAD), f32); bfc2[0, :F2] = fc2b
    Wfc3 = np.zeros((FPAD, F3), f32); Wfc3[:F2, :] = fc3w.T
    bfc3 = fc3b.reshape(1, F3)

    bf16 = jnp.bfloat16
    return {
        "W1": jnp.asarray(W1, bf16), "b1": jnp.asarray(b1t),
        "W2": jnp.asarray(W2, bf16), "b2": jnp.asarray(b2t),
        "R1": jnp.asarray(R1, bf16), "R2": jnp.asarray(R2, bf16),
        "Wfc1": jnp.asarray(Wfc1, bf16), "bfc1": jnp.asarray(bfc1),
        "Wfc2": jnp.asarray(Wfc2, bf16), "bfc2": jnp.asarray(bfc2),
        "Wfc3": jnp.asarray(Wfc3, bf16), "bfc3": jnp.asarray(bfc3),
    }


# ----------------------------------------------------------------------------
# Forward pass: single pallas_call over the batch grid
# ----------------------------------------------------------------------------
def net_forward(prep, x_nchw):
    """Forward matching the PyTorch Net.  x_nchw: (N, 3, 32, 32) fp32."""
    n = x_nchw.shape[0]
    # Free row-major view of NCHW: rows = ci*32 + h, lanes = w (no transpose).
    x2d = x_nchw.astype(jnp.float32).reshape(n, C0 * H0, W0)
    c2 = lambda i: (0, 0)
    c3 = lambda i: (0, 0, 0)
    out = pl.pallas_call(
        _lenet_kernel,
        out_shape=jax.ShapeDtypeStruct((n, 1, F3), jnp.float32),
        grid=(n,),
        in_specs=[
            pl.BlockSpec((None, C0 * H0, W0), lambda i: (i, 0, 0)),  # image i
            pl.BlockSpec((2 * K * C0, W0, PW1 * C1), c3),            # W1
            pl.BlockSpec((1, PW1 * C1), c2),                         # b1
            pl.BlockSpec((2 * K, PW1 * C1, PW2 * C2), c3),           # W2
            pl.BlockSpec((1, PW2 * C2), c2),                         # b2
            pl.BlockSpec((2, PH1, OH1), c3),                         # R1
            pl.BlockSpec((2, PH2, OH2), c3),                         # R2
            pl.BlockSpec((PH2, PW2 * C2, FPAD), c3),                 # Wfc1
            pl.BlockSpec((1, FPAD), c2),                             # bfc1
            pl.BlockSpec((FPAD, FPAD), c2),                          # Wfc2
            pl.BlockSpec((1, FPAD), c2),                             # bfc2
            pl.BlockSpec((FPAD, F3), c2),                            # Wfc3
            pl.BlockSpec((1, F3), c2),                               # bfc3
        ],
        out_specs=pl.BlockSpec((None, 1, F3), lambda i: (i, 0, 0)),
        compiler_params=pltpu.CompilerParams(
            dimension_semantics=("parallel",)),
    )(x2d, prep["W1"], prep["b1"], prep["W2"], prep["b2"], prep["R1"],
      prep["R2"], prep["Wfc1"], prep["bfc1"], prep["Wfc2"], prep["bfc2"],
      prep["Wfc3"], prep["bfc3"])
    return out.reshape(n, F3)


# ----------------------------------------------------------------------------
# Plain-XLA reference (for a loose numerical check; bf16 MXU => loose tol)
# ----------------------------------------------------------------------------
def reference_forward(p, x_nchw):
    dn = ("NCHW", "OIHW", "NCHW")
    x = lax.conv_general_dilated(x_nchw, p["conv1_w"], (1, 1), "VALID",
                                 dimension_numbers=dn)
    x = jax.nn.relu(x + p["conv1_b"][None, :, None, None])
    x = lax.reduce_window(x, -jnp.inf, lax.max, (1, 1, 2, 2), (1, 1, 2, 2),
                          "VALID")
    x = lax.conv_general_dilated(x, p["conv2_w"], (1, 1), "VALID",
                                 dimension_numbers=dn)
    x = jax.nn.relu(x + p["conv2_b"][None, :, None, None])
    x = lax.reduce_window(x, -jnp.inf, lax.max, (1, 1, 2, 2), (1, 1, 2, 2),
                          "VALID")
    x = x.reshape(x.shape[0], 16 * 5 * 5)
    x = jax.nn.relu(x @ p["fc1_w"].T + p["fc1_b"])
    x = jax.nn.relu(x @ p["fc2_w"].T + p["fc2_b"])
    return x @ p["fc3_w"].T + p["fc3_b"]


if __name__ == "__main__":
    x = jax.random.normal(jax.random.PRNGKey(0), (2, 3, 32, 32), jnp.float32)
    params = init_params(jax.random.PRNGKey(1))
    prep = prepare_params(params)          # one-time weight repack (init only)

    fwd = jax.jit(net_forward)
    out = jax.block_until_ready(fwd(prep, x))
    assert out.shape == (2, 10), out.shape
    assert out.dtype == jnp.float32

    ref = reference_forward(params, x)
    max_err = float(jnp.max(jnp.abs(out - ref)))
    assert max_err < 3e-2, f"max abs error vs reference: {max_err}"
    print("KERNEL_OK")
</pallas_src>

<mosaic_0001>
module attributes {stable_mosaic.version = 11 : i64} {
  func.func @_lenet_kernel(%arg0: i32, %arg1: memref<1x96x32xf32, #tpu.memory_space<vmem>>, %arg2: memref<30x32x84xbf16, #tpu.memory_space<vmem>>, %arg3: memref<1x84xf32, #tpu.memory_space<vmem>>, %arg4: memref<10x84x80xbf16, #tpu.memory_space<vmem>>, %arg5: memref<1x80xf32, #tpu.memory_space<vmem>>, %arg6: memref<2x14x28xbf16, #tpu.memory_space<vmem>>, %arg7: memref<2x5x10xbf16, #tpu.memory_space<vmem>>, %arg8: memref<5x80x128xbf16, #tpu.memory_space<vmem>>, %arg9: memref<1x128xf32, #tpu.memory_space<vmem>>, %arg10: memref<128x128xbf16, #tpu.memory_space<vmem>>, %arg11: memref<1x128xf32, #tpu.memory_space<vmem>>, %arg12: memref<128x10xbf16, #tpu.memory_space<vmem>>, %arg13: memref<1x10xf32, #tpu.memory_space<vmem>>, %arg14: memref<1x1x10xf32, #tpu.memory_space<vmem>>) attributes {dimension_semantics = [#tpu.dimension_semantics<parallel>], iteration_bounds = array<i64: 2>, scalar_prefetch = 0 : i64, scratch_operands = 0 : i64, tpu.core_type = #tpu.core_type<tc>, window_params = [{transform_indices = @transform_0, window_bounds = array<i64: 1, 96, 32>}, {pipeline_mode = #tpu.pipeline_mode<synchronous>, transform_indices = @transform_1, window_bounds = array<i64: 30, 32, 84>}, {pipeline_mode = #tpu.pipeline_mode<synchronous>, transform_indices = @transform_2, window_bounds = array<i64: 1, 84>}, {pipeline_mode = #tpu.pipeline_mode<synchronous>, transform_indices = @transform_3, window_bounds = array<i64: 10, 84, 80>}, {pipeline_mode = #tpu.pipeline_mode<synchronous>, transform_indices = @transform_4, window_bounds = array<i64: 1, 80>}, {pipeline_mode = #tpu.pipeline_mode<synchronous>, transform_indices = @transform_5, window_bounds = array<i64: 2, 14, 28>}, {pipeline_mode = #tpu.pipeline_mode<synchronous>, transform_indices = @transform_6, window_bounds = array<i64: 2, 5, 10>}, {pipeline_mode = #tpu.pipeline_mode<synchronous>, transform_indices = @transform_7, window_bounds = array<i64: 5, 80, 128>}, {pipeline_mode = #tpu.pipeline_mode<synchronous>, transform_indices = @transform_8, window_bounds = array<i64: 1, 128>}, {pipeline_mode = #tpu.pipeline_mode<synchronous>, transform_indices = @transform_9, window_bounds = array<i64: 128, 128>}, {pipeline_mode = #tpu.pipeline_mode<synchronous>, transform_indices = @transform_10, window_bounds = array<i64: 1, 128>}, {pipeline_mode = #tpu.pipeline_mode<synchronous>, transform_indices = @transform_11, window_bounds = array<i64: 128, 10>}, {pipeline_mode = #tpu.pipeline_mode<synchronous>, transform_indices = @transform_12, window_bounds = array<i64: 1, 10>}, {transform_indices = @transform_13, window_bounds = array<i64: 1, 1, 10>}]} {
    %cst = arith.constant 0.000000e+00 : f32
    %0 = vector.broadcast %cst : f32 to vector<28x84xf32>
    %c0 = arith.constant 0 : index
    %c0_0 = arith.constant 0 : index
    %c0_1 = arith.constant 0 : index
    %1 = vector.load %arg1[%c0, %c0_0, %c0_1] : memref<1x96x32xf32, #tpu.memory_space<vmem>>, vector<1x28x32xf32>
    %2 = vector.shape_cast %1 : vector<1x28x32xf32> to vector<28x32xf32>
    %3 = arith.truncf %2 : vector<28x32xf32> to vector<28x32xbf16>
    %c0_2 = arith.constant 0 : index
    %c0_3 = arith.constant 0 : index
    %c0_4 = arith.constant 0 : index
    %4 = vector.load %arg2[%c0_2, %c0_3, %c0_4] : memref<30x32x84xbf16, #tpu.memory_space<vmem>>, vector<1x32x84xbf16>
    %5 = vector.shape_cast %4 : vector<1x32x84xbf16> to vector<32x84xbf16>
    %cst_5 = arith.constant dense<0.000000e+00> : vector<28x84xf32>
    %6 = tpu.matmul %3, %5, %cst_5 {dimension_numbers = #tpu.dot_dimension_numbers<[1], [0], [0], [1], [0, 0, 1, 1], [], []>} : vector<28x32xbf16>, vector<32x84xbf16>, vector<28x84xf32> -> vector<28x84xf32>
    %7 = arith.addf %0, %6 : vector<28x84xf32>
    %c0_6 = arith.constant 0 : index
    %c32 = arith.constant 32 : index
    %c0_7 = arith.constant 0 : index
    %8 = vector.load %arg1[%c0_6, %c32, %c0_7] : memref<1x96x32xf32, #tpu.memory_space<vmem>>, vector<1x28x32xf32>
    %9 = vector.shape_cast %8 : vector<1x28x32xf32> to vector<28x32xf32>
    %10 = arith.truncf %9 : vector<28x32xf32> to vector<28x32xbf16>
    %c1 = arith.constant 1 : index
    %c0_8 = arith.constant 0 : index
    %c0_9 = arith.constant 0 : index
    %11 = vector.load %arg2[%c1, %c0_8, %c0_9] : memref<30x32x84xbf16, #tpu.memory_space<vmem>>, vector<1x32x84xbf16>
    %12 = vector.shape_cast %11 : vector<1x32x84xbf16> to vector<32x84xbf16>
    %cst_10 = arith.constant dense<0.000000e+00> : vector<28x84xf32>
    %13 = tpu.matmul %10, %12, %cst_10 {dimension_numbers = #tpu.dot_dimension_numbers<[1], [0], [0], [1], [0, 0, 1, 1], [], []>} : vector<28x32xbf16>, vector<32x84xbf16>, vector<28x84xf32> -> vector<28x84xf32>
    %14 = arith.addf %7, %13 : vector<28x84xf32>
    %c0_11 = arith.constant 0 : index
    %c64 = arith.constant 64 : index
    %c0_12 = arith.constant 0 : index
    %15 = vector.load %arg1[%c0_11, %c64, %c0_12] : memref<1x96x32xf32, #tpu.memory_space<vmem>>, vector<1x28x32xf32>
    %16 = vector.shape_cast %15 : vector<1x28x32xf32> to vector<28x32xf32>
    %17 = arith.truncf %16 : vector<28x32xf32> to vector<28x32xbf16>
    %c2 = arith.constant 2 : index
    %c0_13 = arith.constant 0 : index
    %c0_14 = arith.constant 0 : index
    %18 = vector.load %arg2[%c2, %c0_13, %c0_14] : memref<30x32x84xbf16, #tpu.memory_space<vmem>>, vector<1x32x84xbf16>
    %19 = vector.shape_cast %18 : vector<1x32x84xbf16> to vector<32x84xbf16>
    %cst_15 = arith.constant dense<0.000000e+00> : vector<28x84xf32>
    %20 = tpu.matmul %17, %19, %cst_15 {dimension_numbers = #tpu.dot_dimension_numbers<[1], [0], [0], [1], [0, 0, 1, 1], [], []>} : vector<28x32xbf16>, vector<32x84xbf16>, vector<28x84xf32> -> vector<28x84xf32>
    %21 = arith.addf %14, %20 : vector<28x84xf32>
    %c0_16 = arith.constant 0 : index
    %c1_17 = arith.constant 1 : index
    %c0_18 = arith.constant 0 : index
    %22 = vector.load %arg1[%c0_16, %c1_17, %c0_18] : memref<1x96x32xf32, #tpu.memory_space<vmem>>, vector<1x28x32xf32>
    %23 = vector.shape_cast %22 : vector<1x28x32xf32> to vector<28x32xf32>
    %24 = arith.truncf %23 : vector<28x32xf32> to vector<28x32xbf16>
    %c3 = arith.constant 3 : index
    %c0_19 = arith.constant 0 : index
    %c0_20 = arith.constant 0 : index
    %25 = vector.load %arg2[%c3, %c0_19, %c0_20] : memref<30x32x84xbf16, #tpu.memory_space<vmem>>, vector<1x32x84xbf16>
    %26 = vector.shape_cast %25 : vector<1x32x84xbf16> to vector<32x84xbf16>
    %cst_21 = arith.constant dense<0.000000e+00> : vector<28x84xf32>
    %27 = tpu.matmul %24, %26, %cst_21 {dimension_numbers = #tpu.dot_dimension_numbers<[1], [0], [0], [1], [0, 0, 1, 1], [], []>} : vector<28x32xbf16>, vector<32x84xbf16>, vector<28x84xf32> -> vector<28x84xf32>
    %28 = arith.addf %21, %27 : vector<28x84xf32>
    %c0_22 = arith.constant 0 : index
    %c33 = arith.constant 33 : index
    %c0_23 = arith.constant 0 : index
    %29 = vector.load %arg1[%c0_22, %c33, %c0_23] : memref<1x96x32xf32, #tpu.memory_space<vmem>>, vector<1x28x32xf32>
    %30 = vector.shape_cast %29 : vector<1x28x32xf32> to vector<28x32xf32>
    %31 = arith.truncf %30 : vector<28x32xf32> to vector<28x32xbf16>
    %c4 = arith.constant 4 : index
    %c0_24 = arith.constant 0 : index
    %c0_25 = arith.constant 0 : index
    %32 = vector.load %arg2[%c4, %c0_24, %c0_25] : memref<30x32x84xbf16, #tpu.memory_space<vmem>>, vector<1x32x84xbf16>
    %33 = vector.shape_cast %32 : vector<1x32x84xbf16> to vector<32x84xbf16>
    %cst_26 = arith.constant dense<0.000000e+00> : vector<28x84xf32>
    %34 = tpu.matmul %31, %33, %cst_26 {dimension_numbers = #tpu.dot_dimension_numbers<[1], [0], [0], [1], [0, 0, 1, 1], [], []>} : vector<28x32xbf16>, vector<32x84xbf16>, vector<28x84xf32> -> vector<28x84xf32>
    %35 = arith.addf %28, %34 : vector<28x84xf32>
    %c0_27 = arith.constant 0 : index
    %c65 = arith.constant 65 : index
    %c0_28 = arith.constant 0 : index
    %36 = vector.load %arg1[%c0_27, %c65, %c0_28] : memref<1x96x32xf32, #tpu.memory_space<vmem>>, vector<1x28x32xf32>
    %37 = vector.shape_cast %36 : vector<1x28x32xf32> to vector<28x32xf32>
    %38 = arith.truncf %37 : vector<28x32xf32> to vector<28x32xbf16>
    %c5 = arith.constant 5 : index
    %c0_29 = arith.constant 0 : index
    %c0_30 = arith.constant 0 : index
    %39 = vector.load %arg2[%c5, %c0_29, %c0_30] : memref<30x32x84xbf16, #tpu.memory_space<vmem>>, vector<1x32x84xbf16>
    %40 = vector.shape_cast %39 : vector<1x32x84xbf16> to vector<32x84xbf16>
    %cst_31 = arith.constant dense<0.000000e+00> : vector<28x84xf32>
    %41 = tpu.matmul %38, %40, %cst_31 {dimension_numbers = #tpu.dot_dimension_numbers<[1], [0], [0], [1], [0, 0, 1, 1], [], []>} : vector<28x32xbf16>, vector<32x84xbf16>, vector<28x84xf32> -> vector<28x84xf32>
    %42 = arith.addf %35, %41 : vector<28x84xf32>
    %c0_32 = arith.constant 0 : index
    %c2_33 = arith.constant 2 : index
    %c0_34 = arith.constant 0 : index
    %43 = vector.load %arg1[%c0_32, %c2_33, %c0_34] : memref<1x96x32xf32, #tpu.memory_space<vmem>>, vector<1x28x32xf32>
    %44 = vector.shape_cast %43 : vector<1x28x32xf32> to vector<28x32xf32>
    %45 = arith.truncf %44 : vector<28x32xf32> to vector<28x32xbf16>
    %c6 = arith.constant 6 : index
    %c0_35 = arith.constant 0 : index
    %c0_36 = arith.constant 0 : index
    %46 = vector.load %arg2[%c6, %c0_35, %c0_36] : memref<30x32x84xbf16, #tpu.memory_space<vmem>>, vector<1x32x84xbf16>
    %47 = vector.shape_cast %46 : vector<1x32x84xbf16> to vector<32x84xbf16>
    %cst_37 = arith.constant dense<0.000000e+00> : vector<28x84xf32>
    %48 = tpu.matmul %45, %47, %cst_37 {dimension_numbers = #tpu.dot_dimension_numbers<[1], [0], [0], [1], [0, 0, 1, 1], [], []>} : vector<28x32xbf16>, vector<32x84xbf16>, vector<28x84xf32> -> vector<28x84xf32>
    %49 = arith.addf %42, %48 : vector<28x84xf32>
    %c0_38 = arith.constant 0 : index
    %c34 = arith.constant 34 : index
    %c0_39 = arith.constant 0 : index
    %50 = vector.load %arg1[%c0_38, %c34, %c0_39] : memref<1x96x32xf32, #tpu.memory_space<vmem>>, vector<1x28x32xf32>
    %51 = vector.shape_cast %50 : vector<1x28x32xf32> to vector<28x32xf32>
    %52 = arith.truncf %51 : vector<28x32xf32> to vector<28x32xbf16>
    %c7 = arith.constant 7 : index
    %c0_40 = arith.constant 0 : index
    %c0_41 = arith.constant 0 : index
    %53 = vector.load %arg2[%c7, %c0_40, %c0_41] : memref<30x32x84xbf16, #tpu.memory_space<vmem>>, vector<1x32x84xbf16>
    %54 = vector.shape_cast %53 : vector<1x32x84xbf16> to vector<32x84xbf16>
    %cst_42 = arith.constant dense<0.000000e+00> : vector<28x84xf32>
    %55 = tpu.matmul %52, %54, %cst_42 {dimension_numbers = #tpu.dot_dimension_numbers<[1], [0], [0], [1], [0, 0, 1, 1], [], []>} : vector<28x32xbf16>, vector<32x84xbf16>, vector<28x84xf32> -> vector<28x84xf32>
    %56 = arith.addf %49, %55 : vector<28x84xf32>
    %c0_43 = arith.constant 0 : index
    %c66 = arith.constant 66 : index
    %c0_44 = arith.constant 0 : index
    %57 = vector.load %arg1[%c0_43, %c66, %c0_44] : memref<1x96x32xf32, #tpu.memory_space<vmem>>, vector<1x28x32xf32>
    %58 = vector.shape_cast %57 : vector<1x28x32xf32> to vector<28x32xf32>
    %59 = arith.truncf %58 : vector<28x32xf32> to vector<28x32xbf16>
    %c8 = arith.constant 8 : index
    %c0_45 = arith.constant 0 : index
    %c0_46 = arith.constant 0 : index
    %60 = vector.load %arg2[%c8, %c0_45, %c0_46] : memref<30x32x84xbf16, #tpu.memory_space<vmem>>, vector<1x32x84xbf16>
    %61 = vector.shape_cast %60 : vector<1x32x84xbf16> to vector<32x84xbf16>
    %cst_47 = arith.constant dense<0.000000e+00> : vector<28x84xf32>
    %62 = tpu.matmul %59, %61, %cst_47 {dimension_numbers = #tpu.dot_dimension_numbers<[1], [0], [0], [1], [0, 0, 1, 1], [], []>} : vector<28x32xbf16>, vector<32x84xbf16>, vector<28x84xf32> -> vector<28x84xf32>
    %63 = arith.addf %56, %62 : vector<28x84xf32>
    %c0_48 = arith.constant 0 : index
    %c3_49 = arith.constant 3 : index
    %c0_50 = arith.constant 0 : index
    %64 = vector.load %arg1[%c0_48, %c3_49, %c0_50] : memref<1x96x32xf32, #tpu.memory_space<vmem>>, vector<1x28x32xf32>
    %65 = vector.shape_cast %64 : vector<1x28x32xf32> to vector<28x32xf32>
    %66 = arith.truncf %65 : vector<28x32xf32> to vector<28x32xbf16>
    %c9 = arith.constant 9 : index
    %c0_51 = arith.constant 0 : index
    %c0_52 = arith.constant 0 : index
    %67 = vector.load %arg2[%c9, %c0_51, %c0_52] : memref<30x32x84xbf16, #tpu.memory_space<vmem>>, vector<1x32x84xbf16>
    %68 = vector.shape_cast %67 : vector<1x32x84xbf16> to vector<32x84xbf16>
    %cst_53 = arith.constant dense<0.000000e+00> : vector<28x84xf32>
    %69 = tpu.matmul %66, %68, %cst_53 {dimension_numbers = #tpu.dot_dimension_numbers<[1], [0], [0], [1], [0, 0, 1, 1], [], []>} : vector<28x32xbf16>, vector<32x84xbf16>, vector<28x84xf32> -> vector<28x84xf32>
    %70 = arith.addf %63, %69 : vector<28x84xf32>
    %c0_54 = arith.constant 0 : index
    %c35 = arith.constant 35 : index
    %c0_55 = arith.constant 0 : index
    %71 = vector.load %arg1[%c0_54, %c35, %c0_55] : memref<1x96x32xf32, #tpu.memory_space<vmem>>, vector<1x28x32xf32>
    %72 = vector.shape_cast %71 : vector<1x28x32xf32> to vector<28x32xf32>
    %73 = arith.truncf %72 : vector<28x32xf32> to vector<28x32xbf16>
    %c10 = arith.constant 10 : index
    %c0_56 = arith.constant 0 : index
    %c0_57 = arith.constant 0 : index
    %74 = vector.load %arg2[%c10, %c0_56, %c0_57] : memref<30x32x84xbf16, #tpu.memory_space<vmem>>, vector<1x32x84xbf16>
    %75 = vector.shape_cast %74 : vector<1x32x84xbf16> to vector<32x84xbf16>
    %cst_58 = arith.constant dense<0.000000e+00> : vector<28x84xf32>
    %76 = tpu.matmul %73, %75, %cst_58 {dimension_numbers = #tpu.dot_dimension_numbers<[1], [0], [0], [1], [0, 0, 1, 1], [], []>} : vector<28x32xbf16>, vector<32x84xbf16>, vector<28x84xf32> -> vector<28x84xf32>
    %77 = arith.addf %70, %76 : vector<28x84xf32>
    %c0_59 = arith.constant 0 : index
    %c67 = arith.constant 67 : index
    %c0_60 = arith.constant 0 : index
    %78 = vector.load %arg1[%c0_59, %c67, %c0_60] : memref<1x96x32xf32, #tpu.memory_space<vmem>>, vector<1x28x32xf32>
    %79 = vector.shape_cast %78 : vector<1x28x32xf32> to vector<28x32xf32>
    %80 = arith.truncf %79 : vector<28x32xf32> to vector<28x32xbf16>
    %c11 = arith.constant 11 : index
    %c0_61 = arith.constant 0 : index
    %c0_62 = arith.constant 0 : index
    %81 = vector.load %arg2[%c11, %c0_61, %c0_62] : memref<30x32x84xbf16, #tpu.memory_space<vmem>>, vector<1x32x84xbf16>
    %82 = vector.shape_cast %81 : vector<1x32x84xbf16> to vector<32x84xbf16>
    %cst_63 = arith.constant dense<0.000000e+00> : vector<28x84xf32>
    %83 = tpu.matmul %80, %82, %cst_63 {dimension_numbers = #tpu.dot_dimension_numbers<[1], [0], [0], [1], [0, 0, 1, 1], [], []>} : vector<28x32xbf16>, vector<32x84xbf16>, vector<28x84xf32> -> vector<28x84xf32>
    %84 = arith.addf %77, %83 : vector<28x84xf32>
    %c0_64 = arith.constant 0 : index
    %c4_65 = arith.constant 4 : index
    %c0_66 = arith.constant 0 : index
    %85 = vector.load %arg1[%c0_64, %c4_65, %c0_66] : memref<1x96x32xf32, #tpu.memory_space<vmem>>, vector<1x28x32xf32>
    %86 = vector.shape_cast %85 : vector<1x28x32xf32> to vector<28x32xf32>
    %87 = arith.truncf %86 : vector<28x32xf32> to vector<28x32xbf16>
    %c12 = arith.constant 12 : index
    %c0_67 = arith.constant 0 : index
    %c0_68 = arith.constant 0 : index
    %88 = vector.load %arg2[%c12, %c0_67, %c0_68] : memref<30x32x84xbf16, #tpu.memory_space<vmem>>, vector<1x32x84xbf16>
    %89 = vector.shape_cast %88 : vector<1x32x84xbf16> to vector<32x84xbf16>
    %cst_69 = arith.constant dense<0.000000e+00> : vector<28x84xf32>
    %90 = tpu.matmul %87, %89, %cst_69 {dimension_numbers = #tpu.dot_dimension_numbers<[1], [0], [0], [1], [0, 0, 1, 1], [], []>} : vector<28x32xbf16>, vector<32x84xbf16>, vector<28x84xf32> -> vector<28x84xf32>
    %91 = arith.addf %84, %90 : vector<28x84xf32>
    %c0_70 = arith.constant 0 : index
    %c36 = arith.constant 36 : index
    %c0_71 = arith.constant 0 : index
    %92 = vector.load %arg1[%c0_70, %c36, %c0_71] : memref<1x96x32xf32, #tpu.memory_space<vmem>>, vector<1x28x32xf32>
    %93 = vector.shape_cast %92 : vector<1x28x32xf32> to vector<28x32xf32>
    %94 = arith.truncf %93 : vector<28x32xf32> to vector<28x32xbf16>
    %c13 = arith.constant 13 : index
    %c0_72 = arith.constant 0 : index
    %c0_73 = arith.constant 0 : index
    %95 = vector.load %arg2[%c13, %c0_72, %c0_73] : memref<30x32x84xbf16, #tpu.memory_space<vmem>>, vector<1x32x84xbf16>
    %96 = vector.shape_cast %95 : vector<1x32x84xbf16> to vector<32x84xbf16>
    %cst_74 = arith.constant dense<0.000000e+00> : vector<28x84xf32>
    %97 = tpu.matmul %94, %96, %cst_74 {dimension_numbers = #tpu.dot_dimension_numbers<[1], [0], [0], [1], [0, 0, 1, 1], [], []>} : vector<28x32xbf16>, vector<32x84xbf16>, vector<28x84xf32> -> vector<28x84xf32>
    %98 = arith.addf %91, %97 : vector<28x84xf32>
    %c0_75 = arith.constant 0 : index
    %c68 = arith.constant 68 : index
    %c0_76 = arith.constant 0 : index
    %99 = vector.load %arg1[%c0_75, %c68, %c0_76] : memref<1x96x32xf32, #tpu.memory_space<vmem>>, vector<1x28x32xf32>
    %100 = vector.shape_cast %99 : vector<1x28x32xf32> to vector<28x32xf32>
    %101 = arith.truncf %100 : vector<28x32xf32> to vector<28x32xbf16>
    %c14 = arith.constant 14 : index
    %c0_77 = arith.constant 0 : index
    %c0_78 = arith.constant 0 : index
    %102 = vector.load %arg2[%c14, %c0_77, %c0_78] : memref<30x32x84xbf16, #tpu.memory_space<vmem>>, vector<1x32x84xbf16>
    %103 = vector.shape_cast %102 : vector<1x32x84xbf16> to vector<32x84xbf16>
    %cst_79 = arith.constant dense<0.000000e+00> : vector<28x84xf32>
    %104 = tpu.matmul %101, %103, %cst_79 {dimension_numbers = #tpu.dot_dimension_numbers<[1], [0], [0], [1], [0, 0, 1, 1], [], []>} : vector<28x32xbf16>, vector<32x84xbf16>, vector<28x84xf32> -> vector<28x84xf32>
    %105 = arith.addf %98, %104 : vector<28x84xf32>
    %c0_80 = arith.constant 0 : index
    %c0_81 = arith.constant 0 : index
    %106 = vector.load %arg3[%c0_80, %c0_81] : memref<1x84xf32, #tpu.memory_space<vmem>>, vector<1x84xf32>
    %107 = vector.broadcast %106 : vector<1x84xf32> to vector<28x84xf32>
    %108 = arith.addf %105, %107 : vector<28x84xf32>
    %cst_82 = arith.constant 0.000000e+00 : f32
    %109 = vector.broadcast %cst_82 : f32 to vector<28x84xf32>
    %110 = arith.maximumf %108, %109 : vector<28x84xf32>
    %cst_83 = arith.constant 0.000000e+00 : f32
    %111 = vector.broadcast %cst_83 : f32 to vector<28x84xf32>
    %c0_84 = arith.constant 0 : index
    %c0_85 = arith.constant 0 : index
    %c0_86 = arith.constant 0 : index
    %112 = vector.load %arg1[%c0_84, %c0_85, %c0_86] : memref<1x96x32xf32, #tpu.memory_space<vmem>>, vector<1x28x32xf32>
    %113 = vector.shape_cast %112 : vector<1x28x32xf32> to vector<28x32xf32>
    %114 = arith.truncf %113 : vector<28x32xf32> to vector<28x32xbf16>
    %c15 = arith.constant 15 : index
    %c0_87 = arith.constant 0 : index
    %c0_88 = arith.constant 0 : index
    %115 = vector.load %arg2[%c15, %c0_87, %c0_88] : memref<30x32x84xbf16, #tpu.memory_space<vmem>>, vector<1x32x84xbf16>
    %116 = vector.shape_cast %115 : vector<1x32x84xbf16> to vector<32x84xbf16>
    %cst_89 = arith.constant dense<0.000000e+00> : vector<28x84xf32>
    %117 = tpu.matmul %114, %116, %cst_89 {dimension_numbers = #tpu.dot_dimension_numbers<[1], [0], [0], [1], [0, 0, 1, 1], [], []>} : vector<28x32xbf16>, vector<32x84xbf16>, vector<28x84xf32> -> vector<28x84xf32>
    %118 = arith.addf %111, %117 : vector<28x84xf32>
    %c0_90 = arith.constant 0 : index
    %c32_91 = arith.constant 32 : index
    %c0_92 = arith.constant 0 : index
    %119 = vector.load %arg1[%c0_90, %c32_91, %c0_92] : memref<1x96x32xf32, #tpu.memory_space<vmem>>, vector<1x28x32xf32>
    %120 = vector.shape_cast %119 : vector<1x28x32xf32> to vector<28x32xf32>
    %121 = arith.truncf %120 : vector<28x32xf32> to vector<28x32xbf16>
    %c16 = arith.constant 16 : index
    %c0_93 = arith.constant 0 : index
    %c0_94 = arith.constant 0 : index
    %122 = vector.load %arg2[%c16, %c0_93, %c0_94] : memref<30x32x84xbf16, #tpu.memory_space<vmem>>, vector<1x32x84xbf16>
    %123 = vector.shape_cast %122 : vector<1x32x84xbf16> to vector<32x84xbf16>
    %cst_95 = arith.constant dense<0.000000e+00> : vector<28x84xf32>
    %124 = tpu.matmul %121, %123, %cst_95 {dimension_numbers = #tpu.dot_dimension_numbers<[1], [0], [0], [1], [0, 0, 1, 1], [], []>} : vector<28x32xbf16>, vector<32x84xbf16>, vector<28x84xf32> -> vector<28x84xf32>
    %125 = arith.addf %118, %124 : vector<28x84xf32>
    %c0_96 = arith.constant 0 : index
    %c64_97 = arith.constant 64 : index
    %c0_98 = arith.constant 0 : index
    %126 = vector.load %arg1[%c0_96, %c64_97, %c0_98] : memref<1x96x32xf32, #tpu.memory_space<vmem>>, vector<1x28x32xf32>
    %127 = vector.shape_cast %126 : vector<1x28x32xf32> to vector<28x32xf32>
    %128 = arith.truncf %127 : vector<28x32xf32> to vector<28x32xbf16>
    %c17 = arith.constant 17 : index
    %c0_99 = arith.constant 0 : index
    %c0_100 = arith.constant 0 : index
    %129 = vector.load %arg2[%c17, %c0_99, %c0_100] : memref<30x32x84xbf16, #tpu.memory_space<vmem>>, vector<1x32x84xbf16>
    %130 = vector.shape_cast %129 : vector<1x32x84xbf16> to vector<32x84xbf16>
    %cst_101 = arith.constant dense<0.000000e+00> : vector<28x84xf32>
    %131 = tpu.matmul %128, %130, %cst_101 {dimension_numbers = #tpu.dot_dimension_numbers<[1], [0], [0], [1], [0, 0, 1, 1], [], []>} : vector<28x32xbf16>, vector<32x84xbf16>, vector<28x84xf32> -> vector<28x84xf32>
    %132 = arith.addf %125, %131 : vector<28x84xf32>
    %c0_102 = arith.constant 0 : index
    %c1_103 = arith.constant 1 : index
    %c0_104 = arith.constant 0 : index
    %133 = vector.load %arg1[%c0_102, %c1_103, %c0_104] : memref<1x96x32xf32, #tpu.memory_space<vmem>>, vector<1x28x32xf32>
    %134 = vector.shape_cast %133 : vector<1x28x32xf32> to vector<28x32xf32>
    %135 = arith.truncf %134 : vector<28x32xf32> to vector<28x32xbf16>
    %c18 = arith.constant 18 : index
    %c0_105 = arith.constant 0 : index
    %c0_106 = arith.constant 0 : index
    %136 = vector.load %arg2[%c18, %c0_105, %c0_106] : memref<30x32x84xbf16, #tpu.memory_space<vmem>>, vector<1x32x84xbf16>
    %137 = vector.shape_cast %136 : vector<1x32x84xbf16> to vector<32x84xbf16>
    %cst_107 = arith.constant dense<0.000000e+00> : vector<28x84xf32>
    %138 = tpu.matmul %135, %137, %cst_107 {dimension_numbers = #tpu.dot_dimension_numbers<[1], [0], [0], [1], [0, 0, 1, 1], [], []>} : vector<28x32xbf16>, vector<32x84xbf16>, vector<28x84xf32> -> vector<28x84xf32>
    %139 = arith.addf %132, %138 : vector<28x84xf32>
    %c0_108 = arith.constant 0 : index
    %c33_109 = arith.constant 33 : index
    %c0_110 = arith.constant 0 : index
    %140 = vector.load %arg1[%c0_108, %c33_109, %c0_110] : memref<1x96x32xf32, #tpu.memory_space<vmem>>, vector<1x28x32xf32>
    %141 = vector.shape_cast %140 : vector<1x28x32xf32> to vector<28x32xf32>
    %142 = arith.truncf %141 : vector<28x32xf32> to vector<28x32xbf16>
    %c19 = arith.constant 19 : index
    %c0_111 = arith.constant 0 : index
    %c0_112 = arith.constant 0 : index
    %143 = vector.load %arg2[%c19, %c0_111, %c0_112] : memref<30x32x84xbf16, #tpu.memory_space<vmem>>, vector<1x32x84xbf16>
    %144 = vector.shape_cast %143 : vector<1x32x84xbf16> to vector<32x84xbf16>
    %cst_113 = arith.constant dense<0.000000e+00> : vector<28x84xf32>
    %145 = tpu.matmul %142, %144, %cst_113 {dimension_numbers = #tpu.dot_dimension_numbers<[1], [0], [0], [1], [0, 0, 1, 1], [], []>} : vector<28x32xbf16>, vector<32x84xbf16>, vector<28x84xf32> -> vector<28x84xf32>
    %146 = arith.addf %139, %145 : vector<28x84xf32>
    %c0_114 = arith.constant 0 : index
    %c65_115 = arith.constant 65 : index
    %c0_116 = arith.constant 0 : index
    %147 = vector.load %arg1[%c0_114, %c65_115, %c0_116] : memref<1x96x32xf32, #tpu.memory_space<vmem>>, vector<1x28x32xf32>
    %148 = vector.shape_cast %147 : vector<1x28x32xf32> to vector<28x32xf32>
    %149 = arith.truncf %148 : vector<28x32xf32> to vector<28x32xbf16>
    %c20 = arith.constant 20 : index
    %c0_117 = arith.constant 0 : index
    %c0_118 = arith.constant 0 : index
    %150 = vector.load %arg2[%c20, %c0_117, %c0_118] : memref<30x32x84xbf16, #tpu.memory_space<vmem>>, vector<1x32x84xbf16>
    %151 = vector.shape_cast %150 : vector<1x32x84xbf16> to vector<32x84xbf16>
    %cst_119 = arith.constant dense<0.000000e+00> : vector<28x84xf32>
    %152 = tpu.matmul %149, %151, %cst_119 {dimension_numbers = #tpu.dot_dimension_numbers<[1], [0], [0], [1], [0, 0, 1, 1], [], []>} : vector<28x32xbf16>, vector<32x84xbf16>, vector<28x84xf32> -> vector<28x84xf32>
    %153 = arith.addf %146, %152 : vector<28x84xf32>
    %c0_120 = arith.constant 0 : index
    %c2_121 = arith.constant 2 : index
    %c0_122 = arith.constant 0 : index
    %154 = vector.load %arg1[%c0_120, %c2_121, %c0_122] : memref<1x96x32xf32, #tpu.memory_space<vmem>>, vector<1x28x32xf32>
    %155 = vector.shape_cast %154 : vector<1x28x32xf32> to vector<28x32xf32>
    %156 = arith.truncf %155 : vector<28x32xf32> to vector<28x32xbf16>
    %c21 = arith.constant 21 : index
    %c0_123 = arith.constant 0 : index
    %c0_124 = arith.constant 0 : index
    %157 = vector.load %arg2[%c21, %c0_123, %c0_124] : memref<30x32x84xbf16, #tpu.memory_space<vmem>>, vector<1x32x84xbf16>
    %158 = vector.shape_cast %157 : vector<1x32x84xbf16> to vector<32x84xbf16>
    %cst_125 = arith.constant dense<0.000000e+00> : vector<28x84xf32>
    %159 = tpu.matmul %156, %158, %cst_125 {dimension_numbers = #tpu.dot_dimension_numbers<[1], [0], [0], [1], [0, 0, 1, 1], [], []>} : vector<28x32xbf16>, vector<32x84xbf16>, vector<28x84xf32> -> vector<28x84xf32>
    %160 = arith.addf %153, %159 : vector<28x84xf32>
    %c0_126 = arith.constant 0 : index
    %c34_127 = arith.constant 34 : index
    %c0_128 = arith.constant 0 : index
    %161 = vector.load %arg1[%c0_126, %c34_127, %c0_128] : memref<1x96x32xf32, #tpu.memory_space<vmem>>, vector<1x28x32xf32>
    %162 = vector.shape_cast %161 : vector<1x28x32xf32> to vector<28x32xf32>
    %163 = arith.truncf %162 : vector<28x32xf32> to vector<28x32xbf16>
    %c22 = arith.constant 22 : index
    %c0_129 = arith.constant 0 : index
    %c0_130 = arith.constant 0 : index
    %164 = vector.load %arg2[%c22, %c0_129, %c0_130] : memref<30x32x84xbf16, #tpu.memory_space<vmem>>, vector<1x32x84xbf16>
    %165 = vector.shape_cast %164 : vector<1x32x84xbf16> to vector<32x84xbf16>
    %cst_131 = arith.constant dense<0.000000e+00> : vector<28x84xf32>
    %166 = tpu.matmul %163, %165, %cst_131 {dimension_numbers = #tpu.dot_dimension_numbers<[1], [0], [0], [1], [0, 0, 1, 1], [], []>} : vector<28x32xbf16>, vector<32x84xbf16>, vector<28x84xf32> -> vector<28x84xf32>
    %167 = arith.addf %160, %166 : vector<28x84xf32>
    %c0_132 = arith.constant 0 : index
    %c66_133 = arith.constant 66 : index
    %c0_134 = arith.constant 0 : index
    %168 = vector.load %arg1[%c0_132, %c66_133, %c0_134] : memref<1x96x32xf32, #tpu.memory_space<vmem>>, vector<1x28x32xf32>
    %169 = vector.shape_cast %168 : vector<1x28x32xf32> to vector<28x32xf32>
    %170 = arith.truncf %169 : vector<28x32xf32> to vector<28x32xbf16>
    %c23 = arith.constant 23 : index
    %c0_135 = arith.constant 0 : index
    %c0_136 = arith.constant 0 : index
    %171 = vector.load %arg2[%c23, %c0_135, %c0_136] : memref<30x32x84xbf16, #tpu.memory_space<vmem>>, vector<1x32x84xbf16>
    %172 = vector.shape_cast %171 : vector<1x32x84xbf16> to vector<32x84xbf16>
    %cst_137 = arith.constant dense<0.000000e+00> : vector<28x84xf32>
    %173 = tpu.matmul %170, %172, %cst_137 {dimension_numbers = #tpu.dot_dimension_numbers<[1], [0], [0], [1], [0, 0, 1, 1], [], []>} : vector<28x32xbf16>, vector<32x84xbf16>, vector<28x84xf32> -> vector<28x84xf32>
    %174 = arith.addf %167, %173 : vector<28x84xf32>
    %c0_138 = arith.constant 0 : index
    %c3_139 = arith.constant 3 : index
    %c0_140 = arith.constant 0 : index
    %175 = vector.load %arg1[%c0_138, %c3_139, %c0_140] : memref<1x96x32xf32, #tpu.memory_space<vmem>>, vector<1x28x32xf32>
    %176 = vector.shape_cast %175 : vector<1x28x32xf32> to vector<28x32xf32>
    %177 = arith.truncf %176 : vector<28x32xf32> to vector<28x32xbf16>
    %c24 = arith.constant 24 : index
    %c0_141 = arith.constant 0 : index
    %c0_142 = arith.constant 0 : index
    %178 = vector.load %arg2[%c24, %c0_141, %c0_142] : memref<30x32x84xbf16, #tpu.memory_space<vmem>>, vector<1x32x84xbf16>
    %179 = vector.shape_cast %178 : vector<1x32x84xbf16> to vector<32x84xbf16>
    %cst_143 = arith.constant dense<0.000000e+00> : vector<28x84xf32>
    %180 = tpu.matmul %177, %179, %cst_143 {dimension_numbers = #tpu.dot_dimension_numbers<[1], [0], [0], [1], [0, 0, 1, 1], [], []>} : vector<28x32xbf16>, vector<32x84xbf16>, vector<28x84xf32> -> vector<28x84xf32>
    %181 = arith.addf %174, %180 : vector<28x84xf32>
    %c0_144 = arith.constant 0 : index
    %c35_145 = arith.constant 35 : index
    %c0_146 = arith.constant 0 : index
    %182 = vector.load %arg1[%c0_144, %c35_145, %c0_146] : memref<1x96x32xf32, #tpu.memory_space<vmem>>, vector<1x28x32xf32>
    %183 = vector.shape_cast %182 : vector<1x28x32xf32> to vector<28x32xf32>
    %184 = arith.truncf %183 : vector<28x32xf32> to vector<28x32xbf16>
    %c25 = arith.constant 25 : index
    %c0_147 = arith.constant 0 : index
    %c0_148 = arith.constant 0 : index
    %185 = vector.load %arg2[%c25, %c0_147, %c0_148] : memref<30x32x84xbf16, #tpu.memory_space<vmem>>, vector<1x32x84xbf16>
    %186 = vector.shape_cast %185 : vector<1x32x84xbf16> to vector<32x84xbf16>
    %cst_149 = arith.constant dense<0.000000e+00> : vector<28x84xf32>
    %187 = tpu.matmul %184, %186, %cst_149 {dimension_numbers = #tpu.dot_dimension_numbers<[1], [0], [0], [1], [0, 0, 1, 1], [], []>} : vector<28x32xbf16>, vector<32x84xbf16>, vector<28x84xf32> -> vector<28x84xf32>
    %188 = arith.addf %181, %187 : vector<28x84xf32>
    %c0_150 = arith.constant 0 : index
    %c67_151 = arith.constant 67 : index
    %c0_152 = arith.constant 0 : index
    %189 = vector.load %arg1[%c0_150, %c67_151, %c0_152] : memref<1x96x32xf32, #tpu.memory_space<vmem>>, vector<1x28x32xf32>
    %190 = vector.shape_cast %189 : vector<1x28x32xf32> to vector<28x32xf32>
    %191 = arith.truncf %190 : vector<28x32xf32> to vector<28x32xbf16>
    %c26 = arith.constant 26 : index
    %c0_153 = arith.constant 0 : index
    %c0_154 = arith.constant 0 : index
    %192 = vector.load %arg2[%c26, %c0_153, %c0_154] : memref<30x32x84xbf16, #tpu.memory_space<vmem>>, vector<1x32x84xbf16>
    %193 = vector.shape_cast %192 : vector<1x32x84xbf16> to vector<32x84xbf16>
    %cst_155 = arith.constant dense<0.000000e+00> : vector<28x84xf32>
    %194 = tpu.matmul %191, %193, %cst_155 {dimension_numbers = #tpu.dot_dimension_numbers<[1], [0], [0], [1], [0, 0, 1, 1], [], []>} : vector<28x32xbf16>, vector<32x84xbf16>, vector<28x84xf32> -> vector<28x84xf32>
    %195 = arith.addf %188, %194 : vector<28x84xf32>
    %c0_156 = arith.constant 0 : index
    %c4_157 = arith.constant 4 : index
    %c0_158 = arith.constant 0 : index
    %196 = vector.load %arg1[%c0_156, %c4_157, %c0_158] : memref<1x96x32xf32, #tpu.memory_space<vmem>>, vector<1x28x32xf32>
    %197 = vector.shape_cast %196 : vector<1x28x32xf32> to vector<28x32xf32>
    %198 = arith.truncf %197 : vector<28x32xf32> to vector<28x32xbf16>
    %c27 = arith.constant 27 : index
    %c0_159 = arith.constant 0 : index
    %c0_160 = arith.constant 0 : index
    %199 = vector.load %arg2[%c27, %c0_159, %c0_160] : memref<30x32x84xbf16, #tpu.memory_space<vmem>>, vector<1x32x84xbf16>
    %200 = vector.shape_cast %199 : vector<1x32x84xbf16> to vector<32x84xbf16>
    %cst_161 = arith.constant dense<0.000000e+00> : vector<28x84xf32>
    %201 = tpu.matmul %198, %200, %cst_161 {dimension_numbers = #tpu.dot_dimension_numbers<[1], [0], [0], [1], [0, 0, 1, 1], [], []>} : vector<28x32xbf16>, vector<32x84xbf16>, vector<28x84xf32> -> vector<28x84xf32>
    %202 = arith.addf %195, %201 : vector<28x84xf32>
    %c0_162 = arith.constant 0 : index
    %c36_163 = arith.constant 36 : index
    %c0_164 = arith.constant 0 : index
    %203 = vector.load %arg1[%c0_162, %c36_163, %c0_164] : memref<1x96x32xf32, #tpu.memory_space<vmem>>, vector<1x28x32xf32>
    %204 = vector.shape_cast %203 : vector<1x28x32xf32> to vector<28x32xf32>
    %205 = arith.truncf %204 : vector<28x32xf32> to vector<28x32xbf16>
    %c28 = arith.constant 28 : index
    %c0_165 = arith.constant 0 : index
    %c0_166 = arith.constant 0 : index
    %206 = vector.load %arg2[%c28, %c0_165, %c0_166] : memref<30x32x84xbf16, #tpu.memory_space<vmem>>, vector<1x32x84xbf16>
    %207 = vector.shape_cast %206 : vector<1x32x84xbf16> to vector<32x84xbf16>
    %cst_167 = arith.constant dense<0.000000e+00> : vector<28x84xf32>
    %208 = tpu.matmul %205, %207, %cst_167 {dimension_numbers = #tpu.dot_dimension_numbers<[1], [0], [0], [1], [0, 0, 1, 1], [], []>} : vector<28x32xbf16>, vector<32x84xbf16>, vector<28x84xf32> -> vector<28x84xf32>
    %209 = arith.addf %202, %208 : vector<28x84xf32>
    %c0_168 = arith.constant 0 : index
    %c68_169 = arith.constant 68 : index
    %c0_170 = arith.constant 0 : index
    %210 = vector.load %arg1[%c0_168, %c68_169, %c0_170] : memref<1x96x32xf32, #tpu.memory_space<vmem>>, vector<1x28x32xf32>
    %211 = vector.shape_cast %210 : vector<1x28x32xf32> to vector<28x32xf32>
    %212 = arith.truncf %211 : vector<28x32xf32> to vector<28x32xbf16>
    %c29 = arith.constant 29 : index
    %c0_171 = arith.constant 0 : index
    %c0_172 = arith.constant 0 : index
    %213 = vector.load %arg2[%c29, %c0_171, %c0_172] : memref<30x32x84xbf16, #tpu.memory_space<vmem>>, vector<1x32x84xbf16>
    %214 = vector.shape_cast %213 : vector<1x32x84xbf16> to vector<32x84xbf16>
    %cst_173 = arith.constant dense<0.000000e+00> : vector<28x84xf32>
    %215 = tpu.matmul %212, %214, %cst_173 {dimension_numbers = #tpu.dot_dimension_numbers<[1], [0], [0], [1], [0, 0, 1, 1], [], []>} : vector<28x32xbf16>, vector<32x84xbf16>, vector<28x84xf32> -> vector<28x84xf32>
    %216 = arith.addf %209, %215 : vector<28x84xf32>
    %c0_174 = arith.constant 0 : index
    %c0_175 = arith.constant 0 : index
    %217 = vector.load %arg3[%c0_174, %c0_175] : memref<1x84xf32, #tpu.memory_space<vmem>>, vector<1x84xf32>
    %218 = vector.broadcast %217 : vector<1x84xf32> to vector<28x84xf32>
    %219 = arith.addf %216, %218 : vector<28x84xf32>
    %cst_176 = arith.constant 0.000000e+00 : f32
    %220 = vector.broadcast %cst_176 : f32 to vector<28x84xf32>
    %221 = arith.maximumf %219, %220 : vector<28x84xf32>
    %222 = arith.maximumf %110, %221 : vector<28x84xf32>
    %223 = arith.truncf %222 : vector<28x84xf32> to vector<28x84xbf16>
    %c0_177 = arith.constant 0 : index
    %c0_178 = arith.constant 0 : index
    %c0_179 = arith.constant 0 : index
    %224 = vector.load %arg6[%c0_177, %c0_178, %c0_179] : memref<2x14x28xbf16, #tpu.memory_space<vmem>>, vector<1x14x28xbf16>
    %225 = vector.shape_cast %224 : vector<1x14x28xbf16> to vector<14x28xbf16>
    %cst_180 = arith.constant dense<0.000000e+00> : vector<14x84xf32>
    %226 = tpu.matmul %225, %223, %cst_180 {dimension_numbers = #tpu.dot_dimension_numbers<[1], [0], [0], [1], [0, 0, 1, 1], [], []>} : vector<14x28xbf16>, vector<28x84xbf16>, vector<14x84xf32> -> vector<14x84xf32>
    %c1_181 = arith.constant 1 : index
    %c0_182 = arith.constant 0 : index
    %c0_183 = arith.constant 0 : index
    %227 = vector.load %arg6[%c1_181, %c0_182, %c0_183] : memref<2x14x28xbf16, #tpu.memory_space<vmem>>, vector<1x14x28xbf16>
    %228 = vector.shape_cast %227 : vector<1x14x28xbf16> to vector<14x28xbf16>
    %cst_184 = arith.constant dense<0.000000e+00> : vector<14x84xf32>
    %229 = tpu.matmul %228, %223, %cst_184 {dimension_numbers = #tpu.dot_dimension_numbers<[1], [0], [0], [1], [0, 0, 1, 1], [], []>} : vector<14x28xbf16>, vector<28x84xbf16>, vector<14x84xf32> -> vector<14x84xf32>
    %230 = arith.maximumf %226, %229 : vector<14x84xf32>
    %cst_185 = arith.constant 0.000000e+00 : f32
    %231 = vector.broadcast %cst_185 : f32 to vector<10x80xf32>
    %232 = vector.extract_strided_slice %230 {offsets = [0, 0], sizes = [10, 84], strides = [1, 1]} : vector<14x84xf32> to vector<10x84xf32>
    %233 = arith.truncf %232 : vector<10x84xf32> to vector<10x84xbf16>
    %c0_186 = arith.constant 0 : index
    %c0_187 = arith.constant 0 : index
    %c0_188 = arith.constant 0 : index
    %234 = vector.load %arg4[%c0_186, %c0_187, %c0_188] : memref<10x84x80xbf16, #tpu.memory_space<vmem>>, vector<1x84x80xbf16>
    %235 = vector.shape_cast %234 : vector<1x84x80xbf16> to vector<84x80xbf16>
    %cst_189 = arith.constant dense<0.000000e+00> : vector<10x80xf32>
    %236 = tpu.matmul %233, %235, %cst_189 {dimension_numbers = #tpu.dot_dimension_numbers<[1], [0], [0], [1], [0, 0, 1, 1], [], []>} : vector<10x84xbf16>, vector<84x80xbf16>, vector<10x80xf32> -> vector<10x80xf32>
    %237 = arith.addf %231, %236 : vector<10x80xf32>
    %238 = vector.extract_strided_slice %230 {offsets = [1, 0], sizes = [10, 84], strides = [1, 1]} : vector<14x84xf32> to vector<10x84xf32>
    %239 = arith.truncf %238 : vector<10x84xf32> to vector<10x84xbf16>
    %c1_190 = arith.constant 1 : index
    %c0_191 = arith.constant 0 : index
    %c0_192 = arith.constant 0 : index
    %240 = vector.load %arg4[%c1_190, %c0_191, %c0_192] : memref<10x84x80xbf16, #tpu.memory_space<vmem>>, vector<1x84x80xbf16>
    %241 = vector.shape_cast %240 : vector<1x84x80xbf16> to vector<84x80xbf16>
    %cst_193 = arith.constant dense<0.000000e+00> : vector<10x80xf32>
    %242 = tpu.matmul %239, %241, %cst_193 {dimension_numbers = #tpu.dot_dimension_numbers<[1], [0], [0], [1], [0, 0, 1, 1], [], []>} : vector<10x84xbf16>, vector<84x80xbf16>, vector<10x80xf32> -> vector<10x80xf32>
    %243 = arith.addf %237, %242 : vector<10x80xf32>
    %244 = vector.extract_strided_slice %230 {offsets = [2, 0], sizes = [10, 84], strides = [1, 1]} : vector<14x84xf32> to vector<10x84xf32>
    %245 = arith.truncf %244 : vector<10x84xf32> to vector<10x84xbf16>
    %c2_194 = arith.constant 2 : index
    %c0_195 = arith.constant 0 : index
    %c0_196 = arith.constant 0 : index
    %246 = vector.load %arg4[%c2_194, %c0_195, %c0_196] : memref<10x84x80xbf16, #tpu.memory_space<vmem>>, vector<1x84x80xbf16>
    %247 = vector.shape_cast %246 : vector<1x84x80xbf16> to vector<84x80xbf16>
    %cst_197 = arith.constant dense<0.000000e+00> : vector<10x80xf32>
    %248 = tpu.matmul %245, %247, %cst_197 {dimension_numbers = #tpu.dot_dimension_numbers<[1], [0], [0], [1], [0, 0, 1, 1], [], []>} : vector<10x84xbf16>, vector<84x80xbf16>, vector<10x80xf32> -> vector<10x80xf32>
    %249 = arith.addf %243, %248 : vector<10x80xf32>
    %250 = vector.extract_strided_slice %230 {offsets = [3, 0], sizes = [10, 84], strides = [1, 1]} : vector<14x84xf32> to vector<10x84xf32>
    %251 = arith.truncf %250 : vector<10x84xf32> to vector<10x84xbf16>
    %c3_198 = arith.constant 3 : index
    %c0_199 = arith.constant 0 : index
    %c0_200 = arith.constant 0 : index
    %252 = vector.load %arg4[%c3_198, %c0_199, %c0_200] : memref<10x84x80xbf16, #tpu.memory_space<vmem>>, vector<1x84x80xbf16>
    %253 = vector.shape_cast %252 : vector<1x84x80xbf16> to vector<84x80xbf16>
    %cst_201 = arith.constant dense<0.000000e+00> : vector<10x80xf32>
    %254 = tpu.matmul %251, %253, %cst_201 {dimension_numbers = #tpu.dot_dimension_numbers<[1], [0], [0], [1], [0, 0, 1, 1], [], []>} : vector<10x84xbf16>, vector<84x80xbf16>, vector<10x80xf32> -> vector<10x80xf32>
    %255 = arith.addf %249, %254 : vector<10x80xf32>
    %256 = vector.extract_strided_slice %230 {offsets = [4, 0], sizes = [10, 84], strides = [1, 1]} : vector<14x84xf32> to vector<10x84xf32>
    %257 = arith.truncf %256 : vector<10x84xf32> to vector<10x84xbf16>
    %c4_202 = arith.constant 4 : index
    %c0_203 = arith.constant 0 : index
    %c0_204 = arith.constant 0 : index
    %258 = vector.load %arg4[%c4_202, %c0_203, %c0_204] : memref<10x84x80xbf16, #tpu.memory_space<vmem>>, vector<1x84x80xbf16>
    %259 = vector.shape_cast %258 : vector<1x84x80xbf16> to vector<84x80xbf16>
    %cst_205 = arith.constant dense<0.000000e+00> : vector<10x80xf32>
    %260 = tpu.matmul %257, %259, %cst_205 {dimension_numbers = #tpu.dot_dimension_numbers<[1], [0], [0], [1], [0, 0, 1, 1], [], []>} : vector<10x84xbf16>, vector<84x80xbf16>, vector<10x80xf32> -> vector<10x80xf32>
    %261 = arith.addf %255, %260 : vector<10x80xf32>
    %c0_206 = arith.constant 0 : index
    %c0_207 = arith.constant 0 : index
    %262 = vector.load %arg5[%c0_206, %c0_207] : memref<1x80xf32, #tpu.memory_space<vmem>>, vector<1x80xf32>
    %263 = vector.broadcast %262 : vector<1x80xf32> to vector<10x80xf32>
    %264 = arith.addf %261, %263 : vector<10x80xf32>
    %cst_208 = arith.constant 0.000000e+00 : f32
    %265 = vector.broadcast %cst_208 : f32 to vector<10x80xf32>
    %266 = arith.maximumf %264, %265 : vector<10x80xf32>
    %cst_209 = arith.constant 0.000000e+00 : f32
    %267 = vector.broadcast %cst_209 : f32 to vector<10x80xf32>
    %268 = vector.extract_strided_slice %230 {offsets = [0, 0], sizes = [10, 84], strides = [1, 1]} : vector<14x84xf32> to vector<10x84xf32>
    %269 = arith.truncf %268 : vector<10x84xf32> to vector<10x84xbf16>
    %c5_210 = arith.constant 5 : index
    %c0_211 = arith.constant 0 : index
    %c0_212 = arith.constant 0 : index
    %270 = vector.load %arg4[%c5_210, %c0_211, %c0_212] : memref<10x84x80xbf16, #tpu.memory_space<vmem>>, vector<1x84x80xbf16>
    %271 = vector.shape_cast %270 : vector<1x84x80xbf16> to vector<84x80xbf16>
    %cst_213 = arith.constant dense<0.000000e+00> : vector<10x80xf32>
    %272 = tpu.matmul %269, %271, %cst_213 {dimension_numbers = #tpu.dot_dimension_numbers<[1], [0], [0], [1], [0, 0, 1, 1], [], []>} : vector<10x84xbf16>, vector<84x80xbf16>, vector<10x80xf32> -> vector<10x80xf32>
    %273 = arith.addf %267, %272 : vector<10x80xf32>
    %274 = vector.extract_strided_slice %230 {offsets = [1, 0], sizes = [10, 84], strides = [1, 1]} : vector<14x84xf32> to vector<10x84xf32>
    %275 = arith.truncf %274 : vector<10x84xf32> to vector<10x84xbf16>
    %c6_214 = arith.constant 6 : index
    %c0_215 = arith.constant 0 : index
    %c0_216 = arith.constant 0 : index
    %276 = vector.load %arg4[%c6_214, %c0_215, %c0_216] : memref<10x84x80xbf16, #tpu.memory_space<vmem>>, vector<1x84x80xbf16>
    %277 = vector.shape_cast %276 : vector<1x84x80xbf16> to vector<84x80xbf16>
    %cst_217 = arith.constant dense<0.000000e+00> : vector<10x80xf32>
    %278 = tpu.matmul %275, %277, %cst_217 {dimension_numbers = #tpu.dot_dimension_numbers<[1], [0], [0], [1], [0, 0, 1, 1], [], []>} : vector<10x84xbf16>, vector<84x80xbf16>, vector<10x80xf32> -> vector<10x80xf32>
    %279 = arith.addf %273, %278 : vector<10x80xf32>
    %280 = vector.extract_strided_slice %230 {offsets = [2, 0], sizes = [10, 84], strides = [1, 1]} : vector<14x84xf32> to vector<10x84xf32>
    %281 = arith.truncf %280 : vector<10x84xf32> to vector<10x84xbf16>
    %c7_218 = arith.constant 7 : index
    %c0_219 = arith.constant 0 : index
    %c0_220 = arith.constant 0 : index
    %282 = vector.load %arg4[%c7_218, %c0_219, %c0_220] : memref<10x84x80xbf16, #tpu.memory_space<vmem>>, vector<1x84x80xbf16>
    %283 = vector.shape_cast %282 : vector<1x84x80xbf16> to vector<84x80xbf16>
    %cst_221 = arith.constant dense<0.000000e+00> : vector<10x80xf32>
    %284 = tpu.matmul %281, %283, %cst_221 {dimension_numbers = #tpu.dot_dimension_numbers<[1], [0], [0], [1], [0, 0, 1, 1], [], []>} : vector<10x84xbf16>, vector<84x80xbf16>, vector<10x80xf32> -> vector<10x80xf32>
    %285 = arith.addf %279, %284 : vector<10x80xf32>
    %286 = vector.extract_strided_slice %230 {offsets = [3, 0], sizes = [10, 84], strides = [1, 1]} : vector<14x84xf32> to vector<10x84xf32>
    %287 = arith.truncf %286 : vector<10x84xf32> to vector<10x84xbf16>
    %c8_222 = arith.constant 8 : index
    %c0_223 = arith.constant 0 : index
    %c0_224 = arith.constant 0 : index
    %288 = vector.load %arg4[%c8_222, %c0_223, %c0_224] : memref<10x84x80xbf16, #tpu.memory_space<vmem>>, vector<1x84x80xbf16>
    %289 = vector.shape_cast %288 : vector<1x84x80xbf16> to vector<84x80xbf16>
    %cst_225 = arith.constant dense<0.000000e+00> : vector<10x80xf32>
    %290 = tpu.matmul %287, %289, %cst_225 {dimension_numbers = #tpu.dot_dimension_numbers<[1], [0], [0], [1], [0, 0, 1, 1], [], []>} : vector<10x84xbf16>, vector<84x80xbf16>, vector<10x80xf32> -> vector<10x80xf32>
    %291 = arith.addf %285, %290 : vector<10x80xf32>
    %292 = vector.extract_strided_slice %230 {offsets = [4, 0], sizes = [10, 84], strides = [1, 1]} : vector<14x84xf32> to vector<10x84xf32>
    %293 = arith.truncf %292 : vector<10x84xf32> to vector<10x84xbf16>
    %c9_226 = arith.constant 9 : index
    %c0_227 = arith.constant 0 : index
    %c0_228 = arith.constant 0 : index
    %294 = vector.load %arg4[%c9_226, %c0_227, %c0_228] : memref<10x84x80xbf16, #tpu.memory_space<vmem>>, vector<1x84x80xbf16>
    %295 = vector.shape_cast %294 : vector<1x84x80xbf16> to vector<84x80xbf16>
    %cst_229 = arith.constant dense<0.000000e+00> : vector<10x80xf32>
    %296 = tpu.matmul %293, %295, %cst_229 {dimension_numbers = #tpu.dot_dimension_numbers<[1], [0], [0], [1], [0, 0, 1, 1], [], []>} : vector<10x84xbf16>, vector<84x80xbf16>, vector<10x80xf32> -> vector<10x80xf32>
    %297 = arith.addf %291, %296 : vector<10x80xf32>
    %c0_230 = arith.constant 0 : index
    %c0_231 = arith.constant 0 : index
    %298 = vector.load %arg5[%c0_230, %c0_231] : memref<1x80xf32, #tpu.memory_space<vmem>>, vector<1x80xf32>
    %299 = vector.broadcast %298 : vector<1x80xf32> to vector<10x80xf32>
    %300 = arith.addf %297, %299 : vector<10x80xf32>
    %cst_232 = arith.constant 0.000000e+00 : f32
    %301 = vector.broadcast %cst_232 : f32 to vector<10x80xf32>
    %302 = arith.maximumf %300, %301 : vector<10x80xf32>
    %303 = arith.maximumf %266, %302 : vector<10x80xf32>
    %304 = arith.truncf %303 : vector<10x80xf32> to vector<10x80xbf16>
    %c0_233 = arith.constant 0 : index
    %c0_234 = arith.constant 0 : index
    %c0_235 = arith.constant 0 : index
    %305 = vector.load %arg7[%c0_233, %c0_234, %c0_235] : memref<2x5x10xbf16, #tpu.memory_space<vmem>>, vector<1x5x10xbf16>
    %306 = vector.shape_cast %305 : vector<1x5x10xbf16> to vector<5x10xbf16>
    %cst_236 = arith.constant dense<0.000000e+00> : vector<5x80xf32>
    %307 = tpu.matmul %306, %304, %cst_236 {dimension_numbers = #tpu.dot_dimension_numbers<[1], [0], [0], [1], [0, 0, 1, 1], [], []>} : vector<5x10xbf16>, vector<10x80xbf16>, vector<5x80xf32> -> vector<5x80xf32>
    %c1_237 = arith.constant 1 : index
    %c0_238 = arith.constant 0 : index
    %c0_239 = arith.constant 0 : index
    %308 = vector.load %arg7[%c1_237, %c0_238, %c0_239] : memref<2x5x10xbf16, #tpu.memory_space<vmem>>, vector<1x5x10xbf16>
    %309 = vector.shape_cast %308 : vector<1x5x10xbf16> to vector<5x10xbf16>
    %cst_240 = arith.constant dense<0.000000e+00> : vector<5x80xf32>
    %310 = tpu.matmul %309, %304, %cst_240 {dimension_numbers = #tpu.dot_dimension_numbers<[1], [0], [0], [1], [0, 0, 1, 1], [], []>} : vector<5x10xbf16>, vector<10x80xbf16>, vector<5x80xf32> -> vector<5x80xf32>
    %311 = arith.maximumf %307, %310 : vector<5x80xf32>
    %cst_241 = arith.constant 0.000000e+00 : f32
    %312 = vector.broadcast %cst_241 : f32 to vector<1x128xf32>
    %313 = vector.extract_strided_slice %311 {offsets = [0, 0], sizes = [1, 80], strides = [1, 1]} : vector<5x80xf32> to vector<1x80xf32>
    %314 = arith.truncf %313 : vector<1x80xf32> to vector<1x80xbf16>
    %c0_242 = arith.constant 0 : index
    %c0_243 = arith.constant 0 : index
    %c0_244 = arith.constant 0 : index
    %315 = vector.load %arg8[%c0_242, %c0_243, %c0_244] : memref<5x80x128xbf16, #tpu.memory_space<vmem>>, vector<1x80x128xbf16>
    %316 = vector.shape_cast %315 : vector<1x80x128xbf16> to vector<80x128xbf16>
    %cst_245 = arith.constant dense<0.000000e+00> : vector<1x128xf32>
    %317 = tpu.matmul %314, %316, %cst_245 {dimension_numbers = #tpu.dot_dimension_numbers<[1], [0], [0], [1], [0, 0, 1, 1], [], []>} : vector<1x80xbf16>, vector<80x128xbf16>, vector<1x128xf32> -> vector<1x128xf32>
    %318 = arith.addf %312, %317 : vector<1x128xf32>
    %319 = vector.extract_strided_slice %311 {offsets = [1, 0], sizes = [1, 80], strides = [1, 1]} : vector<5x80xf32> to vector<1x80xf32>
    %320 = arith.truncf %319 : vector<1x80xf32> to vector<1x80xbf16>
    %c1_246 = arith.constant 1 : index
    %c0_247 = arith.constant 0 : index
    %c0_248 = arith.constant 0 : index
    %321 = vector.load %arg8[%c1_246, %c0_247, %c0_248] : memref<5x80x128xbf16, #tpu.memory_space<vmem>>, vector<1x80x128xbf16>
    %322 = vector.shape_cast %321 : vector<1x80x128xbf16> to vector<80x128xbf16>
    %cst_249 = arith.constant dense<0.000000e+00> : vector<1x128xf32>
    %323 = tpu.matmul %320, %322, %cst_249 {dimension_numbers = #tpu.dot_dimension_numbers<[1], [0], [0], [1], [0, 0, 1, 1], [], []>} : vector<1x80xbf16>, vector<80x128xbf16>, vector<1x128xf32> -> vector<1x128xf32>
    %324 = arith.addf %318, %323 : vector<1x128xf32>
    %325 = vector.extract_strided_slice %311 {offsets = [2, 0], sizes = [1, 80], strides = [1, 1]} : vector<5x80xf32> to vector<1x80xf32>
    %326 = arith.truncf %325 : vector<1x80xf32> to vector<1x80xbf16>
    %c2_250 = arith.constant 2 : index
    %c0_251 = arith.constant 0 : index
    %c0_252 = arith.constant 0 : index
    %327 = vector.load %arg8[%c2_250, %c0_251, %c0_252] : memref<5x80x128xbf16, #tpu.memory_space<vmem>>, vector<1x80x128xbf16>
    %328 = vector.shape_cast %327 : vector<1x80x128xbf16> to vector<80x128xbf16>
    %cst_253 = arith.constant dense<0.000000e+00> : vector<1x128xf32>
    %329 = tpu.matmul %326, %328, %cst_253 {dimension_numbers = #tpu.dot_dimension_numbers<[1], [0], [0], [1], [0, 0, 1, 1], [], []>} : vector<1x80xbf16>, vector<80x128xbf16>, vector<1x128xf32> -> vector<1x128xf32>
    %330 = arith.addf %324, %329 : vector<1x128xf32>
    %331 = vector.extract_strided_slice %311 {offsets = [3, 0], sizes = [1, 80], strides = [1, 1]} : vector<5x80xf32> to vector<1x80xf32>
    %332 = arith.truncf %331 : vector<1x80xf32> to vector<1x80xbf16>
    %c3_254 = arith.constant 3 : index
    %c0_255 = arith.constant 0 : index
    %c0_256 = arith.constant 0 : index
    %333 = vector.load %arg8[%c3_254, %c0_255, %c0_256] : memref<5x80x128xbf16, #tpu.memory_space<vmem>>, vector<1x80x128xbf16>
    %334 = vector.shape_cast %333 : vector<1x80x128xbf16> to vector<80x128xbf16>
    %cst_257 = arith.constant dense<0.000000e+00> : vector<1x128xf32>
    %335 = tpu.matmul %332, %334, %cst_257 {dimension_numbers = #tpu.dot_dimension_numbers<[1], [0], [0], [1], [0, 0, 1, 1], [], []>} : vector<1x80xbf16>, vector<80x128xbf16>, vector<1x128xf32> -> vector<1x128xf32>
    %336 = arith.addf %330, %335 : vector<1x128xf32>
    %337 = vector.extract_strided_slice %311 {offsets = [4, 0], sizes = [1, 80], strides = [1, 1]} : vector<5x80xf32> to vector<1x80xf32>
    %338 = arith.truncf %337 : vector<1x80xf32> to vector<1x80xbf16>
    %c4_258 = arith.constant 4 : index
    %c0_259 = arith.constant 0 : index
    %c0_260 = arith.constant 0 : index
    %339 = vector.load %arg8[%c4_258, %c0_259, %c0_260] : memref<5x80x128xbf16, #tpu.memory_space<vmem>>, vector<1x80x128xbf16>
    %340 = vector.shape_cast %339 : vector<1x80x128xbf16> to vector<80x128xbf16>
    %cst_261 = arith.constant dense<0.000000e+00> : vector<1x128xf32>
    %341 = tpu.matmul %338, %340, %cst_261 {dimension_numbers = #tpu.dot_dimension_numbers<[1], [0], [0], [1], [0, 0, 1, 1], [], []>} : vector<1x80xbf16>, vector<80x128xbf16>, vector<1x128xf32> -> vector<1x128xf32>
    %342 = arith.addf %336, %341 : vector<1x128xf32>
    %c0_262 = arith.constant 0 : index
    %c0_263 = arith.constant 0 : index
    %343 = vector.load %arg9[%c0_262, %c0_263] : memref<1x128xf32, #tpu.memory_space<vmem>>, vector<1x128xf32>
    %344 = arith.addf %342, %343 : vector<1x128xf32>
    %cst_264 = arith.constant 0.000000e+00 : f32
    %345 = vector.broadcast %cst_264 : f32 to vector<1x128xf32>
    %346 = arith.maximumf %344, %345 : vector<1x128xf32>
    %347 = arith.truncf %346 : vector<1x128xf32> to vector<1x128xbf16>
    %c0_265 = arith.constant 0 : index
    %c0_266 = arith.constant 0 : index
    %348 = vector.load %arg10[%c0_265, %c0_266] : memref<128x128xbf16, #tpu.memory_space<vmem>>, vector<128x128xbf16>
    %cst_267 = arith.constant dense<0.000000e+00> : vector<1x128xf32>
    %349 = tpu.matmul %347, %348, %cst_267 {dimension_numbers = #tpu.dot_dimension_numbers<[1], [0], [0], [1], [0, 0, 1, 1], [], []>} : vector<1x128xbf16>, vector<128x128xbf16>, vector<1x128xf32> -> vector<1x128xf32>
    %c0_268 = arith.constant 0 : index
    %c0_269 = arith.constant 0 : index
    %350 = vector.load %arg11[%c0_268, %c0_269] : memref<1x128xf32, #tpu.memory_space<vmem>>, vector<1x128xf32>
    %351 = arith.addf %349, %350 : vector<1x128xf32>
    %cst_270 = arith.constant 0.000000e+00 : f32
    %352 = vector.broadcast %cst_270 : f32 to vector<1x128xf32>
    %353 = arith.maximumf %351, %352 : vector<1x128xf32>
    %354 = arith.truncf %353 : vector<1x128xf32> to vector<1x128xbf16>
    %c0_271 = arith.constant 0 : index
    %c0_272 = arith.constant 0 : index
    %355 = vector.load %arg12[%c0_271, %c0_272] : memref<128x10xbf16, #tpu.memory_space<vmem>>, vector<128x10xbf16>
    %cst_273 = arith.constant dense<0.000000e+00> : vector<1x10xf32>
    %356 = tpu.matmul %354, %355, %cst_273 {dimension_numbers = #tpu.dot_dimension_numbers<[1], [0], [0], [1], [0, 0, 1, 1], [], []>} : vector<1x128xbf16>, vector<128x10xbf16>, vector<1x10xf32> -> vector<1x10xf32>
    %c0_274 = arith.constant 0 : index
    %c0_275 = arith.constant 0 : index
    %357 = vector.load %arg13[%c0_274, %c0_275] : memref<1x10xf32, #tpu.memory_space<vmem>>, vector<1x10xf32>
    %358 = arith.addf %356, %357 : vector<1x10xf32>
    %c0_276 = arith.constant 0 : index
    %c0_277 = arith.constant 0 : index
    %c0_278 = arith.constant 0 : index
    %359 = vector.load %arg14[%c0_276, %c0_277, %c0_278] : memref<1x1x10xf32, #tpu.memory_space<vmem>>, vector<1x1x10xf32>
    %360 = vector.shape_cast %359 : vector<1x1x10xf32> to vector<1x10xf32>
    %361 = vector.shape_cast %358 : vector<1x10xf32> to vector<1x1x10xf32>
    tpu.vector_store %arg14[%c0_276, %c0_277, %c0_278], %361 {strides = array<i32>} : memref<1x1x10xf32, #tpu.memory_space<vmem>>, vector<1x1x10xf32>,
    return
  }
  func.func @transform_0(%arg0: i32) -> (i32, i32, i32) {
    %c0_i32 = arith.constant 0 : i32
    %c0_i32_0 = arith.constant 0 : i32
    %c0_i32_1 = arith.constant 0 : i32
    return %arg0, %c0_i32, %c0_i32_0 : i32, i32, i32
  }
  func.func @transform_1(%arg0: i32) -> (i32, i32, i32) {
    %c0_i32 = arith.constant 0 : i32
    %c0_i32_0 = arith.constant 0 : i32
    %c0_i32_1 = arith.constant 0 : i32
    %c0_i32_2 = arith.constant 0 : i32
    return %c0_i32, %c0_i32_0, %c0_i32_1 : i32, i32, i32
  }
  func.func @transform_2(%arg0: i32) -> (i32, i32) {
    %c0_i32 = arith.constant 0 : i32
    %c0_i32_0 = arith.constant 0 : i32
    %c0_i32_1 = arith.constant 0 : i32
    return %c0_i32, %c0_i32_0 : i32, i32
  }
  func.func @transform_3(%arg0: i32) -> (i32, i32, i32) {
    %c0_i32 = arith.constant 0 : i32
    %c0_i32_0 = arith.constant 0 : i32
    %c0_i32_1 = arith.constant 0 : i32
    %c0_i32_2 = arith.constant 0 : i32
    return %c0_i32, %c0_i32_0, %c0_i32_1 : i32, i32, i32
  }
  func.func @transform_4(%arg0: i32) -> (i32, i32) {
    %c0_i32 = arith.constant 0 : i32
    %c0_i32_0 = arith.constant 0 : i32
    %c0_i32_1 = arith.constant 0 : i32
    return %c0_i32, %c0_i32_0 : i32, i32
  }
  func.func @transform_5(%arg0: i32) -> (i32, i32, i32) {
    %c0_i32 = arith.constant 0 : i32
    %c0_i32_0 = arith.constant 0 : i32
    %c0_i32_1 = arith.constant 0 : i32
    %c0_i32_2 = arith.constant 0 : i32
    return %c0_i32, %c0_i32_0, %c0_i32_1 : i32, i32, i32
  }
  func.func @transform_6(%arg0: i32) -> (i32, i32, i32) {
    %c0_i32 = arith.constant 0 : i32
    %c0_i32_0 = arith.constant 0 : i32
    %c0_i32_1 = arith.constant 0 : i32
    %c0_i32_2 = arith.constant 0 : i32
    return %c0_i32, %c0_i32_0, %c0_i32_1 : i32, i32, i32
  }
  func.func @transform_7(%arg0: i32) -> (i32, i32, i32) {
    %c0_i32 = arith.constant 0 : i32
    %c0_i32_0 = arith.constant 0 : i32
    %c0_i32_1 = arith.constant 0 : i32
    %c0_i32_2 = arith.constant 0 : i32
    return %c0_i32, %c0_i32_0, %c0_i32_1 : i32, i32, i32
  }
  func.func @transform_8(%arg0: i32) -> (i32, i32) {
    %c0_i32 = arith.constant 0 : i32
    %c0_i32_0 = arith.constant 0 : i32
    %c0_i32_1 = arith.constant 0 : i32
    return %c0_i32, %c0_i32_0 : i32, i32
  }
  func.func @transform_9(%arg0: i32) -> (i32, i32) {
    %c0_i32 = arith.constant 0 : i32
    %c0_i32_0 = arith.constant 0 : i32
    %c0_i32_1 = arith.constant 0 : i32
    return %c0_i32, %c0_i32_0 : i32, i32
  }
  func.func @transform_10(%arg0: i32) -> (i32, i32) {
    %c0_i32 = arith.constant 0 : i32
    %c0_i32_0 = arith.constant 0 : i32
    %c0_i32_1 = arith.constant 0 : i32
    return %c0_i32, %c0_i32_0 : i32, i32
  }
  func.func @transform_11(%arg0: i32) -> (i32, i32) {
    %c0_i32 = arith.constant 0 : i32
    %c0_i32_0 = arith.constant 0 : i32
    %c0_i32_1 = arith.constant 0 : i32
    return %c0_i32, %c0_i32_0 : i32, i32
  }
  func.func @transform_12(%arg0: i32) -> (i32, i32) {
    %c0_i32 = arith.constant 0 : i32
    %c0_i32_0 = arith.constant 0 : i32
    %c0_i32_1 = arith.constant 0 : i32
    return %c0_i32, %c0_i32_0 : i32, i32
  }
  func.func @transform_13(%arg0: i32) -> (i32, i32, i32) {
    %c0_i32 = arith.constant 0 : i32
    %c0_i32_0 = arith.constant 0 : i32
    %c0_i32_1 = arith.constant 0 : i32
    return %arg0, %c0_i32, %c0_i32_0 : i32, i32, i32
  }
}

</mosaic_0001>

<llo_original>
// kernel: net_forward.1
$region0: #{net_forward.1}
  #allocation0 [shape = 'u32[]', space=smem, size = 0x4, offset = 0x4, fixed_abs, tag = 'smem constant byte address 0x4 - core index']
  #allocation1 [shape = 'u32[144,128]{1,0:T(1,128)}', space=vmem, size = 0x12000, scoped, tag = 'internal scratch']
  %s0 = inlined_call_operand.vmem [shape: f32[2,96,32], index: 0, kind: input, shape index: {}]
  %s1 = inlined_call_operand.vmem [shape: bf16[30,32,84], index: 1, kind: input, shape index: {}]
  %s2 = inlined_call_operand.vmem [shape: f32[1,84], index: 2, kind: input, shape index: {}]
  %s3 = inlined_call_operand.vmem [shape: bf16[10,84,80], index: 3, kind: input, shape index: {}]
  %s4 = inlined_call_operand.vmem [shape: f32[1,80], index: 4, kind: input, shape index: {}]
  %s5 = inlined_call_operand.vmem [shape: bf16[2,14,28], index: 5, kind: input, shape index: {}]
  %s6 = inlined_call_operand.vmem [shape: bf16[2,5,10], index: 6, kind: input, shape index: {}]
  %s7 = inlined_call_operand.vmem [shape: bf16[5,80,128], index: 7, kind: input, shape index: {}]
  %s8 = inlined_call_operand.vmem [shape: f32[1,128], index: 8, kind: input, shape index: {}]
  %s9 = inlined_call_operand.vmem [shape: bf16[128,128], index: 9, kind: input, shape index: {}]
  %s10 = inlined_call_operand.vmem [shape: f32[1,128], index: 10, kind: input, shape index: {}]
  %s11 = inlined_call_operand.vmem [shape: bf16[128,10], index: 11, kind: input, shape index: {}]
  %s12 = inlined_call_operand.vmem [shape: f32[1,10], index: 12, kind: input, shape index: {}]
  %s13 = inlined_call_operand.hbm [shape: f32[2,1,10], index: 13, kind: output, shape index: {}]
  %s14 = sld [smem:[#allocation0]]
  $region85: #{net_forward.1} parent=0
    _
  %s16 = ssub.s32 1, %s14
  %s17 = scalar_select 0, %s16, %s14
  $region1: #{net_forward.1} parent=0
    #allocation2 [shape = 'u8[1024]{0}', space=vmem, size = 0x400, scoped, tag = 'output window, operand 0']
    #allocation3 [shape = 's32[2]{0}', space=sflag, size = 0x8, scoped, tag = 'scoped memory for net_forward.1']
    %18 = vsyncpa [#allocation3], 0
    %s19 = scalar_lea.sflag [#allocation3], 1
    %20 = vsyncpa %s19, 0
    loop: start=0, step=1, limit=4
    $region2: #{net_forward.1} parent=1 // loop_pre_header
      _
    $region3: #{net_forward.1} parent=1 // loop_header
      %s22 = sphi 0, %s26
      %p23 = scmp.ge.s32.totalorder %s22, 4
      %s32 = sphi 0, %s34
      %s35 = sphi 0, %s32
      %s36 = sphi 0, %s35
      %s52 = sphi 0, %s36
      %s56 = sphi 0, %s56
      %s58 = sphi 0, %s56
      %s59 = sphi 0, %s58
      %s73 = sphi 0, %s59
      %s77 = sphi 0, %s77
      %s79 = sphi 0, %s77
      %s80 = sphi 0, %s79
      %s94 = sphi 0, %s80
      %s98 = sphi 0, %s98
      %s100 = sphi 0, %s98
      %s101 = sphi 0, %s100
      %s115 = sphi 0, %s101
      %s119 = sphi 0, %s119
      %s121 = sphi 0, %s119
      %s122 = sphi 0, %s121
      %s136 = sphi 0, %s122
      %s140 = sphi 0, %s140
      %s142 = sphi 0, %s140
      %s143 = sphi 0, %s142
      %s157 = sphi 0, %s143
      %s161 = sphi 0, %s161
      %s163 = sphi 0, %s161
      %s164 = sphi 0, %s163
      %s178 = sphi 0, %s164
      %s182 = sphi 0, %s182
      %s184 = sphi 0, %s182
      %s185 = sphi 0, %s184
      %s199 = sphi 0, %s185
      %s203 = sphi 0, %s203
      %s205 = sphi 0, %s203
      %s206 = sphi 0, %s205
      %s220 = sphi 0, %s206
      %s224 = sphi 0, %s224
      %s226 = sphi 0, %s224
      %s227 = sphi 0, %s226
      %s241 = sphi 0, %s227
      %s245 = sphi 0, %s245
      %s247 = sphi 0, %s245
      %s248 = sphi 0, %s247
      %s262 = sphi 0, %s248
      %s266 = sphi 0, %s266
      %s268 = sphi 0, %s266
      %s269 = sphi 0, %s268
      %s283 = sphi 0, %s269
      %s287 = sphi 0, %s287
      %s289 = sphi 0, %s287
      %s290 = sphi 0, %s289
      %s304 = sphi 0, %s290
      %s310 = sphi 0, %s312
      %s313 = sphi 0, %s310
      %s314 = sphi 0, %s313
      %s330 = sphi 0, %s314
    $region4: #{net_forward.1} parent=1 // loop_header_branch
      %25 = sbr.rel (%p23) target = $region8
    $region5: #{net_forward.1} parent=1 // loop_body
      %s27 = ssub.s32 %s22, 1
      %s28 = ssub.s32 %s22, 2
      %s29 = sadd.s32 %s22, 1
      %s30 = ssub.s32 %s22, %s29
      %p31 = scmp.eq.s32.totalorder %s30, 0
      %s33 = sadd.s32 %s32, 1
      %s34 = scalar_select %p31, %s32, %s33
      %p37 = pneg %p31
      %p38 = scmp.eq.s32.totalorder %s22, 1
      %p39 = por %p37, %p38
      %p40 = scmp.ne.s32.totalorder %s32, %s35
      %p41 = scmp.eq.s32.totalorder %s22, 0
      %p42 = por %p40, %p41
      %p43 = scmp.ne.s32.totalorder %s32, %s35
      %p44 = scmp.eq.s32.totalorder %s27, 1
      %p45 = por %p43, %p44
      %p46 = scmp.ne.s32.totalorder %s35, %s36
      %p47 = scmp.eq.s32.totalorder %s27, 0
      %p48 = por %p46, %p47
      %p49 = scmp.ne.s32.totalorder %s35, %s36
      %p50 = scmp.eq.s32.totalorder %s28, 1
      %p51 = por %p49, %p50
      %p53 = scmp.ne.s32.totalorder %s36, %s52
      %p54 = scmp.eq.s32.totalorder %s28, 0
      %p55 = por %p53, %p54
      %s57 = sadd.s32 %s56, 1
      %p60 = scmp.eq.s32.totalorder %s22, 1
      %p61 = scmp.ne.s32.totalorder %s56, %s58
      %p62 = scmp.eq.s32.totalorder %s22, 0
      %p63 = por %p61, %p62
      %p64 = scmp.ne.s32.totalorder %s56, %s58
      %p65 = scmp.eq.s32.totalorder %s27, 1
      %p66 = por %p64, %p65
      %p67 = scmp.ne.s32.totalorder %s58, %s59
      %p68 = scmp.eq.s32.totalorder %s27, 0
      %p69 = por %p67, %p68
      %p70 = scmp.ne.s32.totalorder %s58, %s59
      %p71 = scmp.eq.s32.totalorder %s28, 1
      %p72 = por %p70, %p71
      %p74 = scmp.ne.s32.totalorder %s59, %s73
      %p75 = scmp.eq.s32.totalorder %s28, 0
      %p76 = por %p74, %p75
      %s78 = sadd.s32 %s77, 1
      %p81 = scmp.eq.s32.totalorder %s22, 1
      %p82 = scmp.ne.s32.totalorder %s77, %s79
      %p83 = scmp.eq.s32.totalorder %s22, 0
      %p84 = por %p82, %p83
      %p85 = scmp.ne.s32.totalorder %s77, %s79
      %p86 = scmp.eq.s32.totalorder %s27, 1
      %p87 = por %p85, %p86
      %p88 = scmp.ne.s32.totalorder %s79, %s80
      %p89 = scmp.eq.s32.totalorder %s27, 0
      %p90 = por %p88, %p89
      %p91 = scmp.ne.s32.totalorder %s79, %s80
      %p92 = scmp.eq.s32.totalorder %s28, 1
      %p93 = por %p91, %p92
      %p95 = scmp.ne.s32.totalorder %s80, %s94
      %p96 = scmp.eq.s32.totalorder %s28, 0
      %p97 = por %p95, %p96
      %s99 = sadd.s32 %s98, 1
      %p102 = scmp.eq.s32.totalorder %s22, 1
      %p103 = scmp.ne.s32.totalorder %s98, %s100
      %p104 = scmp.eq.s32.totalorder %s22, 0
      %p105 = por %p103, %p104
      %p106 = scmp.ne.s32.totalorder %s98, %s100
      %p107 = scmp.eq.s32.totalorder %s27, 1
      %p108 = por %p106, %p107
      %p109 = scmp.ne.s32.totalorder %s100, %s101
      %p110 = scmp.eq.s32.totalorder %s27, 0
      %p111 = por %p109, %p110
      %p112 = scmp.ne.s32.totalorder %s100, %s101
      %p113 = scmp.eq.s32.totalorder %s28, 1
      %p114 = por %p112, %p113
      %p116 = scmp.ne.s32.totalorder %s101, %s115
      %p117 = scmp.eq.s32.totalorder %s28, 0
      %p118 = por %p116, %p117
      %s120 = sadd.s32 %s119, 1
      %p123 = scmp.eq.s32.totalorder %s22, 1
      %p124 = scmp.ne.s32.totalorder %s119, %s121
      %p125 = scmp.eq.s32.totalorder %s22, 0
      %p126 = por %p124, %p125
      %p127 = scmp.ne.s32.totalorder %s119, %s121
      %p128 = scmp.eq.s32.totalorder %s27, 1
      %p129 = por %p127, %p128
      %p130 = scmp.ne.s32.totalorder %s121, %s122
      %p131 = scmp.eq.s32.totalorder %s27, 0
      %p132 = por %p130, %p131
      %p133 = scmp.ne.s32.totalorder %s121, %s122
      %p134 = scmp.eq.s32.totalorder %s28, 1
      %p135 = por %p133, %p134
      %p137 = scmp.ne.s32.totalorder %s122, %s136
      %p138 = scmp.eq.s32.totalorder %s28, 0
      %p139 = por %p137, %p138
      %s141 = sadd.s32 %s140, 1
      %p144 = scmp.eq.s32.totalorder %s22, 1
      %p145 = scmp.ne.s32.totalorder %s140, %s142
      %p146 = scmp.eq.s32.totalorder %s22, 0
      %p147 = por %p145, %p146
      %p148 = scmp.ne.s32.totalorder %s140, %s142
      %p149 = scmp.eq.s32.totalorder %s27, 1
      %p150 = por %p148, %p149
      %p151 = scmp.ne.s32.totalorder %s142, %s143
      %p152 = scmp.eq.s32.totalorder %s27, 0
      %p153 = por %p151, %p152
      %p154 = scmp.ne.s32.totalorder %s142, %s143
      %p155 = scmp.eq.s32.totalorder %s28, 1
      %p156 = por %p154, %p155
      %p158 = scmp.ne.s32.totalorder %s143, %s157
      %p159 = scmp.eq.s32.totalorder %s28, 0
      %p160 = por %p158, %p159
      %s162 = sadd.s32 %s161, 1
      %p165 = scmp.eq.s32.totalorder %s22, 1
      %p166 = scmp.ne.s32.totalorder %s161, %s163
      %p167 = scmp.eq.s32.totalorder %s22, 0
      %p168 = por %p166, %p167
      %p169 = scmp.ne.s32.totalorder %s161, %s163
      %p170 = scmp.eq.s32.totalorder %s27, 1
      %p171 = por %p169, %p170
      %p172 = scmp.ne.s32.totalorder %s163, %s164
      %p173 = scmp.eq.s32.totalorder %s27, 0
      %p174 = por %p172, %p173
      %p175 = scmp.ne.s32.totalorder %s163, %s164
      %p176 = scmp.eq.s32.totalorder %s28, 1
      %p177 = por %p175, %p176
      %p179 = scmp.ne.s32.totalorder %s164, %s178
      %p180 = scmp.eq.s32.totalorder %s28, 0
      %p181 = por %p179, %p180
      %s183 = sadd.s32 %s182, 1
      %p186 = scmp.eq.s32.totalorder %s22, 1
      %p187 = scmp.ne.s32.totalorder %s182, %s184
      %p188 = scmp.eq.s32.totalorder %s22, 0
      %p189 = por %p187, %p188
      %p190 = scmp.ne.s32.totalorder %s182, %s184
      %p191 = scmp.eq.s32.totalorder %s27, 1
      %p192 = por %p190, %p191
      %p193 = scmp.ne.s32.totalorder %s184, %s185
      %p194 = scmp.eq.s32.totalorder %s27, 0
      %p195 = por %p193, %p194
      %p196 = scmp.ne.s32.totalorder %s184, %s185
      %p197 = scmp.eq.s32.totalorder %s28, 1
      %p198 = por %p196, %p197
      %p200 = scmp.ne.s32.totalorder %s185, %s199
      %p201 = scmp.eq.s32.totalorder %s28, 0
      %p202 = por %p200, %p201
      %s204 = sadd.s32 %s203, 1
      %p207 = scmp.eq.s32.totalorder %s22, 1
      %p208 = scmp.ne.s32.totalorder %s203, %s205
      %p209 = scmp.eq.s32.totalorder %s22, 0
      %p210 = por %p208, %p209
      %p211 = scmp.ne.s32.totalorder %s203, %s205
      %p212 = scmp.eq.s32.totalorder %s27, 1
      %p213 = por %p211, %p212
      %p214 = scmp.ne.s32.totalorder %s205, %s206
      %p215 = scmp.eq.s32.totalorder %s27, 0
      %p216 = por %p214, %p215
      %p217 = scmp.ne.s32.totalorder %s205, %s206
      %p218 = scmp.eq.s32.totalorder %s28, 1
      %p219 = por %p217, %p218
      %p221 = scmp.ne.s32.totalorder %s206, %s220
      %p222 = scmp.eq.s32.totalorder %s28, 0
      %p223 = por %p221, %p222
      %s225 = sadd.s32 %s224, 1
      %p228 = scmp.eq.s32.totalorder %s22, 1
      %p229 = scmp.ne.s32.totalorder %s224, %s226
      %p230 = scmp.eq.s32.totalorder %s22, 0
      %p231 = por %p229, %p230
      %p232 = scmp.ne.s32.totalorder %s224, %s226
      %p233 = scmp.eq.s32.totalorder %s27, 1
      %p234 = por %p232, %p233
      %p235 = scmp.ne.s32.totalorder %s226, %s227
      %p236 = scmp.eq.s32.totalorder %s27, 0
      %p237 = por %p235, %p236
      %p238 = scmp.ne.s32.totalorder %s226, %s227
      %p239 = scmp.eq.s32.totalorder %s28, 1
      %p240 = por %p238, %p239
      %p242 = scmp.ne.s32.totalorder %s227, %s241
      %p243 = scmp.eq.s32.totalorder %s28, 0
      %p244 = por %p242, %p243
      %s246 = sadd.s32 %s245, 1
      %p249 = scmp.eq.s32.totalorder %s22, 1
      %p250 = scmp.ne.s32.totalorder %s245, %s247
      %p251 = scmp.eq.s32.totalorder %s22, 0
      %p252 = por %p250, %p251
      %p253 = scmp.ne.s32.totalorder %s245, %s247
      %p254 = scmp.eq.s32.totalorder %s27, 1
      %p255 = por %p253, %p254
      %p256 = scmp.ne.s32.totalorder %s247, %s248
      %p257 = scmp.eq.s32.totalorder %s27, 0
      %p258 = por %p256, %p257
      %p259 = scmp.ne.s32.totalorder %s247, %s248
      %p260 = scmp.eq.s32.totalorder %s28, 1
      %p261 = por %p259, %p260
      %p263 = scmp.ne.s32.totalorder %s248, %s262
      %p264 = scmp.eq.s32.totalorder %s28, 0
      %p265 = por %p263, %p264
      %s267 = sadd.s32 %s266, 1
      %p270 = scmp.eq.s32.totalorder %s22, 1
      %p271 = scmp.ne.s32.totalorder %s266, %s268
      %p272 = scmp.eq.s32.totalorder %s22, 0
      %p273 = por %p271, %p272
      %p274 = scmp.ne.s32.totalorder %s266, %s268
      %p275 = scmp.eq.s32.totalorder %s27, 1
      %p276 = por %p274, %p275
      %p277 = scmp.ne.s32.totalorder %s268, %s269
      %p278 = scmp.eq.s32.totalorder %s27, 0
      %p279 = por %p277, %p278
      %p280 = scmp.ne.s32.totalorder %s268, %s269
      %p281 = scmp.eq.s32.totalorder %s28, 1
      %p282 = por %p280, %p281
      %p284 = scmp.ne.s32.totalorder %s269, %s283
      %p285 = scmp.eq.s32.totalorder %s28, 0
      %p286 = por %p284, %p285
      %s288 = sadd.s32 %s287, 1
      %p291 = scmp.eq.s32.totalorder %s22, 1
      %p292 = scmp.ne.s32.totalorder %s287, %s289
      %p293 = scmp.eq.s32.totalorder %s22, 0
      %p294 = por %p292, %p293
      %p295 = scmp.ne.s32.totalorder %s287, %s289
      %p296 = scmp.eq.s32.totalorder %s27, 1
      %p297 = por %p295, %p296
      %p298 = scmp.ne.s32.totalorder %s289, %s290
      %p299 = scmp.eq.s32.totalorder %s27, 0
      %p300 = por %p298, %p299
      %p301 = scmp.ne.s32.totalorder %s289, %s290
      %p302 = scmp.eq.s32.totalorder %s28, 1
      %p303 = por %p301, %p302
      %p305 = scmp.ne.s32.totalorder %s290, %s304
      %p306 = scmp.eq.s32.totalorder %s28, 0
      %p307 = por %p305, %p306
      %s308 = ssub.s32 %s22, %s29
      %p309 = scmp.eq.s32.totalorder %s308, 0
      %s311 = sadd.s32 %s310, 1
      %s312 = scalar_select %p309, %s310, %s311
      %p315 = pneg %p309
      %p316 = scmp.eq.s32.totalorder %s22, 1
      %p317 = por %p315, %p316
      %p318 = scmp.ne.s32.totalorder %s310, %s313
      %p319 = scmp.eq.s32.totalorder %s22, 0
      %p320 = por %p318, %p319
      %p321 = scmp.ne.s32.totalorder %s310, %s313
      %p322 = scmp.eq.s32.totalorder %s27, 1
      %p323 = por %p321, %p322
      %p324 = scmp.ne.s32.totalorder %s313, %s314
      %p325 = scmp.eq.s32.totalorder %s27, 0
      %p326 = por %p324, %p325
      %p327 = scmp.ne.s32.totalorder %s313, %s314
      %p328 = scmp.eq.s32.totalorder %s28, 1
      %p329 = por %p327, %p328
      %p331 = scmp.ne.s32.totalorder %s314, %s330
      %p332 = scmp.eq.s32.totalorder %s28, 0
      %p333 = por %p331, %p332
      %p334 = scmp.le.s32.totalorder 1, %s22
      %p335 = scmp.lt.s32.totalorder %s22, 3
      %p336 = pnand %p334, %p335
      %p337 = pneg %p336
      // Predicated region
      $region9: #{net_forward.1} parent=5 // pred_check
        _
      $region10: #{net_forward.1} parent=5 // pred_check_branch
        %339 = sbr.rel (%p336) target = $region12
      $region11: #{net_forward.1} parent=5 // pred_region
        %s340 = ssub.s32 %s22, 1
        // Predicated region
        $region13: #{net_forward.1} parent=11 // pred_check
          %p341 = pneg %p69
        $region14: #{net_forward.1} parent=11 // pred_check_branch
          %343 = sbr.rel (%p341) target = $region16
        $region15: #{net_forward.1} parent=11 // pred_region
          _
        $region16: #{net_forward.1} parent=11 // pred_fallthru
          _
        // Predicated region
        $region17: #{net_forward.1} parent=11 // pred_check
          %p344 = pneg %p90
        $region18: #{net_forward.1} parent=11 // pred_check_branch
          %346 = sbr.rel (%p344) target = $region20
        $region19: #{net_forward.1} parent=11 // pred_region
          _
        $region20: #{net_forward.1} parent=11 // pred_fallthru
          _
        // Predicated region
        $region21: #{net_forward.1} parent=11 // pred_check
          %p347 = pneg %p111
        $region22: #{net_forward.1} parent=11 // pred_check_branch
          %349 = sbr.rel (%p347) target = $region24
        $region23: #{net_forward.1} parent=11 // pred_region
          _
        $region24: #{net_forward.1} parent=11 // pred_fallthru
          _
        // Predicated region
        $region25: #{net_forward.1} parent=11 // pred_check
          %p350 = pneg %p132
        $region26: #{net_forward.1} parent=11 // pred_check_branch
          %352 = sbr.rel (%p350) target = $region28
        $region27: #{net_forward.1} parent=11 // pred_region
          _
        $region28: #{net_forward.1} parent=11 // pred_fallthru
          _
        // Predicated region
        $region29: #{net_forward.1} parent=11 // pred_check
          %p353 = pneg %p153
        $region30: #{net_forward.1} parent=11 // pred_check_branch
          %355 = sbr.rel (%p353) target = $region32
        $region31: #{net_forward.1} parent=11 // pred_region
          _
        $region32: #{net_forward.1} parent=11 // pred_fallthru
          _
        // Predicated region
        $region33: #{net_forward.1} parent=11 // pred_check
          %p356 = pneg %p174
        $region34: #{net_forward.1} parent=11 // pred_check_branch
          %358 = sbr.rel (%p356) target = $region36
        $region35: #{net_forward.1} parent=11 // pred_region
          _
        $region36: #{net_forward.1} parent=11 // pred_fallthru
          _
        // Predicated region
        $region37: #{net_forward.1} parent=11 // pred_check
          %p359 = pneg %p195
        $region38: #{net_forward.1} parent=11 // pred_check_branch
          %361 = sbr.rel (%p359) target = $region40
        $region39: #{net_forward.1} parent=11 // pred_region
          _
        $region40: #{net_forward.1} parent=11 // pred_fallthru
          _
        // Predicated region
        $region41: #{net_forward.1} parent=11 // pred_check
          %p362 = pneg %p216
        $region42: #{net_forward.1} parent=11 // pred_check_branch
          %364 = sbr.rel (%p362) target = $region44
        $region43: #{net_forward.1} parent=11 // pred_region
          _
        $region44: #{net_forward.1} parent=11 // pred_fallthru
          _
        // Predicated region
        $region45: #{net_forward.1} parent=11 // pred_check
          %p365 = pneg %p237
        $region46: #{net_forward.1} parent=11 // pred_check_branch
          %367 = sbr.rel (%p365) target = $region48
        $region47: #{net_forward.1} parent=11 // pred_region
          _
        $region48: #{net_forward.1} parent=11 // pred_fallthru
          _
        // Predicated region
        $region49: #{net_forward.1} parent=11 // pred_check
          %p368 = pneg %p258
        $region50: #{net_forward.1} parent=11 // pred_check_branch
          %370 = sbr.rel (%p368) target = $region52
        $region51: #{net_forward.1} parent=11 // pred_region
          _
        $region52: #{net_forward.1} parent=11 // pred_fallthru
          _
        // Predicated region
        $region53: #{net_forward.1} parent=11 // pred_check
          %p371 = pneg %p279
        $region54: #{net_forward.1} parent=11 // pred_check_branch
          %373 = sbr.rel (%p371) target = $region56
        $region55: #{net_forward.1} parent=11 // pred_region
          _
        $region56: #{net_forward.1} parent=11 // pred_fallthru
          _
        // Predicated region
        $region57: #{net_forward.1} parent=11 // pred_check
          %p374 = pneg %p300
        $region58: #{net_forward.1} parent=11 // pred_check_branch
          %376 = sbr.rel (%p374) target = $region60
        $region59: #{net_forward.1} parent=11 // pred_region
          _
        $region60: #{net_forward.1} parent=11 // pred_fallthru
          _
      $region12: #{net_forward.1} parent=5 // pred_fallthru
        _
      %p377 = scmp.lt.s32.totalorder %s22, 2
      // Predicated region
      $region61: #{net_forward.1} parent=5 // pred_check
        %p378 = pneg %p377
      $region62: #{net_forward.1} parent=5 // pred_check_branch
        %380 = sbr.rel (%p378) target = $region64
      $region63: #{net_forward.1} parent=5 // pred_region
        // Predicated region
        $region65: #{net_forward.1} parent=63 // pred_check
          %p381 = pneg %p42
        $region66: #{net_forward.1} parent=63 // pred_check_branch
          %383 = sbr.rel (%p381) target = $region68
        $region67: #{net_forward.1} parent=63 // pred_region
          %p384 = scmp.lt.s32.totalorder %s22, 1
          %s385 = scalar_select %p384, %s22, 1
          %s386 = smul.addr %s385, 12
          %s387 = smul.addr %s386, 8
          %s388 = scalar_lea.vmem %s0, %s387
        $region68: #{net_forward.1} parent=63 // pred_fallthru
          _
      $region64: #{net_forward.1} parent=5 // pred_fallthru
        _
      %p389 = scmp.le.s32.totalorder 1, %s22
      %p390 = scmp.lt.s32.totalorder %s22, 3
      %p391 = pnand %p389, %p390
      %p392 = pneg %p391
      // Predicated region
      $region69: #{net_forward.1} parent=5 // pred_check
        _
      $region70: #{net_forward.1} parent=5 // pred_check_branch
        %394 = sbr.rel (%p391) target = $region72
      $region71: #{net_forward.1} parent=5 // pred_region
        %s395 = ssub.s32 %s22, 1
        %p396 = scmp.lt.s32.totalorder %s27, 1
        %s397 = scalar_select %p396, %s27, 1
        %s398 = smul.addr %s397, 12
        %s399 = smul.addr %s398, 8
        %s400 = scalar_lea.vmem %s0, %s399
        %p401 = pneg %p48
        %p402 = pneg %p45
        %p403 = pneg %p69
        %p404 = pneg %p66
        %p405 = pneg %p90
        %p406 = pneg %p87
        %p407 = pneg %p111
        %p408 = pneg %p108
        %p409 = pneg %p132
        %p410 = pneg %p129
        %p411 = pneg %p153
        %p412 = pneg %p150
        %p413 = pneg %p174
        %p414 = pneg %p171
        %p415 = pneg %p195
        %p416 = pneg %p192
        %p417 = pneg %p216
        %p418 = pneg %p213
        %p419 = pneg %p237
        %p420 = pneg %p234
        %p421 = pneg %p258
        %p422 = pneg %p255
        %p423 = pneg %p279
        %p424 = pneg %p276
        %p425 = pneg %p300
        %p426 = pneg %p297
        %p427 = pneg %p326
        %p428 = pneg %p323
        %s429 = sand.u32 %s313, 1
        %s430 = scalar_lea.sflag [#allocation3], %s429
        %s431 = sand.u32 %s313, 1
        %s432 = scalar_lea.vmem [#allocation2], %s431
        %p433 = scmp.lt.s32.totalorder %s27, 1
        %s434 = scalar_select %p433, %s27, 1
        %s435 = smul.addr %s434, 12
        %s436 = smul.addr %s435, 8
        %s437 = scalar_lea.vmem %s0, %s436
        %v439 = vld [vmem:[%s437] sm:$0xff]
        %v440 = vld [vmem:[%s437 + $0x8] sm:$0xff]
        %v441 = vld [vmem:[%s437 + $0x10] sm:$0xff]
        %v442 = vld [vmem:[%s437 + $0x18] sm:$0xf]
        %v443 = vpack.c.bf16 %v440, %v439
        %v444 = vpack.c.bf16 %v442, %v441
        %v445 = vld [vmem:[%s1] sm:$0xf]
        %v446 = vld [vmem:[%s1 + $0x4] sm:$0xf]
        %v447 = vld [vmem:[%s1 + $0x8] sm:$0xf]
        %v448 = vld [vmem:[%s1 + $0xc] sm:$0xf]
        %v449 = vld [vmem:[%s437 + $0x20] sm:$0xff]
        %v450 = vld [vmem:[%s437 + $0x28] sm:$0xff]
        %v451 = vld [vmem:[%s437 + $0x30] sm:$0xff]
        %v452 = vld [vmem:[%s437 + $0x38] sm:$0xf]
        %v453 = vpack.c.bf16 %v450, %v449
        %v454 = vpack.c.bf16 %v452, %v451
        %s455 = scalar_lea.vmem %s1, 16
        %v456 = vld [vmem:[%s455] sm:$0xf]
        %v457 = vld [vmem:[%s455 + $0x4] sm:$0xf]
        %v458 = vld [vmem:[%s455 + $0x8] sm:$0xf]
        %v459 = vld [vmem:[%s455 + $0xc] sm:$0xf]
        %v464 = vunpack.c.l.b16 %v456
        %v465 = vunpack.c.l.b16 %v457
        %v466 = vunpack.c.l.b16 %v458
        %v467 = vunpack.c.l.b16 %v459
        %v468 = vpack.c.b16 %v465, %v464
        %v469 = vpack.c.b16 %v467, %v466
        %vm472 = vcmask 261120
        %v474 = vsel %vm472, %v453, 0
        %v477 = vsel %vm472, %v454, 0
        %479 = vmatprep.subr.bf16.mxu0 0
        %480 = vmatpush1.bf16.msra.mxu0 %v468
        %481 = vmatprep.subr.bf16.mxu0 0
        %482 = vmatpush1.bf16.msra.mxu0 %v469
        %483 = vmatprep.subr.bf16.mxu0 0
        %484 = vmatpush1.bf16.msra.mxu0 0
        %485 = vmatprep.subr.bf16.mxu0 0
        %486 = vmatpush1.bf16.msra.mxu0 0
        %487 = vmatprep.subr.bf16.mxu0 0
        %488 = vmatpush1.bf16.msra.mxu0 0
        %489 = vmatprep.subr.bf16.mxu0 0
        %490 = vmatpush1.bf16.msra.mxu0 0
        %491 = vmatprep.subr.bf16.mxu0 0
        %492 = vmatpush1.bf16.msra.mxu0 0
        %493 = vmatprep.subr.bf16.mxu0 0
        %494 = vmatpush1.bf16.msra.mxu0 0
        %495 = vmatprep.subr.bf16.mxu0 0
        %496 = vmatpush1.bf16.msra.mxu0 0
        %497 = vmatprep.subr.bf16.mxu0 0
        %498 = vmatpush1.bf16.msra.mxu0 0
        %499 = vmatprep.subr.bf16.mxu0 0
        %500 = vmatpush1.bf16.msra.mxu0 0
        %501 = vmatprep.subr.bf16.mxu0 0
        %502 = vmatpush1.bf16.msra.mxu0 0
        %503 = vmatprep.subr.bf16.mxu0 0
        %504 = vmatpush1.bf16.msra.mxu0 0
        %505 = vmatprep.subr.bf16.mxu0 0
        %506 = vmatpush1.bf16.msra.mxu0 0
        %507 = vmatprep.subr.bf16.mxu0 0
        %508 = vmatpush1.bf16.msra.mxu0 0
        %509 = vmatprep.subr.bf16.mxu0 0
        %510 = vmatpush1.bf16.msra.mxu0 0
        %511 = vmatprep.mubr.bf16.mxu0 0
        %512 = vmatmul.mubr.bf16.gmra.mrb[0].mxu0 %v474
        %v513 = vpop.f32.mrb[0].mxu0
        %v514 = vadd.f32 0.0, %v513
        %v515 = vpop.f32.mrb[0].mxu0
        %v516 = vpop.f32.mrb[0].mxu0
        %v517 = vadd.f32 0.0, %v516
        %v518 = vpop.f32.mrb[0].mxu0
        %519 = vmatprep.mubr.bf16.mxu0 0
        %520 = vmatmul.mubr.bf16.gmra.mrb[0].mxu0 %v477
        %v521 = vpop.f32.mrb[0].mxu0
        %v522 = vadd.f32 0.0, %v521
        %v523 = vpop.f32.mrb[0].mxu0
        %v524 = vpop.f32.mrb[0].mxu0
        %v525 = vadd.f32 0.0, %v524
        %v526 = vpop.f32.mrb[0].mxu0
        %527 = vdwg.mxu0
        %v532 = vunpack.c.l.b16 %v445
        %v533 = vunpack.c.l.b16 %v446
        %v534 = vunpack.c.l.b16 %v447
        %v535 = vunpack.c.l.b16 %v448
        %v536 = vpack.c.b16 %v533, %v532
        %v537 = vpack.c.b16 %v535, %v534
        %v541 = vsel %vm472, %v443, 0
        %v544 = vsel %vm472, %v444, 0
        %546 = vmatprep.subr.bf16.mxu0 0
        %547 = vmatpush1.bf16.msra.mxu0 %v536
        %548 = vmatprep.subr.bf16.mxu0 0
        %549 = vmatpush1.bf16.msra.mxu0 %v537
        %550 = vmatprep.subr.bf16.mxu0 0
        %551 = vmatpush1.bf16.msra.mxu0 0
        %552 = vmatprep.subr.bf16.mxu0 0
        %553 = vmatpush1.bf16.msra.mxu0 0
        %554 = vmatprep.subr.bf16.mxu0 0
        %555 = vmatpush1.bf16.msra.mxu0 0
        %556 = vmatprep.subr.bf16.mxu0 0
        %557 = vmatpush1.bf16.msra.mxu0 0
        %558 = vmatprep.subr.bf16.mxu0 0
        %559 = vmatpush1.bf16.msra.mxu0 0
        %560 = vmatprep.subr.bf16.mxu0 0
        %561 = vmatpush1.bf16.msra.mxu0 0
        %562 = vmatprep.subr.bf16.mxu0 0
        %563 = vmatpush1.bf16.msra.mxu0 0
        %564 = vmatprep.subr.bf16.mxu0 0
        %565 = vmatpush1.bf16.msra.mxu0 0
        %566 = vmatprep.subr.bf16.mxu0 0
        %567 = vmatpush1.bf16.msra.mxu0 0
        %568 = vmatprep.subr.bf16.mxu0 0
        %569 = vmatpush1.bf16.msra.mxu0 0
        %570 = vmatprep.subr.bf16.mxu0 0
        %571 = vmatpush1.bf16.msra.mxu0 0
        %572 = vmatprep.subr.bf16.mxu0 0
        %573 = vmatpush1.bf16.msra.mxu0 0
        %574 = vmatprep.subr.bf16.mxu0 0
        %575 = vmatpush1.bf16.msra.mxu0 0
        %576 = vmatprep.subr.bf16.mxu0 0
        %577 = vmatpush1.bf16.msra.mxu0 0
        %578 = vmatprep.mubr.bf16.mxu0 0
        %579 = vmatmul.mubr.bf16.gmra.mrb[0].mxu0 %v541
        %v580 = vpop.f32.mrb[0].mxu0
        %v581 = vadd.f32 %v514, %v580
        %v582 = vpop.f32.mrb[0].mxu0
        %v583 = vpop.f32.mrb[0].mxu0
        %v584 = vadd.f32 %v517, %v583
        %v585 = vpop.f32.mrb[0].mxu0
        %586 = vmatprep.mubr.bf16.mxu0 0
        %587 = vmatmul.mubr.bf16.gmra.mrb[0].mxu0 %v544
        %v588 = vpop.f32.mrb[0].mxu0
        %v589 = vadd.f32 %v522, %v588
        %v590 = vpop.f32.mrb[0].mxu0
        %v591 = vpop.f32.mrb[0].mxu0
        %v592 = vadd.f32 %v525, %v591
        %v593 = vpop.f32.mrb[0].mxu0
        %594 = vdwg.mxu0
        %v595 = vld [vmem:[%s437 + $0x40] sm:$0xff]
        %v596 = vld [vmem:[%s437 + $0x48] sm:$0xff]
        %v597 = vld [vmem:[%s437 + $0x50] sm:$0xff]
        %v598 = vld [vmem:[%s437 + $0x58] sm:$0xf]
        %v599 = vpack.c.bf16 %v596, %v595
        %v600 = vpack.c.bf16 %v598, %v597
        %s601 = scalar_lea.vmem %s1, 32
        %v602 = vld [vmem:[%s601] sm:$0xf]
        %v603 = vld [vmem:[%s601 + $0x4] sm:$0xf]
        %v604 = vld [vmem:[%s601 + $0x8] sm:$0xf]
        %v605 = vld [vmem:[%s601 + $0xc] sm:$0xf]
        %v610 = vunpack.c.l.b16 %v602
        %v611 = vunpack.c.l.b16 %v603
        %v612 = vunpack.c.l.b16 %v604
        %v613 = vunpack.c.l.b16 %v605
        %v614 = vpack.c.b16 %v611, %v610
        %v615 = vpack.c.b16 %v613, %v612
        %v619 = vsel %vm472, %v599, 0
        %v622 = vsel %vm472, %v600, 0
        %624 = vmatprep.subr.bf16.mxu0 0
        %625 = vmatpush1.bf16.msra.mxu0 %v614
        %626 = vmatprep.subr.bf16.mxu0 0
        %627 = vmatpush1.bf16.msra.mxu0 %v615
        %628 = vmatprep.subr.bf16.mxu0 0
        %629 = vmatpush1.bf16.msra.mxu0 0
        %630 = vmatprep.subr.bf16.mxu0 0
        %631 = vmatpush1.bf16.msra.mxu0 0
        %632 = vmatprep.subr.bf16.mxu0 0
        %633 = vmatpush1.bf16.msra.mxu0 0
        %634 = vmatprep.subr.bf16.mxu0 0
        %635 = vmatpush1.bf16.msra.mxu0 0
        %636 = vmatprep.subr.bf16.mxu0 0
        %637 = vmatpush1.bf16.msra.mxu0 0
        %638 = vmatprep.subr.bf16.mxu0 0
        %639 = vmatpush1.bf16.msra.mxu0 0
        %640 = vmatprep.subr.bf16.mxu0 0
        %641 = vmatpush1.bf16.msra.mxu0 0
        %642 = vmatprep.subr.bf16.mxu0 0
        %643 = vmatpush1.bf16.msra.mxu0 0
        %644 = vmatprep.subr.bf16.mxu0 0
        %645 = vmatpush1.bf16.msra.mxu0 0
        %646 = vmatprep.subr.bf16.mxu0 0
        %647 = vmatpush1.bf16.msra.mxu0 0
        %648 = vmatprep.subr.bf16.mxu0 0
        %649 = vmatpush1.bf16.msra.mxu0 0
        %650 = vmatprep.subr.bf16.mxu0 0
        %651 = vmatpush1.bf16.msra.mxu0 0
        %652 = vmatprep.subr.bf16.mxu0 0
        %653 = vmatpush1.bf16.msra.mxu0 0
        %654 = vmatprep.subr.bf16.mxu0 0
        %655 = vmatpush1.bf16.msra.mxu0 0
        %656 = vmatprep.mubr.bf16.mxu0 0
        %657 = vmatmul.mubr.bf16.gmra.mrb[0].mxu0 %v619
        %v658 = vpop.f32.mrb[0].mxu0
        %v659 = vadd.f32 0.0, %v658
        %v660 = vpop.f32.mrb[0].mxu0
        %v661 = vpop.f32.mrb[0].mxu0
        %v662 = vadd.f32 0.0, %v661
        %v663 = vpop.f32.mrb[0].mxu0
        %664 = vmatprep.mubr.bf16.mxu0 0
        %665 = vmatmul.mubr.bf16.gmra.mrb[0].mxu0 %v622
        %v666 = vpop.f32.mrb[0].mxu0
        %v667 = vadd.f32 0.0, %v666
        %v668 = vpop.f32.mrb[0].mxu0
        %v669 = vpop.f32.mrb[0].mxu0
        %v670 = vadd.f32 0.0, %v669
        %v671 = vpop.f32.mrb[0].mxu0
        %672 = vdwg.mxu0
        %v673 = vadd.f32 %v581, %v659
        %v674 = vadd.f32 %v584, %v662
        %v675 = vadd.f32 %v589, %v667
        %v676 = vadd.f32 %v592, %v670
        %v677 = vld [vmem:[%s437 + $0x1] sm:$0xff]
        %v678 = vld [vmem:[%s437 + $0x9] sm:$0xff]
        %v679 = vld [vmem:[%s437 + $0x11] sm:$0xff]
        %v680 = vld [vmem:[%s437 + $0x19] sm:$0xf]
        %v681 = vpack.c.bf16 %v678, %v677
        %v682 = vpack.c.bf16 %v680, %v679
        %s683 = scalar_lea.vmem %s1, 48
        %v684 = vld [vmem:[%s683] sm:$0xf]
        %v685 = vld [vmem:[%s683 + $0x4] sm:$0xf]
        %v686 = vld [vmem:[%s683 + $0x8] sm:$0xf]
        %v687 = vld [vmem:[%s683 + $0xc] sm:$0xf]
        %v692 = vunpack.c.l.b16 %v684
        %v693 = vunpack.c.l.b16 %v685
        %v694 = vunpack.c.l.b16 %v686
        %v695 = vunpack.c.l.b16 %v687
        %v696 = vpack.c.b16 %v693, %v692
        %v697 = vpack.c.b16 %v695, %v694
        %v701 = vsel %vm472, %v681, 0
        %v704 = vsel %vm472, %v682, 0
        %706 = vmatprep.subr.bf16.mxu0 0
        %707 = vmatpush1.bf16.msra.mxu0 %v696
        %708 = vmatprep.subr.bf16.mxu0 0
        %709 = vmatpush1.bf16.msra.mxu0 %v697
        %710 = vmatprep.subr.bf16.mxu0 0
        %711 = vmatpush1.bf16.msra.mxu0 0
        %712 = vmatprep.subr.bf16.mxu0 0
        %713 = vmatpush1.bf16.msra.mxu0 0
        %714 = vmatprep.subr.bf16.mxu0 0
        %715 = vmatpush1.bf16.msra.mxu0 0
        %716 = vmatprep.subr.bf16.mxu0 0
        %717 = vmatpush1.bf16.msra.mxu0 0
        %718 = vmatprep.subr.bf16.mxu0 0
        %719 = vmatpush1.bf16.msra.mxu0 0
        %720 = vmatprep.subr.bf16.mxu0 0
        %721 = vmatpush1.bf16.msra.mxu0 0
        %722 = vmatprep.subr.bf16.mxu0 0
        %723 = vmatpush1.bf16.msra.mxu0 0
        %724 = vmatprep.subr.bf16.mxu0 0
        %725 = vmatpush1.bf16.msra.mxu0 0
        %726 = vmatprep.subr.bf16.mxu0 0
        %727 = vmatpush1.bf16.msra.mxu0 0
        %728 = vmatprep.subr.bf16.mxu0 0
        %729 = vmatpush1.bf16.msra.mxu0 0
        %730 = vmatprep.subr.bf16.mxu0 0
        %731 = vmatpush1.bf16.msra.mxu0 0
        %732 = vmatprep.subr.bf16.mxu0 0
        %733 = vmatpush1.bf16.msra.mxu0 0
        %734 = vmatprep.subr.bf16.mxu0 0
        %735 = vmatpush1.bf16.msra.mxu0 0
        %736 = vmatprep.subr.bf16.mxu0 0
        %737 = vmatpush1.bf16.msra.mxu0 0
        %738 = vmatprep.mubr.bf16.mxu0 0
        %739 = vmatmul.mubr.bf16.gmra.mrb[0].mxu0 %v701
        %v740 = vpop.f32.mrb[0].mxu0
        %v741 = vadd.f32 0.0, %v740
        %v742 = vpop.f32.mrb[0].mxu0
        %v743 = vpop.f32.mrb[0].mxu0
        %v744 = vadd.f32 0.0, %v743
        %v745 = vpop.f32.mrb[0].mxu0
        %746 = vmatprep.mubr.bf16.mxu0 0
        %747 = vmatmul.mubr.bf16.gmra.mrb[0].mxu0 %v704
        %v748 = vpop.f32.mrb[0].mxu0
        %v749 = vadd.f32 0.0, %v748
        %v750 = vpop.f32.mrb[0].mxu0
        %v751 = vpop.f32.mrb[0].mxu0
        %v752 = vadd.f32 0.0, %v751
        %v753 = vpop.f32.mrb[0].mxu0
        %754 = vdwg.mxu0
        %v755 = vadd.f32 %v673, %v741
        %v756 = vadd.f32 %v674, %v744
        %v757 = vadd.f32 %v675, %v749
        %v758 = vadd.f32 %v676, %v752
        %v759 = vld [vmem:[%s437 + $0x21] sm:$0xff]
        %v760 = vld [vmem:[%s437 + $0x29] sm:$0xff]
        %v761 = vld [vmem:[%s437 + $0x31] sm:$0xff]
        %v762 = vld [vmem:[%s437 + $0x39] sm:$0xf]
        %v763 = vpack.c.bf16 %v760, %v759
        %v764 = vpack.c.bf16 %v762, %v761
        %s765 = scalar_lea.vmem %s1, 64
        %v766 = vld [vmem:[%s765] sm:$0xf]
        %v767 = vld [vmem:[%s765 + $0x4] sm:$0xf]
        %v768 = vld [vmem:[%s765 + $0x8] sm:$0xf]
        %v769 = vld [vmem:[%s765 + $0xc] sm:$0xf]
        %v774 = vunpack.c.l.b16 %v766
        %v775 = vunpack.c.l.b16 %v767
        %v776 = vunpack.c.l.b16 %v768
        %v777 = vunpack.c.l.b16 %v769
        %v778 = vpack.c.b16 %v775, %v774
        %v779 = vpack.c.b16 %v777, %v776
        %v783 = vsel %vm472, %v763, 0
        %v786 = vsel %vm472, %v764, 0
        %788 = vmatprep.subr.bf16.mxu0 0
        %789 = vmatpush1.bf16.msra.mxu0 %v778
        %790 = vmatprep.subr.bf16.mxu0 0
        %791 = vmatpush1.bf16.msra.mxu0 %v779
        %792 = vmatprep.subr.bf16.mxu0 0
        %793 = vmatpush1.bf16.msra.mxu0 0
        %794 = vmatprep.subr.bf16.mxu0 0
        %795 = vmatpush1.bf16.msra.mxu0 0
        %796 = vmatprep.subr.bf16.mxu0 0
        %797 = vmatpush1.bf16.msra.mxu0 0
        %798 = vmatprep.subr.bf16.mxu0 0
        %799 = vmatpush1.bf16.msra.mxu0 0
        %800 = vmatprep.subr.bf16.mxu0 0
        %801 = vmatpush1.bf16.msra.mxu0 0
        %802 = vmatprep.subr.bf16.mxu0 0
        %803 = vmatpush1.bf16.msra.mxu0 0
        %804 = vmatprep.subr.bf16.mxu0 0
        %805 = vmatpush1.bf16.msra.mxu0 0
        %806 = vmatprep.subr.bf16.mxu0 0
        %807 = vmatpush1.bf16.msra.mxu0 0
        %808 = vmatprep.subr.bf16.mxu0 0
        %809 = vmatpush1.bf16.msra.mxu0 0
        %810 = vmatprep.subr.bf16.mxu0 0
        %811 = vmatpush1.bf16.msra.mxu0 0
        %812 = vmatprep.subr.bf16.mxu0 0
        %813 = vmatpush1.bf16.msra.mxu0 0
        %814 = vmatprep.subr.bf16.mxu0 0
        %815 = vmatpush1.bf16.msra.mxu0 0
        %816 = vmatprep.subr.bf16.mxu0 0
        %817 = vmatpush1.bf16.msra.mxu0 0
        %818 = vmatprep.subr.bf16.mxu0 0
        %819 = vmatpush1.bf16.msra.mxu0 0
        %820 = vmatprep.mubr.bf16.mxu0 0
        %821 = vmatmul.mubr.bf16.gmra.mrb[0].mxu0 %v783
        %v822 = vpop.f32.mrb[0].mxu0
        %v823 = vadd.f32 0.0, %v822
        %v824 = vpop.f32.mrb[0].mxu0
        %v825 = vpop.f32.mrb[0].mxu0
        %v826 = vadd.f32 0.0, %v825
        %v827 = vpop.f32.mrb[0].mxu0
        %828 = vmatprep.mubr.bf16.mxu0 0
        %829 = vmatmul.mubr.bf16.gmra.mrb[0].mxu0 %v786
        %v830 = vpop.f32.mrb[0].mxu0
        %v831 = vadd.f32 0.0, %v830
        %v832 = vpop.f32.mrb[0].mxu0
        %v833 = vpop.f32.mrb[0].mxu0
        %v834 = vadd.f32 0.0, %v833
        %v835 = vpop.f32.mrb[0].mxu0
        %836 = vdwg.mxu0
        %v837 = vadd.f32 %v755, %v823
        %v838 = vadd.f32 %v756, %v826
        %v839 = vadd.f32 %v757, %v831
        %v840 = vadd.f32 %v758, %v834
        %v841 = vld [vmem:[%s437 + $0x41] sm:$0xff]
        %v842 = vld [vmem:[%s437 + $0x49] sm:$0xff]
        %v843 = vld [vmem:[%s437 + $0x51] sm:$0xff]
        %v844 = vld [vmem:[%s437 + $0x59] sm:$0xf]
        %v845 = vpack.c.bf16 %v842, %v841
        %v846 = vpack.c.bf16 %v844, %v843
        %s847 = scalar_lea.vmem %s1, 80
        %v848 = vld [vmem:[%s847] sm:$0xf]
        %v849 = vld [vmem:[%s847 + $0x4] sm:$0xf]
        %v850 = vld [vmem:[%s847 + $0x8] sm:$0xf]
        %v851 = vld [vmem:[%s847 + $0xc] sm:$0xf]
        %v856 = vunpack.c.l.b16 %v848
        %v857 = vunpack.c.l.b16 %v849
        %v858 = vunpack.c.l.b16 %v850
        %v859 = vunpack.c.l.b16 %v851
        %v860 = vpack.c.b16 %v857, %v856
        %v861 = vpack.c.b16 %v859, %v858
        %v865 = vsel %vm472, %v845, 0
        %v868 = vsel %vm472, %v846, 0
        %870 = vmatprep.subr.bf16.mxu0 0
        %871 = vmatpush1.bf16.msra.mxu0 %v860
        %872 = vmatprep.subr.bf16.mxu0 0
        %873 = vmatpush1.bf16.msra.mxu0 %v861
        %874 = vmatprep.subr.bf16.mxu0 0
        %875 = vmatpush1.bf16.msra.mxu0 0
        %876 = vmatprep.subr.bf16.mxu0 0
        %877 = vmatpush1.bf16.msra.mxu0 0
        %878 = vmatprep.subr.bf16.mxu0 0
        %879 = vmatpush1.bf16.msra.mxu0 0
        %880 = vmatprep.subr.bf16.mxu0 0
        %881 = vmatpush1.bf16.msra.mxu0 0
        %882 = vmatprep.subr.bf16.mxu0 0
        %883 = vmatpush1.bf16.msra.mxu0 0
        %884 = vmatprep.subr.bf16.mxu0 0
        %885 = vmatpush1.bf16.msra.mxu0 0
        %886 = vmatprep.subr.bf16.mxu0 0
        %887 = vmatpush1.bf16.msra.mxu0 0
        %888 = vmatprep.subr.bf16.mxu0 0
        %889 = vmatpush1.bf16.msra.mxu0 0
        %890 = vmatprep.subr.bf16.mxu0 0
        %891 = vmatpush1.bf16.msra.mxu0 0
        %892 = vmatprep.subr.bf16.mxu0 0
        %893 = vmatpush1.bf16.msra.mxu0 0
        %894 = vmatprep.subr.bf16.mxu0 0
        %895 = vmatpush1.bf16.msra.mxu0 0
        %896 = vmatprep.subr.bf16.mxu0 0
        %897 = vmatpush1.bf16.msra.mxu0 0
        %898 = vmatprep.subr.bf16.mxu0 0
        %899 = vmatpush1.bf16.msra.mxu0 0
        %900 = vmatprep.subr.bf16.mxu0 0
        %901 = vmatpush1.bf16.msra.mxu0 0
        %902 = vmatprep.mubr.bf16.mxu0 0
        %903 = vmatmul.mubr.bf16.gmra.mrb[0].mxu0 %v865
        %v904 = vpop.f32.mrb[0].mxu0
        %v905 = vadd.f32 0.0, %v904
        %v906 = vpop.f32.mrb[0].mxu0
        %v907 = vpop.f32.mrb[0].mxu0
        %v908 = vadd.f32 0.0, %v907
        %v909 = vpop.f32.mrb[0].mxu0
        %910 = vmatprep.mubr.bf16.mxu0 0
        %911 = vmatmul.mubr.bf16.gmra.mrb[0].mxu0 %v868
        %v912 = vpop.f32.mrb[0].mxu0
        %v913 = vadd.f32 0.0, %v912
        %v914 = vpop.f32.mrb[0].mxu0
        %v915 = vpop.f32.mrb[0].mxu0
        %v916 = vadd.f32 0.0, %v915
        %v917 = vpop.f32.mrb[0].mxu0
        %918 = vdwg.mxu0
        %v919 = vadd.f32 %v837, %v905
        %v920 = vadd.f32 %v838, %v908
        %v921 = vadd.f32 %v839, %v913
        %v922 = vadd.f32 %v840, %v916
        %v923 = vld [vmem:[%s437 + $0x2] sm:$0xff]
        %v924 = vld [vmem:[%s437 + $0xa] sm:$0xff]
        %v925 = vld [vmem:[%s437 + $0x12] sm:$0xff]
        %v926 = vld [vmem:[%s437 + $0x1a] sm:$0xf]
        %v927 = vpack.c.bf16 %v924, %v923
        %v928 = vpack.c.bf16 %v926, %v925
        %s929 = scalar_lea.vmem %s1, 96
        %v930 = vld [vmem:[%s929] sm:$0xf]
        %v931 = vld [vmem:[%s929 + $0x4] sm:$0xf]
        %v932 = vld [vmem:[%s929 + $0x8] sm:$0xf]
        %v933 = vld [vmem:[%s929 + $0xc] sm:$0xf]
        %v938 = vunpack.c.l.b16 %v930
        %v939 = vunpack.c.l.b16 %v931
        %v940 = vunpack.c.l.b16 %v932
        %v941 = vunpack.c.l.b16 %v933
        %v942 = vpack.c.b16 %v939, %v938
        %v943 = vpack.c.b16 %v941, %v940
        %v947 = vsel %vm472, %v927, 0
        %v950 = vsel %vm472, %v928, 0
        %952 = vmatprep.subr.bf16.mxu0 0
        %953 = vmatpush1.bf16.msra.mxu0 %v942
        %954 = vmatprep.subr.bf16.mxu0 0
        %955 = vmatpush1.bf16.msra.mxu0 %v943
        %956 = vmatprep.subr.bf16.mxu0 0
        %957 = vmatpush1.bf16.msra.mxu0 0
        %958 = vmatprep.subr.bf16.mxu0 0
        %959 = vmatpush1.bf16.msra.mxu0 0
        %960 = vmatprep.subr.bf16.mxu0 0
        %961 = vmatpush1.bf16.msra.mxu0 0
        %962 = vmatprep.subr.bf16.mxu0 0
        %963 = vmatpush1.bf16.msra.mxu0 0
        %964 = vmatprep.subr.bf16.mxu0 0
        %965 = vmatpush1.bf16.msra.mxu0 0
        %966 = vmatprep.subr.bf16.mxu0 0
        %967 = vmatpush1.bf16.msra.mxu0 0
        %968 = vmatprep.subr.bf16.mxu0 0
        %969 = vmatpush1.bf16.msra.mxu0 0
        %970 = vmatprep.subr.bf16.mxu0 0
        %971 = vmatpush1.bf16.msra.mxu0 0
        %972 = vmatprep.subr.bf16.mxu0 0
        %973 = vmatpush1.bf16.msra.mxu0 0
        %974 = vmatprep.subr.bf16.mxu0 0
        %975 = vmatpush1.bf16.msra.mxu0 0
        %976 = vmatprep.subr.bf16.mxu0 0
        %977 = vmatpush1.bf16.msra.mxu0 0
        %978 = vmatprep.subr.bf16.mxu0 0
        %979 = vmatpush1.bf16.msra.mxu0 0
        %980 = vmatprep.subr.bf16.mxu0 0
        %981 = vmatpush1.bf16.msra.mxu0 0
        %982 = vmatprep.subr.bf16.mxu0 0
        %983 = vmatpush1.bf16.msra.mxu0 0
        %984 = vmatprep.mubr.bf16.mxu0 0
        %985 = vmatmul.mubr.bf16.gmra.mrb[0].mxu0 %v947
        %v986 = vpop.f32.mrb[0].mxu0
        %v987 = vadd.f32 0.0, %v986
        %v988 = vpop.f32.mrb[0].mxu0
        %v989 = vpop.f32.mrb[0].mxu0
        %v990 = vadd.f32 0.0, %v989
        %v991 = vpop.f32.mrb[0].mxu0
        %992 = vmatprep.mubr.bf16.mxu0 0
        %993 = vmatmul.mubr.bf16.gmra.mrb[0].mxu0 %v950
        %v994 = vpop.f32.mrb[0].mxu0
        %v995 = vadd.f32 0.0, %v994
        %v996 = vpop.f32.mrb[0].mxu0
        %v997 = vpop.f32.mrb[0].mxu0
        %v998 = vadd.f32 0.0, %v997
        %v999 = vpop.f32.mrb[0].mxu0
        %1000 = vdwg.mxu0
        %v1001 = vadd.f32 %v919, %v987
        %v1002 = vadd.f32 %v920, %v990
        %v1003 = vadd.f32 %v921, %v995
        %v1004 = vadd.f32 %v922, %v998
        %v1005 = vld [vmem:[%s437 + $0x22] sm:$0xff]
        %v1006 = vld [vmem:[%s437 + $0x2a] sm:$0xff]
        %v1007 = vld [vmem:[%s437 + $0x32] sm:$0xff]
        %v1008 = vld [vmem:[%s437 + $0x3a] sm:$0xf]
        %v1009 = vpack.c.bf16 %v1006, %v1005
        %v1010 = vpack.c.bf16 %v1008, %v1007
        %s1011 = scalar_lea.vmem %s1, 112
        %v1012 = vld [vmem:[%s1011] sm:$0xf]
        %v1013 = vld [vmem:[%s1011 + $0x4] sm:$0xf]
        %v1014 = vld [vmem:[%s1011 + $0x8] sm:$0xf]
        %v1015 = vld [vmem:[%s1011 + $0xc] sm:$0xf]
        %v1020 = vunpack.c.l.b16 %v1012
        %v1021 = vunpack.c.l.b16 %v1013
        %v1022 = vunpack.c.l.b16 %v1014
        %v1023 = vunpack.c.l.b16 %v1015
        %v1024 = vpack.c.b16 %v1021, %v1020
        %v1025 = vpack.c.b16 %v1023, %v1022
        %v1029 = vsel %vm472, %v1009, 0
        %v1032 = vsel %vm472, %v1010, 0
        %1034 = vmatprep.subr.bf16.mxu0 0
        %1035 = vmatpush1.bf16.msra.mxu0 %v1024
        %1036 = vmatprep.subr.bf16.mxu0 0
        %1037 = vmatpush1.bf16.msra.mxu0 %v1025
        %1038 = vmatprep.subr.bf16.mxu0 0
        %1039 = vmatpush1.bf16.msra.mxu0 0
        %1040 = vmatprep.subr.bf16.mxu0 0
        %1041 = vmatpush1.bf16.msra.mxu0 0
        %1042 = vmatprep.subr.bf16.mxu0 0
        %1043 = vmatpush1.bf16.msra.mxu0 0
        %1044 = vmatprep.subr.bf16.mxu0 0
        %1045 = vmatpush1.bf16.msra.mxu0 0
        %1046 = vmatprep.subr.bf16.mxu0 0
        %1047 = vmatpush1.bf16.msra.mxu0 0
        %1048 = vmatprep.subr.bf16.mxu0 0
        %1049 = vmatpush1.bf16.msra.mxu0 0
        %1050 = vmatprep.subr.bf16.mxu0 0
        %1051 = vmatpush1.bf16.msra.mxu0 0
        %1052 = vmatprep.subr.bf16.mxu0 0
        %1053 = vmatpush1.bf16.msra.mxu0 0
        %1054 = vmatprep.subr.bf16.mxu0 0
        %1055 = vmatpush1.bf16.msra.mxu0 0
        %1056 = vmatprep.subr.bf16.mxu0 0
        %1057 = vmatpush1.bf16.msra.mxu0 0
        %1058 = vmatprep.subr.bf16.mxu0 0
        %1059 = vmatpush1.bf16.msra.mxu0 0
        %1060 = vmatprep.subr.bf16.mxu0 0
        %1061 = vmatpush1.bf16.msra.mxu0 0
        %1062 = vmatprep.subr.bf16.mxu0 0
        %1063 = vmatpush1.bf16.msra.mxu0 0
        %1064 = vmatprep.subr.bf16.mxu0 0
        %1065 = vmatpush1.bf16.msra.mxu0 0
        %1066 = vmatprep.mubr.bf16.mxu0 0
        %1067 = vmatmul.mubr.bf16.gmra.mrb[0].mxu0 %v1029
        %v1068 = vpop.f32.mrb[0].mxu0
        %v1069 = vadd.f32 0.0, %v1068
        %v1070 = vpop.f32.mrb[0].mxu0
        %v1071 = vpop.f32.mrb[0].mxu0
        %v1072 = vadd.f32 0.0, %v1071
        %v1073 = vpop.f32.mrb[0].mxu0
        %1074 = vmatprep.mubr.bf16.mxu0 0
        %1075 = vmatmul.mubr.bf16.gmra.mrb[0].mxu0 %v1032
        %v1076 = vpop.f32.mrb[0].mxu0
        %v1077 = vadd.f32 0.0, %v1076
        %v1078 = vpop.f32.mrb[0].mxu0
        %v1079 = vpop.f32.mrb[0].mxu0
        %v1080 = vadd.f32 0.0, %v1079
        %v1081 = vpop.f32.mrb[0].mxu0
        %1082 = vdwg.mxu0
        %v1083 = vadd.f32 %v1001, %v1069
        %v1084 = vadd.f32 %v1002, %v1072
        %v1085 = vadd.f32 %v1003, %v1077
        %v1086 = vadd.f32 %v1004, %v1080
        %v1087 = vld [vmem:[%s437 + $0x42] sm:$0xff]
        %v1088 = vld [vmem:[%s437 + $0x4a] sm:$0xff]
        %v1089 = vld [vmem:[%s437 + $0x52] sm:$0xff]
        %v1090 = vld [vmem:[%s437 + $0x5a] sm:$0xf]
        %v1091 = vpack.c.bf16 %v1088, %v1087
        %v1092 = vpack.c.bf16 %v1090, %v1089
        %s1093 = scalar_lea.vmem %s1, 128
        %v1094 = vld [vmem:[%s1093] sm:$0xf]
        %v1095 = vld [vmem:[%s1093 + $0x4] sm:$0xf]
        %v1096 = vld [vmem:[%s1093 + $0x8] sm:$0xf]
        %v1097 = vld [vmem:[%s1093 + $0xc] sm:$0xf]
        %v1102 = vunpack.c.l.b16 %v1094
        %v1103 = vunpack.c.l.b16 %v1095
        %v1104 = vunpack.c.l.b16 %v1096
        %v1105 = vunpack.c.l.b16 %v1097
        %v1106 = vpack.c.b16 %v1103, %v1102
        %v1107 = vpack.c.b16 %v1105, %v1104
        %v1111 = vsel %vm472, %v1091, 0
        %v1114 = vsel %vm472, %v1092, 0
        %1116 = vmatprep.subr.bf16.mxu0 0
        %1117 = vmatpush1.bf16.msra.mxu0 %v1106
        %1118 = vmatprep.subr.bf16.mxu0 0
        %1119 = vmatpush1.bf16.msra.mxu0 %v1107
        %1120 = vmatprep.subr.bf16.mxu0 0
        %1121 = vmatpush1.bf16.msra.mxu0 0
        %1122 = vmatprep.subr.bf16.mxu0 0
        %1123 = vmatpush1.bf16.msra.mxu0 0
        %1124 = vmatprep.subr.bf16.mxu0 0
        %1125 = vmatpush1.bf16.msra.mxu0 0
        %1126 = vmatprep.subr.bf16.mxu0 0
        %1127 = vmatpush1.bf16.msra.mxu0 0
        %1128 = vmatprep.subr.bf16.mxu0 0
        %1129 = vmatpush1.bf16.msra.mxu0 0
        %1130 = vmatprep.subr.bf16.mxu0 0
        %1131 = vmatpush1.bf16.msra.mxu0 0
        %1132 = vmatprep.subr.bf16.mxu0 0
        %1133 = vmatpush1.bf16.msra.mxu0 0
        %1134 = vmatprep.subr.bf16.mxu0 0
        %1135 = vmatpush1.bf16.msra.mxu0 0
        %1136 = vmatprep.subr.bf16.mxu0 0
        %1137 = vmatpush1.bf16.msra.mxu0 0
        %1138 = vmatprep.subr.bf16.mxu0 0
        %1139 = vmatpush1.bf16.msra.mxu0 0
        %1140 = vmatprep.subr.bf16.mxu0 0
        %1141 = vmatpush1.bf16.msra.mxu0 0
        %1142 = vmatprep.subr.bf16.mxu0 0
        %1143 = vmatpush1.bf16.msra.mxu0 0
        %1144 = vmatprep.subr.bf16.mxu0 0
        %1145 = vmatpush1.bf16.msra.mxu0 0
        %1146 = vmatprep.subr.bf16.mxu0 0
        %1147 = vmatpush1.bf16.msra.mxu0 0
        %1148 = vmatprep.mubr.bf16.mxu0 0
        %1149 = vmatmul.mubr.bf16.gmra.mrb[0].mxu0 %v1111
        %v1150 = vpop.f32.mrb[0].mxu0
        %v1151 = vadd.f32 0.0, %v1150
        %v1152 = vpop.f32.mrb[0].mxu0
        %v1153 = vpop.f32.mrb[0].mxu0
        %v1154 = vadd.f32 0.0, %v1153
        %v1155 = vpop.f32.mrb[0].mxu0
        %1156 = vmatprep.mubr.bf16.mxu0 0
        %1157 = vmatmul.mubr.bf16.gmra.mrb[0].mxu0 %v1114
        %v1158 = vpop.f32.mrb[0].mxu0
        %v1159 = vadd.f32 0.0, %v1158
        %v1160 = vpop.f32.mrb[0].mxu0
        %v1161 = vpop.f32.mrb[0].mxu0
        %v1162 = vadd.f32 0.0, %v1161
        %v1163 = vpop.f32.mrb[0].mxu0
        %1164 = vdwg.mxu0
        %v1165 = vadd.f32 %v1083, %v1151
        %v1166 = vadd.f32 %v1084, %v1154
        %v1167 = vadd.f32 %v1085, %v1159
        %v1168 = vadd.f32 %v1086, %v1162
        %v1169 = vld [vmem:[%s437 + $0x3] sm:$0xff]
        %v1170 = vld [vmem:[%s437 + $0xb] sm:$0xff]
        %v1171 = vld [vmem:[%s437 + $0x13] sm:$0xff]
        %v1172 = vld [vmem:[%s437 + $0x1b] sm:$0xf]
        %v1173 = vpack.c.bf16 %v1170, %v1169
        %v1174 = vpack.c.bf16 %v1172, %v1171
        %s1175 = scalar_lea.vmem %s1, 144
        %v1176 = vld [vmem:[%s1175] sm:$0xf]
        %v1177 = vld [vmem:[%s1175 + $0x4] sm:$0xf]
        %v1178 = vld [vmem:[%s1175 + $0x8] sm:$0xf]
        %v1179 = vld [vmem:[%s1175 + $0xc] sm:$0xf]
        %v1184 = vunpack.c.l.b16 %v1176
        %v1185 = vunpack.c.l.b16 %v1177
        %v1186 = vunpack.c.l.b16 %v1178
        %v1187 = vunpack.c.l.b16 %v1179
        %v1188 = vpack.c.b16 %v1185, %v1184
        %v1189 = vpack.c.b16 %v1187, %v1186
        %v1193 = vsel %vm472, %v1173, 0
        %v1196 = vsel %vm472, %v1174, 0
        %1198 = vmatprep.subr.bf16.mxu0 0
        %1199 = vmatpush1.bf16.msra.mxu0 %v1188
        %1200 = vmatprep.subr.bf16.mxu0 0
        %1201 = vmatpush1.bf16.msra.mxu0 %v1189
        %1202 = vmatprep.subr.bf16.mxu0 0
        %1203 = vmatpush1.bf16.msra.mxu0 0
        %1204 = vmatprep.subr.bf16.mxu0 0
        %1205 = vmatpush1.bf16.msra.mxu0 0
        %1206 = vmatprep.subr.bf16.mxu0 0
        %1207 = vmatpush1.bf16.msra.mxu0 0
        %1208 = vmatprep.subr.bf16.mxu0 0
        %1209 = vmatpush1.bf16.msra.mxu0 0
        %1210 = vmatprep.subr.bf16.mxu0 0
        %1211 = vmatpush1.bf16.msra.mxu0 0
        %1212 = vmatprep.subr.bf16.mxu0 0
        %1213 = vmatpush1.bf16.msra.mxu0 0
        %1214 = vmatprep.subr.bf16.mxu0 0
        %1215 = vmatpush1.bf16.msra.mxu0 0
        %1216 = vmatprep.subr.bf16.mxu0 0
        %1217 = vmatpush1.bf16.msra.mxu0 0
        %1218 = vmatprep.subr.bf16.mxu0 0
        %1219 = vmatpush1.bf16.msra.mxu0 0
        %1220 = vmatprep.subr.bf16.mxu0 0
        %1221 = vmatpush1.bf16.msra.mxu0 0
        %1222 = vmatprep.subr.bf16.mxu0 0
        %1223 = vmatpush1.bf16.msra.mxu0 0
        %1224 = vmatprep.subr.bf16.mxu0 0
        %1225 = vmatpush1.bf16.msra.mxu0 0
        %1226 = vmatprep.subr.bf16.mxu0 0
        %1227 = vmatpush1.bf16.msra.mxu0 0
        %1228 = vmatprep.subr.bf16.mxu0 0
        %1229 = vmatpush1.bf16.msra.mxu0 0
        %1230 = vmatprep.mubr.bf16.mxu0 0
        %1231 = vmatmul.mubr.bf16.gmra.mrb[0].mxu0 %v1193
        %v1232 = vpop.f32.mrb[0].mxu0
        %v1233 = vadd.f32 0.0, %v1232
        %v1234 = vpop.f32.mrb[0].mxu0
        %v1235 = vpop.f32.mrb[0].mxu0
        %v1236 = vadd.f32 0.0, %v1235
        %v1237 = vpop.f32.mrb[0].mxu0
        %1238 = vmatprep.mubr.bf16.mxu0 0
        %1239 = vmatmul.mubr.bf16.gmra.mrb[0].mxu0 %v1196
        %v1240 = vpop.f32.mrb[0].mxu0
        %v1241 = vadd.f32 0.0, %v1240
        %v1242 = vpop.f32.mrb[0].mxu0
        %v1243 = vpop.f32.mrb[0].mxu0
        %v1244 = vadd.f32 0.0, %v1243
        %v1245 = vpop.f32.mrb[0].mxu0
        %1246 = vdwg.mxu0
        %v1247 = vadd.f32 %v1165, %v1233
        %v1248 = vadd.f32 %v1166, %v1236
        %v1249 = vadd.f32 %v1167, %v1241
        %v1250 = vadd.f32 %v1168, %v1244
        %v1251 = vld [vmem:[%s437 + $0x23] sm:$0xff]
        %v1252 = vld [vmem:[%s437 + $0x2b] sm:$0xff]
        %v1253 = vld [vmem:[%s437 + $0x33] sm:$0xff]
        %v1254 = vld [vmem:[%s437 + $0x3b] sm:$0xf]
        %v1255 = vpack.c.bf16 %v1252, %v1251
        %v1256 = vpack.c.bf16 %v1254, %v1253
        %s1257 = scalar_lea.vmem %s1, 160
        %v1258 = vld [vmem:[%s1257] sm:$0xf]
        %v1259 = vld [vmem:[%s1257 + $0x4] sm:$0xf]
        %v1260 = vld [vmem:[%s1257 + $0x8] sm:$0xf]
        %v1261 = vld [vmem:[%s1257 + $0xc] sm:$0xf]
        %v1266 = vunpack.c.l.b16 %v1258
        %v1267 = vunpack.c.l.b16 %v1259
        %v1268 = vunpack.c.l.b16 %v1260
        %v1269 = vunpack.c.l.b16 %v1261
        %v1270 = vpack.c.b16 %v1267, %v1266
        %v1271 = vpack.c.b16 %v1269, %v1268
        %v1275 = vsel %vm472, %v1255, 0
        %v1278 = vsel %vm472, %v1256, 0
        %1280 = vmatprep.subr.bf16.mxu0 0
        %1281 = vmatpush1.bf16.msra.mxu0 %v1270
        %1282 = vmatprep.subr.bf16.mxu0 0
        %1283 = vmatpush1.bf16.msra.mxu0 %v1271
        %1284 = vmatprep.subr.bf16.mxu0 0
        %1285 = vmatpush1.bf16.msra.mxu0 0
        %1286 = vmatprep.subr.bf16.mxu0 0
        %1287 = vmatpush1.bf16.msra.mxu0 0
        %1288 = vmatprep.subr.bf16.mxu0 0
        %1289 = vmatpush1.bf16.msra.mxu0 0
        %1290 = vmatprep.subr.bf16.mxu0 0
        %1291 = vmatpush1.bf16.msra.mxu0 0
        %1292 = vmatprep.subr.bf16.mxu0 0
        %1293 = vmatpush1.bf16.msra.mxu0 0
        %1294 = vmatprep.subr.bf16.mxu0 0
        %1295 = vmatpush1.bf16.msra.mxu0 0
        %1296 = vmatprep.subr.bf16.mxu0 0
        %1297 = vmatpush1.bf16.msra.mxu0 0
        %1298 = vmatprep.subr.bf16.mxu0 0
        %1299 = vmatpush1.bf16.msra.mxu0 0
        %1300 = vmatprep.subr.bf16.mxu0 0
        %1301 = vmatpush1.bf16.msra.mxu0 0
        %1302 = vmatprep.subr.bf16.mxu0 0
        %1303 = vmatpush1.bf16.msra.mxu0 0
        %1304 = vmatprep.subr.bf16.mxu0 0
        %1305 = vmatpush1.bf16.msra.mxu0 0
        %1306 = vmatprep.subr.bf16.mxu0 0
        %1307 = vmatpush1.bf16.msra.mxu0 0
        %1308 = vmatprep.subr.bf16.mxu0 0
        %1309 = vmatpush1.bf16.msra.mxu0 0
        %1310 = vmatprep.subr.bf16.mxu0 0
        %1311 = vmatpush1.bf16.msra.mxu0 0
        %1312 = vmatprep.mubr.bf16.mxu0 0
        %1313 = vmatmul.mubr.bf16.gmra.mrb[0].mxu0 %v1275
        %v1314 = vpop.f32.mrb[0].mxu0
        %v1315 = vadd.f32 0.0, %v1314
        %v1316 = vpop.f32.mrb[0].mxu0
        %v1317 = vpop.f32.mrb[0].mxu0
        %v1318 = vadd.f32 0.0, %v1317
        %v1319 = vpop.f32.mrb[0].mxu0
        %1320 = vmatprep.mubr.bf16.mxu0 0
        %1321 = vmatmul.mubr.bf16.gmra.mrb[0].mxu0 %v1278
        %v1322 = vpop.f32.mrb[0].mxu0
        %v1323 = vadd.f32 0.0, %v1322
        %v1324 = vpop.f32.mrb[0].mxu0
        %v1325 = vpop.f32.mrb[0].mxu0
        %v1326 = vadd.f32 0.0, %v1325
        %v1327 = vpop.f32.mrb[0].mxu0
        %1328 = vdwg.mxu0
        %v1329 = vadd.f32 %v1247, %v1315
        %v1330 = vadd.f32 %v1248, %v1318
        %v1331 = vadd.f32 %v1249, %v1323
        %v1332 = vadd.f32 %v1250, %v1326
        %v1333 = vld [vmem:[%s437 + $0x43] sm:$0xff]
        %v1334 = vld [vmem:[%s437 + $0x4b] sm:$0xff]
        %v1335 = vld [vmem:[%s437 + $0x53] sm:$0xff]
        %v1336 = vld [vmem:[%s437 + $0x5b] sm:$0xf]
        %v1337 = vpack.c.bf16 %v1334, %v1333
        %v1338 = vpack.c.bf16 %v1336, %v1335
        %s1339 = scalar_lea.vmem %s1, 176
        %v1340 = vld [vmem:[%s1339] sm:$0xf]
        %v1341 = vld [vmem:[%s1339 + $0x4] sm:$0xf]
        %v1342 = vld [vmem:[%s1339 + $0x8] sm:$0xf]
        %v1343 = vld [vmem:[%s1339 + $0xc] sm:$0xf]
        %v1348 = vunpack.c.l.b16 %v1340
        %v1349 = vunpack.c.l.b16 %v1341
        %v1350 = vunpack.c.l.b16 %v1342
        %v1351 = vunpack.c.l.b16 %v1343
        %v1352 = vpack.c.b16 %v1349, %v1348
        %v1353 = vpack.c.b16 %v1351, %v1350
        %v1357 = vsel %vm472, %v1337, 0
        %v1360 = vsel %vm472, %v1338, 0
        %1362 = vmatprep.subr.bf16.mxu0 0
        %1363 = vmatpush1.bf16.msra.mxu0 %v1352
        %1364 = vmatprep.subr.bf16.mxu0 0
        %1365 = vmatpush1.bf16.msra.mxu0 %v1353
        %1366 = vmatprep.subr.bf16.mxu0 0
        %1367 = vmatpush1.bf16.msra.mxu0 0
        %1368 = vmatprep.subr.bf16.mxu0 0
        %1369 = vmatpush1.bf16.msra.mxu0 0
        %1370 = vmatprep.subr.bf16.mxu0 0
        %1371 = vmatpush1.bf16.msra.mxu0 0
        %1372 = vmatprep.subr.bf16.mxu0 0
        %1373 = vmatpush1.bf16.msra.mxu0 0
        %1374 = vmatprep.subr.bf16.mxu0 0
        %1375 = vmatpush1.bf16.msra.mxu0 0
        %1376 = vmatprep.subr.bf16.mxu0 0
        %1377 = vmatpush1.bf16.msra.mxu0 0
        %1378 = vmatprep.subr.bf16.mxu0 0
        %1379 = vmatpush1.bf16.msra.mxu0 0
        %1380 = vmatprep.subr.bf16.mxu0 0
        %1381 = vmatpush1.bf16.msra.mxu0 0
        %1382 = vmatprep.subr.bf16.mxu0 0
        %1383 = vmatpush1.bf16.msra.mxu0 0
        %1384 = vmatprep.subr.bf16.mxu0 0
        %1385 = vmatpush1.bf16.msra.mxu0 0
        %1386 = vmatprep.subr.bf16.mxu0 0
        %1387 = vmatpush1.bf16.msra.mxu0 0
        %1388 = vmatprep.subr.bf16.mxu0 0
        %1389 = vmatpush1.bf16.msra.mxu0 0
        %1390 = vmatprep.subr.bf16.mxu0 0
        %1391 = vmatpush1.bf16.msra.mxu0 0
        %1392 = vmatprep.subr.bf16.mxu0 0
        %1393 = vmatpush1.bf16.msra.mxu0 0
        %1394 = vmatprep.mubr.bf16.mxu0 0
        %1395 = vmatmul.mubr.bf16.gmra.mrb[0].mxu0 %v1357
        %v1396 = vpop.f32.mrb[0].mxu0
        %v1397 = vadd.f32 0.0, %v1396
        %v1398 = vpop.f32.mrb[0].mxu0
        %v1399 = vpop.f32.mrb[0].mxu0
        %v1400 = vadd.f32 0.0, %v1399
        %v1401 = vpop.f32.mrb[0].mxu0
        %1402 = vmatprep.mubr.bf16.mxu0 0
        %1403 = vmatmul.mubr.bf16.gmra.mrb[0].mxu0 %v1360
        %v1404 = vpop.f32.mrb[0].mxu0
        %v1405 = vadd.f32 0.0, %v1404
        %v1406 = vpop.f32.mrb[0].mxu0
        %v1407 = vpop.f32.mrb[0].mxu0
        %v1408 = vadd.f32 0.0, %v1407
        %v1409 = vpop.f32.mrb[0].mxu0
        %1410 = vdwg.mxu0
        %v1411 = vadd.f32 %v1329, %v1397
        %v1412 = vadd.f32 %v1330, %v1400
        %v1413 = vadd.f32 %v1331, %v1405
        %v1414 = vadd.f32 %v1332, %v1408
        %v1415 = vld [vmem:[%s437 + $0x4] sm:$0xff]
        %v1416 = vld [vmem:[%s437 + $0xc] sm:$0xff]
        %v1417 = vld [vmem:[%s437 + $0x14] sm:$0xff]
        %v1418 = vld [vmem:[%s437 + $0x1c] sm:$0xf]
        %v1419 = vpack.c.bf16 %v1416, %v1415
        %v1420 = vpack.c.bf16 %v1418, %v1417
        %s1421 = scalar_lea.vmem %s1, 192
        %v1422 = vld [vmem:[%s1421] sm:$0xf]
        %v1423 = vld [vmem:[%s1421 + $0x4] sm:$0xf]
        %v1424 = vld [vmem:[%s1421 + $0x8] sm:$0xf]
        %v1425 = vld [vmem:[%s1421 + $0xc] sm:$0xf]
        %v1430 = vunpack.c.l.b16 %v1422
        %v1431 = vunpack.c.l.b16 %v1423
        %v1432 = vunpack.c.l.b16 %v1424
        %v1433 = vunpack.c.l.b16 %v1425
        %v1434 = vpack.c.b16 %v1431, %v1430
        %v1435 = vpack.c.b16 %v1433, %v1432
        %v1439 = vsel %vm472, %v1419, 0
        %v1442 = vsel %vm472, %v1420, 0
        %1444 = vmatprep.subr.bf16.mxu0 0
        %1445 = vmatpush1.bf16.msra.mxu0 %v1434
        %1446 = vmatprep.subr.bf16.mxu0 0
        %1447 = vmatpush1.bf16.msra.mxu0 %v1435
        %1448 = vmatprep.subr.bf16.mxu0 0
        %1449 = vmatpush1.bf16.msra.mxu0 0
        %1450 = vmatprep.subr.bf16.mxu0 0
        %1451 = vmatpush1.bf16.msra.mxu0 0
        %1452 = vmatprep.subr.bf16.mxu0 0
        %1453 = vmatpush1.bf16.msra.mxu0 0
        %1454 = vmatprep.subr.bf16.mxu0 0
        %1455 = vmatpush1.bf16.msra.mxu0 0
        %1456 = vmatprep.subr.bf16.mxu0 0
        %1457 = vmatpush1.bf16.msra.mxu0 0
        %1458 = vmatprep.subr.bf16.mxu0 0
        %1459 = vmatpush1.bf16.msra.mxu0 0
        %1460 = vmatprep.subr.bf16.mxu0 0
        %1461 = vmatpush1.bf16.msra.mxu0 0
        %1462 = vmatprep.subr.bf16.mxu0 0
        %1463 = vmatpush1.bf16.msra.mxu0 0
        %1464 = vmatprep.subr.bf16.mxu0 0
        %1465 = vmatpush1.bf16.msra.mxu0 0
        %1466 = vmatprep.subr.bf16.mxu0 0
        %1467 = vmatpush1.bf16.msra.mxu0 0
        %1468 = vmatprep.subr.bf16.mxu0 0
        %1469 = vmatpush1.bf16.msra.mxu0 0
        %1470 = vmatprep.subr.bf16.mxu0 0
        %1471 = vmatpush1.bf16.msra.mxu0 0
        %1472 = vmatprep.subr.bf16.mxu0 0
        %1473 = vmatpush1.bf16.msra.mxu0 0
        %1474 = vmatprep.subr.bf16.mxu0 0
        %1475 = vmatpush1.bf16.msra.mxu0 0
        %1476 = vmatprep.mubr.bf16.mxu0 0
        %1477 = vmatmul.mubr.bf16.gmra.mrb[0].mxu0 %v1439
        %v1478 = vpop.f32.mrb[0].mxu0
        %v1479 = vadd.f32 0.0, %v1478
        %v1480 = vpop.f32.mrb[0].mxu0
        %v1481 = vpop.f32.mrb[0].mxu0
        %v1482 = vadd.f32 0.0, %v1481
        %v1483 = vpop.f32.mrb[0].mxu0
        %1484 = vmatprep.mubr.bf16.mxu0 0
        %1485 = vmatmul.mubr.bf16.gmra.mrb[0].mxu0 %v1442
        %v1486 = vpop.f32.mrb[0].mxu0
        %v1487 = vadd.f32 0.0, %v1486
        %v1488 = vpop.f32.mrb[0].mxu0
        %v1489 = vpop.f32.mrb[0].mxu0
        %v1490 = vadd.f32 0.0, %v1489
        %v1491 = vpop.f32.mrb[0].mxu0
        %1492 = vdwg.mxu0
        %v1493 = vadd.f32 %v1411, %v1479
        %v1494 = vadd.f32 %v1412, %v1482
        %v1495 = vadd.f32 %v1413, %v1487
        %v1496 = vadd.f32 %v1414, %v1490
        %v1497 = vld [vmem:[%s437 + $0x24] sm:$0xff]
        %v1498 = vld [vmem:[%s437 + $0x2c] sm:$0xff]
        %v1499 = vld [vmem:[%s437 + $0x34] sm:$0xff]
        %v1500 = vld [vmem:[%s437 + $0x3c] sm:$0xf]
        %v1501 = vpack.c.bf16 %v1498, %v1497
        %v1502 = vpack.c.bf16 %v1500, %v1499
        %s1503 = scalar_lea.vmem %s1, 208
        %v1504 = vld [vmem:[%s1503] sm:$0xf]
        %v1505 = vld [vmem:[%s1503 + $0x4] sm:$0xf]
        %v1506 = vld [vmem:[%s1503 + $0x8] sm:$0xf]
        %v1507 = vld [vmem:[%s1503 + $0xc] sm:$0xf]
        %v1512 = vunpack.c.l.b16 %v1504
        %v1513 = vunpack.c.l.b16 %v1505
        %v1514 = vunpack.c.l.b16 %v1506
        %v1515 = vunpack.c.l.b16 %v1507
        %v1516 = vpack.c.b16 %v1513, %v1512
        %v1517 = vpack.c.b16 %v1515, %v1514
        %v1521 = vsel %vm472, %v1501, 0
        %v1524 = vsel %vm472, %v1502, 0
        %1526 = vmatprep.subr.bf16.mxu0 0
        %1527 = vmatpush1.bf16.msra.mxu0 %v1516
        %1528 = vmatprep.subr.bf16.mxu0 0
        %1529 = vmatpush1.bf16.msra.mxu0 %v1517
        %1530 = vmatprep.subr.bf16.mxu0 0
        %1531 = vmatpush1.bf16.msra.mxu0 0
        %1532 = vmatprep.subr.bf16.mxu0 0
        %1533 = vmatpush1.bf16.msra.mxu0 0
        %1534 = vmatprep.subr.bf16.mxu0 0
        %1535 = vmatpush1.bf16.msra.mxu0 0
        %1536 = vmatprep.subr.bf16.mxu0 0
        %1537 = vmatpush1.bf16.msra.mxu0 0
        %1538 = vmatprep.subr.bf16.mxu0 0
        %1539 = vmatpush1.bf16.msra.mxu0 0
        %1540 = vmatprep.subr.bf16.mxu0 0
        %1541 = vmatpush1.bf16.msra.mxu0 0
        %1542 = vmatprep.subr.bf16.mxu0 0
        %1543 = vmatpush1.bf16.msra.mxu0 0
        %1544 = vmatprep.subr.bf16.mxu0 0
        %1545 = vmatpush1.bf16.msra.mxu0 0
        %1546 = vmatprep.subr.bf16.mxu0 0
        %1547 = vmatpush1.bf16.msra.mxu0 0
        %1548 = vmatprep.subr.bf16.mxu0 0
        %1549 = vmatpush1.bf16.msra.mxu0 0
        %1550 = vmatprep.subr.bf16.mxu0 0
        %1551 = vmatpush1.bf16.msra.mxu0 0
        %1552 = vmatprep.subr.bf16.mxu0 0
        %1553 = vmatpush1.bf16.msra.mxu0 0
        %1554 = vmatprep.subr.bf16.mxu0 0
        %1555 = vmatpush1.bf16.msra.mxu0 0
        %1556 = vmatprep.subr.bf16.mxu0 0
        %1557 = vmatpush1.bf16.msra.mxu0 0
        %1558 = vmatprep.mubr.bf16.mxu0 0
        %1559 = vmatmul.mubr.bf16.gmra.mrb[0].mxu0 %v1521
        %v1560 = vpop.f32.mrb[0].mxu0
        %v1561 = vadd.f32 0.0, %v1560
        %v1562 = vpop.f32.mrb[0].mxu0
        %v1563 = vpop.f32.mrb[0].mxu0
        %v1564 = vadd.f32 0.0, %v1563
        %v1565 = vpop.f32.mrb[0].mxu0
        %1566 = vmatprep.mubr.bf16.mxu0 0
        %1567 = vmatmul.mubr.bf16.gmra.mrb[0].mxu0 %v1524
        %v1568 = vpop.f32.mrb[0].mxu0
        %v1569 = vadd.f32 0.0, %v1568
        %v1570 = vpop.f32.mrb[0].mxu0
        %v1571 = vpop.f32.mrb[0].mxu0
        %v1572 = vadd.f32 0.0, %v1571
        %v1573 = vpop.f32.mrb[0].mxu0
        %1574 = vdwg.mxu0
        %v1575 = vadd.f32 %v1493, %v1561
        %v1576 = vadd.f32 %v1494, %v1564
        %v1577 = vadd.f32 %v1495, %v1569
        %v1578 = vadd.f32 %v1496, %v1572
        %v1579 = vld [vmem:[%s437 + $0x44] sm:$0xff]
        %v1580 = vld [vmem:[%s437 + $0x4c] sm:$0xff]
        %v1581 = vld [vmem:[%s437 + $0x54] sm:$0xff]
        %v1582 = vld [vmem:[%s437 + $0x5c] sm:$0xf]
        %v1583 = vpack.c.bf16 %v1580, %v1579
        %v1584 = vpack.c.bf16 %v1582, %v1581
        %s1585 = scalar_lea.vmem %s1, 224
        %v1586 = vld [vmem:[%s1585] sm:$0xf]
        %v1587 = vld [vmem:[%s1585 + $0x4] sm:$0xf]
        %v1588 = vld [vmem:[%s1585 + $0x8] sm:$0xf]
        %v1589 = vld [vmem:[%s1585 + $0xc] sm:$0xf]
        %v1594 = vunpack.c.l.b16 %v1586
        %v1595 = vunpack.c.l.b16 %v1587
        %v1596 = vunpack.c.l.b16 %v1588
        %v1597 = vunpack.c.l.b16 %v1589
        %v1598 = vpack.c.b16 %v1595, %v1594
        %v1599 = vpack.c.b16 %v1597, %v1596
        %v1603 = vsel %vm472, %v1583, 0
        %v1606 = vsel %vm472, %v1584, 0
        %1608 = vmatprep.subr.bf16.mxu0 0
        %1609 = vmatpush1.bf16.msra.mxu0 %v1598
        %1610 = vmatprep.subr.bf16.mxu0 0
        %1611 = vmatpush1.bf16.msra.mxu0 %v1599
        %1612 = vmatprep.subr.bf16.mxu0 0
        %1613 = vmatpush1.bf16.msra.mxu0 0
        %1614 = vmatprep.subr.bf16.mxu0 0
        %1615 = vmatpush1.bf16.msra.mxu0 0
        %1616 = vmatprep.subr.bf16.mxu0 0
        %1617 = vmatpush1.bf16.msra.mxu0 0
        %1618 = vmatprep.subr.bf16.mxu0 0
        %1619 = vmatpush1.bf16.msra.mxu0 0
        %1620 = vmatprep.subr.bf16.mxu0 0
        %1621 = vmatpush1.bf16.msra.mxu0 0
        %1622 = vmatprep.subr.bf16.mxu0 0
        %1623 = vmatpush1.bf16.msra.mxu0 0
        %1624 = vmatprep.subr.bf16.mxu0 0
        %1625 = vmatpush1.bf16.msra.mxu0 0
        %1626 = vmatprep.subr.bf16.mxu0 0
        %1627 = vmatpush1.bf16.msra.mxu0 0
        %1628 = vmatprep.subr.bf16.mxu0 0
        %1629 = vmatpush1.bf16.msra.mxu0 0
        %1630 = vmatprep.subr.bf16.mxu0 0
        %1631 = vmatpush1.bf16.msra.mxu0 0
        %1632 = vmatprep.subr.bf16.mxu0 0
        %1633 = vmatpush1.bf16.msra.mxu0 0
        %1634 = vmatprep.subr.bf16.mxu0 0
        %1635 = vmatpush1.bf16.msra.mxu0 0
        %1636 = vmatprep.subr.bf16.mxu0 0
        %1637 = vmatpush1.bf16.msra.mxu0 0
        %1638 = vmatprep.subr.bf16.mxu0 0
        %1639 = vmatpush1.bf16.msra.mxu0 0
        %1640 = vmatprep.mubr.bf16.mxu0 0
        %1641 = vmatmul.mubr.bf16.gmra.mrb[0].mxu0 %v1603
        %v1642 = vpop.f32.mrb[0].mxu0
        %v1643 = vadd.f32 0.0, %v1642
        %v1644 = vpop.f32.mrb[0].mxu0
        %v1645 = vpop.f32.mrb[0].mxu0
        %v1646 = vadd.f32 0.0, %v1645
        %v1647 = vpop.f32.mrb[0].mxu0
        %1648 = vmatprep.mubr.bf16.mxu0 0
        %1649 = vmatmul.mubr.bf16.gmra.mrb[0].mxu0 %v1606
        %v1650 = vpop.f32.mrb[0].mxu0
        %v1651 = vadd.f32 0.0, %v1650
        %v1652 = vpop.f32.mrb[0].mxu0
        %v1653 = vpop.f32.mrb[0].mxu0
        %v1654 = vadd.f32 0.0, %v1653
        %v1655 = vpop.f32.mrb[0].mxu0
        %1656 = vdwg.mxu0
        %v1657 = vadd.f32 %v1575, %v1643
        %v1658 = vadd.f32 %v1576, %v1646
        %v1659 = vadd.f32 %v1577, %v1651
        %v1660 = vadd.f32 %v1578, %v1654
        %v1661 = vld [vmem:[%s2] sm:$0x1]
        %v1663 = vlaneseq
        %v1664 = vshrl.u32 %v1663, 7
        %v1665 = vsub.s32 0, %v1664
        %v1666 = vrot.slane %v1661, %v1665
        %v1668 = vadd.f32 %v1657, %v1666
        %v1669 = vadd.f32 %v1658, %v1666
        %v1670 = vadd.f32 %v1659, %v1666
        %v1671 = vadd.f32 %v1660, %v1666
        %v1672 = vmax.f32 %v1668, 0.0
        %v1673 = vmax.f32 %v1669, 0.0
        %v1674 = vmax.f32 %v1670, 0.0
        %v1675 = vmax.f32 %v1671, 0.0
        %s1676 = scalar_lea.vmem %s1, 240
        %v1677 = vld [vmem:[%s1676] sm:$0xf]
        %v1678 = vld [vmem:[%s1676 + $0x4] sm:$0xf]
        %v1679 = vld [vmem:[%s1676 + $0x8] sm:$0xf]
        %v1680 = vld [vmem:[%s1676 + $0xc] sm:$0xf]
        %s1681 = scalar_lea.vmem %s1, 256
        %v1682 = vld [vmem:[%s1681] sm:$0xf]
        %v1683 = vld [vmem:[%s1681 + $0x4] sm:$0xf]
        %v1684 = vld [vmem:[%s1681 + $0x8] sm:$0xf]
        %v1685 = vld [vmem:[%s1681 + $0xc] sm:$0xf]
        %v1690 = vunpack.c.l.b16 %v1682
        %v1691 = vunpack.c.l.b16 %v1683
        %v1692 = vunpack.c.l.b16 %v1684
        %v1693 = vunpack.c.l.b16 %v1685
        %v1694 = vpack.c.b16 %v1691, %v1690
        %v1695 = vpack.c.b16 %v1693, %v1692
        %1698 = vmatprep.subr.bf16.mxu0 0
        %1699 = vmatpush1.bf16.msra.mxu0 %v1694
        %1700 = vmatprep.subr.bf16.mxu0 0
        %1701 = vmatpush1.bf16.msra.mxu0 %v1695
        %1702 = vmatprep.subr.bf16.mxu0 0
        %1703 = vmatpush1.bf16.msra.mxu0 0
        %1704 = vmatprep.subr.bf16.mxu0 0
        %1705 = vmatpush1.bf16.msra.mxu0 0
        %1706 = vmatprep.subr.bf16.mxu0 0
        %1707 = vmatpush1.bf16.msra.mxu0 0
        %1708 = vmatprep.subr.bf16.mxu0 0
        %1709 = vmatpush1.bf16.msra.mxu0 0
        %1710 = vmatprep.subr.bf16.mxu0 0
        %1711 = vmatpush1.bf16.msra.mxu0 0
        %1712 = vmatprep.subr.bf16.mxu0 0
        %1713 = vmatpush1.bf16.msra.mxu0 0
        %1714 = vmatprep.subr.bf16.mxu0 0
        %1715 = vmatpush1.bf16.msra.mxu0 0
        %1716 = vmatprep.subr.bf16.mxu0 0
        %1717 = vmatpush1.bf16.msra.mxu0 0
        %1718 = vmatprep.subr.bf16.mxu0 0
        %1719 = vmatpush1.bf16.msra.mxu0 0
        %1720 = vmatprep.subr.bf16.mxu0 0
        %1721 = vmatpush1.bf16.msra.mxu0 0
        %1722 = vmatprep.subr.bf16.mxu0 0
        %1723 = vmatpush1.bf16.msra.mxu0 0
        %1724 = vmatprep.subr.bf16.mxu0 0
        %1725 = vmatpush1.bf16.msra.mxu0 0
        %1726 = vmatprep.subr.bf16.mxu0 0
        %1727 = vmatpush1.bf16.msra.mxu0 0
        %1728 = vmatprep.subr.bf16.mxu0 0
        %1729 = vmatpush1.bf16.msra.mxu0 0
        %1730 = vmatprep.mubr.bf16.mxu0 0
        %1731 = vmatmul.mubr.bf16.gmra.mrb[0].mxu0 %v474
        %v1732 = vpop.f32.mrb[0].mxu0
        %v1733 = vadd.f32 0.0, %v1732
        %v1734 = vpop.f32.mrb[0].mxu0
        %v1735 = vpop.f32.mrb[0].mxu0
        %v1736 = vadd.f32 0.0, %v1735
        %v1737 = vpop.f32.mrb[0].mxu0
        %1738 = vmatprep.mubr.bf16.mxu0 0
        %1739 = vmatmul.mubr.bf16.gmra.mrb[0].mxu0 %v477
        %v1740 = vpop.f32.mrb[0].mxu0
        %v1741 = vadd.f32 0.0, %v1740
        %v1742 = vpop.f32.mrb[0].mxu0
        %v1743 = vpop.f32.mrb[0].mxu0
        %v1744 = vadd.f32 0.0, %v1743
        %v1745 = vpop.f32.mrb[0].mxu0
        %1746 = vdwg.mxu0
        %v1751 = vunpack.c.l.b16 %v1677
        %v1752 = vunpack.c.l.b16 %v1678
        %v1753 = vunpack.c.l.b16 %v1679
        %v1754 = vunpack.c.l.b16 %v1680
        %v1755 = vpack.c.b16 %v1752, %v1751
        %v1756 = vpack.c.b16 %v1754, %v1753
        %1759 = vmatprep.subr.bf16.mxu0 0
        %1760 = vmatpush1.bf16.msra.mxu0 %v1755
        %1761 = vmatprep.subr.bf16.mxu0 0
        %1762 = vmatpush1.bf16.msra.mxu0 %v1756
        %1763 = vmatprep.subr.bf16.mxu0 0
        %1764 = vmatpush1.bf16.msra.mxu0 0
        %1765 = vmatprep.subr.bf16.mxu0 0
        %1766 = vmatpush1.bf16.msra.mxu0 0
        %1767 = vmatprep.subr.bf16.mxu0 0
        %1768 = vmatpush1.bf16.msra.mxu0 0
        %1769 = vmatprep.subr.bf16.mxu0 0
        %1770 = vmatpush1.bf16.msra.mxu0 0
        %1771 = vmatprep.subr.bf16.mxu0 0
        %1772 = vmatpush1.bf16.msra.mxu0 0
        %1773 = vmatprep.subr.bf16.mxu0 0
        %1774 = vmatpush1.bf16.msra.mxu0 0
        %1775 = vmatprep.subr.bf16.mxu0 0
        %1776 = vmatpush1.bf16.msra.mxu0 0
        %1777 = vmatprep.subr.bf16.mxu0 0
        %1778 = vmatpush1.bf16.msra.mxu0 0
        %1779 = vmatprep.subr.bf16.mxu0 0
        %1780 = vmatpush1.bf16.msra.mxu0 0
        %1781 = vmatprep.subr.bf16.mxu0 0
        %1782 = vmatpush1.bf16.msra.mxu0 0
        %1783 = vmatprep.subr.bf16.mxu0 0
        %1784 = vmatpush1.bf16.msra.mxu0 0
        %1785 = vmatprep.subr.bf16.mxu0 0
        %1786 = vmatpush1.bf16.msra.mxu0 0
        %1787 = vmatprep.subr.bf16.mxu0 0
        %1788 = vmatpush1.bf16.msra.mxu0 0
        %1789 = vmatprep.subr.bf16.mxu0 0
        %1790 = vmatpush1.bf16.msra.mxu0 0
        %1791 = vmatprep.mubr.bf16.mxu0 0
        %1792 = vmatmul.mubr.bf16.gmra.mrb[0].mxu0 %v541
        %v1793 = vpop.f32.mrb[0].mxu0
        %v1794 = vadd.f32 %v1733, %v1793
        %v1795 = vpop.f32.mrb[0].mxu0
        %v1796 = vpop.f32.mrb[0].mxu0
        %v1797 = vadd.f32 %v1736, %v1796
        %v1798 = vpop.f32.mrb[0].mxu0
        %1799 = vmatprep.mubr.bf16.mxu0 0
        %1800 = vmatmul.mubr.bf16.gmra.mrb[0].mxu0 %v544
        %v1801 = vpop.f32.mrb[0].mxu0
        %v1802 = vadd.f32 %v1741, %v1801
        %v1803 = vpop.f32.mrb[0].mxu0
        %v1804 = vpop.f32.mrb[0].mxu0
        %v1805 = vadd.f32 %v1744, %v1804
        %v1806 = vpop.f32.mrb[0].mxu0
        %1807 = vdwg.mxu0
        %s1808 = scalar_lea.vmem %s1, 272
        %v1809 = vld [vmem:[%s1808] sm:$0xf]
        %v1810 = vld [vmem:[%s1808 + $0x4] sm:$0xf]
        %v1811 = vld [vmem:[%s1808 + $0x8] sm:$0xf]
        %v1812 = vld [vmem:[%s1808 + $0xc] sm:$0xf]
        %v1817 = vunpack.c.l.b16 %v1809
        %v1818 = vunpack.c.l.b16 %v1810
        %v1819 = vunpack.c.l.b16 %v1811
        %v1820 = vunpack.c.l.b16 %v1812
        %v1821 = vpack.c.b16 %v1818, %v1817
        %v1822 = vpack.c.b16 %v1820, %v1819
        %1825 = vmatprep.subr.bf16.mxu0 0
        %1826 = vmatpush1.bf16.msra.mxu0 %v1821
        %1827 = vmatprep.subr.bf16.mxu0 0
        %1828 = vmatpush1.bf16.msra.mxu0 %v1822
        %1829 = vmatprep.subr.bf16.mxu0 0
        %1830 = vmatpush1.bf16.msra.mxu0 0
        %1831 = vmatprep.subr.bf16.mxu0 0
        %1832 = vmatpush1.bf16.msra.mxu0 0
        %1833 = vmatprep.subr.bf16.mxu0 0
        %1834 = vmatpush1.bf16.msra.mxu0 0
        %1835 = vmatprep.subr.bf16.mxu0 0
        %1836 = vmatpush1.bf16.msra.mxu0 0
        %1837 = vmatprep.subr.bf16.mxu0 0
        %1838 = vmatpush1.bf16.msra.mxu0 0
        %1839 = vmatprep.subr.bf16.mxu0 0
        %1840 = vmatpush1.bf16.msra.mxu0 0
        %1841 = vmatprep.subr.bf16.mxu0 0
        %1842 = vmatpush1.bf16.msra.mxu0 0
        %1843 = vmatprep.subr.bf16.mxu0 0
        %1844 = vmatpush1.bf16.msra.mxu0 0
        %1845 = vmatprep.subr.bf16.mxu0 0
        %1846 = vmatpush1.bf16.msra.mxu0 0
        %1847 = vmatprep.subr.bf16.mxu0 0
        %1848 = vmatpush1.bf16.msra.mxu0 0
        %1849 = vmatprep.subr.bf16.mxu0 0
        %1850 = vmatpush1.bf16.msra.mxu0 0
        %1851 = vmatprep.subr.bf16.mxu0 0
        %1852 = vmatpush1.bf16.msra.mxu0 0
        %1853 = vmatprep.subr.bf16.mxu0 0
        %1854 = vmatpush1.bf16.msra.mxu0 0
        %1855 = vmatprep.subr.bf16.mxu0 0
        %1856 = vmatpush1.bf16.msra.mxu0 0
        %1857 = vmatprep.mubr.bf16.mxu0 0
        %1858 = vmatmul.mubr.bf16.gmra.mrb[0].mxu0 %v619
        %v1859 = vpop.f32.mrb[0].mxu0
        %v1860 = vadd.f32 0.0, %v1859
        %v1861 = vpop.f32.mrb[0].mxu0
        %v1862 = vpop.f32.mrb[0].mxu0
        %v1863 = vadd.f32 0.0, %v1862
        %v1864 = vpop.f32.mrb[0].mxu0
        %1865 = vmatprep.mubr.bf16.mxu0 0
        %1866 = vmatmul.mubr.bf16.gmra.mrb[0].mxu0 %v622
        %v1867 = vpop.f32.mrb[0].mxu0
        %v1868 = vadd.f32 0.0, %v1867
        %v1869 = vpop.f32.mrb[0].mxu0
        %v1870 = vpop.f32.mrb[0].mxu0
        %v1871 = vadd.f32 0.0, %v1870
        %v1872 = vpop.f32.mrb[0].mxu0
        %1873 = vdwg.mxu0
        %v1874 = vadd.f32 %v1794, %v1860
        %v1875 = vadd.f32 %v1797, %v1863
        %v1876 = vadd.f32 %v1802, %v1868
        %v1877 = vadd.f32 %v1805, %v1871
        %s1878 = scalar_lea.vmem %s1, 288
        %v1879 = vld [vmem:[%s1878] sm:$0xf]
        %v1880 = vld [vmem:[%s1878 + $0x4] sm:$0xf]
        %v1881 = vld [vmem:[%s1878 + $0x8] sm:$0xf]
        %v1882 = vld [vmem:[%s1878 + $0xc] sm:$0xf]
        %v1887 = vunpack.c.l.b16 %v1879
        %v1888 = vunpack.c.l.b16 %v1880
        %v1889 = vunpack.c.l.b16 %v1881
        %v1890 = vunpack.c.l.b16 %v1882
        %v1891 = vpack.c.b16 %v1888, %v1887
        %v1892 = vpack.c.b16 %v1890, %v1889
        %1895 = vmatprep.subr.bf16.mxu0 0
        %1896 = vmatpush1.bf16.msra.mxu0 %v1891
        %1897 = vmatprep.subr.bf16.mxu0 0
        %1898 = vmatpush1.bf16.msra.mxu0 %v1892
        %1899 = vmatprep.subr.bf16.mxu0 0
        %1900 = vmatpush1.bf16.msra.mxu0 0
        %1901 = vmatprep.subr.bf16.mxu0 0
        %1902 = vmatpush1.bf16.msra.mxu0 0
        %1903 = vmatprep.subr.bf16.mxu0 0
        %1904 = vmatpush1.bf16.msra.mxu0 0
        %1905 = vmatprep.subr.bf16.mxu0 0
        %1906 = vmatpush1.bf16.msra.mxu0 0
        %1907 = vmatprep.subr.bf16.mxu0 0
        %1908 = vmatpush1.bf16.msra.mxu0 0
        %1909 = vmatprep.subr.bf16.mxu0 0
        %1910 = vmatpush1.bf16.msra.mxu0 0
        %1911 = vmatprep.subr.bf16.mxu0 0
        %1912 = vmatpush1.bf16.msra.mxu0 0
        %1913 = vmatprep.subr.bf16.mxu0 0
        %1914 = vmatpush1.bf16.msra.mxu0 0
        %1915 = vmatprep.subr.bf16.mxu0 0
        %1916 = vmatpush1.bf16.msra.mxu0 0
        %1917 = vmatprep.subr.bf16.mxu0 0
        %1918 = vmatpush1.bf16.msra.mxu0 0
        %1919 = vmatprep.subr.bf16.mxu0 0
        %1920 = vmatpush1.bf16.msra.mxu0 0
        %1921 = vmatprep.subr.bf16.mxu0 0
        %1922 = vmatpush1.bf16.msra.mxu0 0
        %1923 = vmatprep.subr.bf16.mxu0 0
        %1924 = vmatpush1.bf16.msra.mxu0 0
        %1925 = vmatprep.subr.bf16.mxu0 0
        %1926 = vmatpush1.bf16.msra.mxu0 0
        %1927 = vmatprep.mubr.bf16.mxu0 0
        %1928 = vmatmul.mubr.bf16.gmra.mrb[0].mxu0 %v701
        %v1929 = vpop.f32.mrb[0].mxu0
        %v1930 = vadd.f32 0.0, %v1929
        %v1931 = vpop.f32.mrb[0].mxu0
        %v1932 = vpop.f32.mrb[0].mxu0
        %v1933 = vadd.f32 0.0, %v1932
        %v1934 = vpop.f32.mrb[0].mxu0
        %1935 = vmatprep.mubr.bf16.mxu0 0
        %1936 = vmatmul.mubr.bf16.gmra.mrb[0].mxu0 %v704
        %v1937 = vpop.f32.mrb[0].mxu0
        %v1938 = vadd.f32 0.0, %v1937
        %v1939 = vpop.f32.mrb[0].mxu0
        %v1940 = vpop.f32.mrb[0].mxu0
        %v1941 = vadd.f32 0.0, %v1940
        %v1942 = vpop.f32.mrb[0].mxu0
        %1943 = vdwg.mxu0
        %v1944 = vadd.f32 %v1874, %v1930
        %v1945 = vadd.f32 %v1875, %v1933
        %v1946 = vadd.f32 %v1876, %v1938
        %v1947 = vadd.f32 %v1877, %v1941
        %s1948 = scalar_lea.vmem %s1, 304
        %v1949 = vld [vmem:[%s1948] sm:$0xf]
        %v1950 = vld [vmem:[%s1948 + $0x4] sm:$0xf]
        %v1951 = vld [vmem:[%s1948 + $0x8] sm:$0xf]
        %v1952 = vld [vmem:[%s1948 + $0xc] sm:$0xf]
        %v1957 = vunpack.c.l.b16 %v1949
        %v1958 = vunpack.c.l.b16 %v1950
        %v1959 = vunpack.c.l.b16 %v1951
        %v1960 = vunpack.c.l.b16 %v1952
        %v1961 = vpack.c.b16 %v1958, %v1957
        %v1962 = vpack.c.b16 %v1960, %v1959
        %1965 = vmatprep.subr.bf16.mxu0 0
        %1966 = vmatpush1.bf16.msra.mxu0 %v1961
        %1967 = vmatprep.subr.bf16.mxu0 0
        %1968 = vmatpush1.bf16.msra.mxu0 %v1962
        %1969 = vmatprep.subr.bf16.mxu0 0
        %1970 = vmatpush1.bf16.msra.mxu0 0
        %1971 = vmatprep.subr.bf16.mxu0 0
        %1972 = vmatpush1.bf16.msra.mxu0 0
        %1973 = vmatprep.subr.bf16.mxu0 0
        %1974 = vmatpush1.bf16.msra.mxu0 0
        %1975 = vmatprep.subr.bf16.mxu0 0
        %1976 = vmatpush1.bf16.msra.mxu0 0
        %1977 = vmatprep.subr.bf16.mxu0 0
        %1978 = vmatpush1.bf16.msra.mxu0 0
        %1979 = vmatprep.subr.bf16.mxu0 0
        %1980 = vmatpush1.bf16.msra.mxu0 0
        %1981 = vmatprep.subr.bf16.mxu0 0
        %1982 = vmatpush1.bf16.msra.mxu0 0
        %1983 = vmatprep.subr.bf16.mxu0 0
        %1984 = vmatpush1.bf16.msra.mxu0 0
        %1985 = vmatprep.subr.bf16.mxu0 0
        %1986 = vmatpush1.bf16.msra.mxu0 0
        %1987 = vmatprep.subr.bf16.mxu0 0
        %1988 = vmatpush1.bf16.msra.mxu0 0
        %1989 = vmatprep.subr.bf16.mxu0 0
        %1990 = vmatpush1.bf16.msra.mxu0 0
        %1991 = vmatprep.subr.bf16.mxu0 0
        %1992 = vmatpush1.bf16.msra.mxu0 0
        %1993 = vmatprep.subr.bf16.mxu0 0
        %1994 = vmatpush1.bf16.msra.mxu0 0
        %1995 = vmatprep.subr.bf16.mxu0 0
        %1996 = vmatpush1.bf16.msra.mxu0 0
        %1997 = vmatprep.mubr.bf16.mxu0 0
        %1998 = vmatmul.mubr.bf16.gmra.mrb[0].mxu0 %v783
        %v1999 = vpop.f32.mrb[0].mxu0
        %v2000 = vadd.f32 0.0, %v1999
        %v2001 = vpop.f32.mrb[0].mxu0
        %v2002 = vpop.f32.mrb[0].mxu0
        %v2003 = vadd.f32 0.0, %v2002
        %v2004 = vpop.f32.mrb[0].mxu0
        %2005 = vmatprep.mubr.bf16.mxu0 0
        %2006 = vmatmul.mubr.bf16.gmra.mrb[0].mxu0 %v786
        %v2007 = vpop.f32.mrb[0].mxu0
        %v2008 = vadd.f32 0.0, %v2007
        %v2009 = vpop.f32.mrb[0].mxu0
        %v2010 = vpop.f32.mrb[0].mxu0
        %v2011 = vadd.f32 0.0, %v2010
        %v2012 = vpop.f32.mrb[0].mxu0
        %2013 = vdwg.mxu0
        %v2014 = vadd.f32 %v1944, %v2000
        %v2015 = vadd.f32 %v1945, %v2003
        %v2016 = vadd.f32 %v1946, %v2008
        %v2017 = vadd.f32 %v1947, %v2011
        %s2018 = scalar_lea.vmem %s1, 320
        %v2019 = vld [vmem:[%s2018] sm:$0xf]
        %v2020 = vld [vmem:[%s2018 + $0x4] sm:$0xf]
        %v2021 = vld [vmem:[%s2018 + $0x8] sm:$0xf]
        %v2022 = vld [vmem:[%s2018 + $0xc] sm:$0xf]
        %v2027 = vunpack.c.l.b16 %v2019
        %v2028 = vunpack.c.l.b16 %v2020
        %v2029 = vunpack.c.l.b16 %v2021
        %v2030 = vunpack.c.l.b16 %v2022
        %v2031 = vpack.c.b16 %v2028, %v2027
        %v2032 = vpack.c.b16 %v2030, %v2029
        %2035 = vmatprep.subr.bf16.mxu0 0
        %2036 = vmatpush1.bf16.msra.mxu0 %v2031
        %2037 = vmatprep.subr.bf16.mxu0 0
        %2038 = vmatpush1.bf16.msra.mxu0 %v2032
        %2039 = vmatprep.subr.bf16.mxu0 0
        %2040 = vmatpush1.bf16.msra.mxu0 0
        %2041 = vmatprep.subr.bf16.mxu0 0
        %2042 = vmatpush1.bf16.msra.mxu0 0
        %2043 = vmatprep.subr.bf16.mxu0 0
        %2044 = vmatpush1.bf16.msra.mxu0 0
        %2045 = vmatprep.subr.bf16.mxu0 0
        %2046 = vmatpush1.bf16.msra.mxu0 0
        %2047 = vmatprep.subr.bf16.mxu0 0
        %2048 = vmatpush1.bf16.msra.mxu0 0
        %2049 = vmatprep.subr.bf16.mxu0 0
        %2050 = vmatpush1.bf16.msra.mxu0 0
        %2051 = vmatprep.subr.bf16.mxu0 0
        %2052 = vmatpush1.bf16.msra.mxu0 0
        %2053 = vmatprep.subr.bf16.mxu0 0
        %2054 = vmatpush1.bf16.msra.mxu0 0
        %2055 = vmatprep.subr.bf16.mxu0 0
        %2056 = vmatpush1.bf16.msra.mxu0 0
        %2057 = vmatprep.subr.bf16.mxu0 0
        %2058 = vmatpush1.bf16.msra.mxu0 0
        %2059 = vmatprep.subr.bf16.mxu0 0
        %2060 = vmatpush1.bf16.msra.mxu0 0
        %2061 = vmatprep.subr.bf16.mxu0 0
        %2062 = vmatpush1.bf16.msra.mxu0 0
        %2063 = vmatprep.subr.bf16.mxu0 0
        %2064 = vmatpush1.bf16.msra.mxu0 0
        %2065 = vmatprep.subr.bf16.mxu0 0
        %2066 = vmatpush1.bf16.msra.mxu0 0
        %2067 = vmatprep.mubr.bf16.mxu0 0
        %2068 = vmatmul.mubr.bf16.gmra.mrb[0].mxu0 %v865
        %v2069 = vpop.f32.mrb[0].mxu0
        %v2070 = vadd.f32 0.0, %v2069
        %v2071 = vpop.f32.mrb[0].mxu0
        %v2072 = vpop.f32.mrb[0].mxu0
        %v2073 = vadd.f32 0.0, %v2072
        %v2074 = vpop.f32.mrb[0].mxu0
        %2075 = vmatprep.mubr.bf16.mxu0 0
        %2076 = vmatmul.mubr.bf16.gmra.mrb[0].mxu0 %v868
        %v2077 = vpop.f32.mrb[0].mxu0
        %v2078 = vadd.f32 0.0, %v2077
        %v2079 = vpop.f32.mrb[0].mxu0
        %v2080 = vpop.f32.mrb[0].mxu0
        %v2081 = vadd.f32 0.0, %v2080
        %v2082 = vpop.f32.mrb[0].mxu0
        %2083 = vdwg.mxu0
        %v2084 = vadd.f32 %v2014, %v2070
        %v2085 = vadd.f32 %v2015, %v2073
        %v2086 = vadd.f32 %v2016, %v2078
        %v2087 = vadd.f32 %v2017, %v2081
        %s2088 = scalar_lea.vmem %s1, 336
        %v2089 = vld [vmem:[%s2088] sm:$0xf]
        %v2090 = vld [vmem:[%s2088 + $0x4] sm:$0xf]
        %v2091 = vld [vmem:[%s2088 + $0x8] sm:$0xf]
        %v2092 = vld [vmem:[%s2088 + $0xc] sm:$0xf]
        %v2097 = vunpack.c.l.b16 %v2089
        %v2098 = vunpack.c.l.b16 %v2090
        %v2099 = vunpack.c.l.b16 %v2091
        %v2100 = vunpack.c.l.b16 %v2092
        %v2101 = vpack.c.b16 %v2098, %v2097
        %v2102 = vpack.c.b16 %v2100, %v2099
        %2105 = vmatprep.subr.bf16.mxu0 0
        %2106 = vmatpush1.bf16.msra.mxu0 %v2101
        %2107 = vmatprep.subr.bf16.mxu0 0
        %2108 = vmatpush1.bf16.msra.mxu0 %v2102
        %2109 = vmatprep.subr.bf16.mxu0 0
        %2110 = vmatpush1.bf16.msra.mxu0 0
        %2111 = vmatprep.subr.bf16.mxu0 0
        %2112 = vmatpush1.bf16.msra.mxu0 0
        %2113 = vmatprep.subr.bf16.mxu0 0
        %2114 = vmatpush1.bf16.msra.mxu0 0
        %2115 = vmatprep.subr.bf16.mxu0 0
        %2116 = vmatpush1.bf16.msra.mxu0 0
        %2117 = vmatprep.subr.bf16.mxu0 0
        %2118 = vmatpush1.bf16.msra.mxu0 0
        %2119 = vmatprep.subr.bf16.mxu0 0
        %2120 = vmatpush1.bf16.msra.mxu0 0
        %2121 = vmatprep.subr.bf16.mxu0 0
        %2122 = vmatpush1.bf16.msra.mxu0 0
        %2123 = vmatprep.subr.bf16.mxu0 0
        %2124 = vmatpush1.bf16.msra.mxu0 0
        %2125 = vmatprep.subr.bf16.mxu0 0
        %2126 = vmatpush1.bf16.msra.mxu0 0
        %2127 = vmatprep.subr.bf16.mxu0 0
        %2128 = vmatpush1.bf16.msra.mxu0 0
        %2129 = vmatprep.subr.bf16.mxu0 0
        %2130 = vmatpush1.bf16.msra.mxu0 0
        %2131 = vmatprep.subr.bf16.mxu0 0
        %2132 = vmatpush1.bf16.msra.mxu0 0
        %2133 = vmatprep.subr.bf16.mxu0 0
        %2134 = vmatpush1.bf16.msra.mxu0 0
        %2135 = vmatprep.subr.bf16.mxu0 0
        %2136 = vmatpush1.bf16.msra.mxu0 0
        %2137 = vmatprep.mubr.bf16.mxu0 0
        %2138 = vmatmul.mubr.bf16.gmra.mrb[0].mxu0 %v947
        %v2139 = vpop.f32.mrb[0].mxu0
        %v2140 = vadd.f32 0.0, %v2139
        %v2141 = vpop.f32.mrb[0].mxu0
        %v2142 = vpop.f32.mrb[0].mxu0
        %v2143 = vadd.f32 0.0, %v2142
        %v2144 = vpop.f32.mrb[0].mxu0
        %2145 = vmatprep.mubr.bf16.mxu0 0
        %2146 = vmatmul.mubr.bf16.gmra.mrb[0].mxu0 %v950
        %v2147 = vpop.f32.mrb[0].mxu0
        %v2148 = vadd.f32 0.0, %v2147
        %v2149 = vpop.f32.mrb[0].mxu0
        %v2150 = vpop.f32.mrb[0].mxu0
        %v2151 = vadd.f32 0.0, %v2150
        %v2152 = vpop.f32.mrb[0].mxu0
        %2153 = vdwg.mxu0
        %v2154 = vadd.f32 %v2084, %v2140
        %v2155 = vadd.f32 %v2085, %v2143
        %v2156 = vadd.f32 %v2086, %v2148
        %v2157 = vadd.f32 %v2087, %v2151
        %s2158 = scalar_lea.vmem %s1, 352
        %v2159 = vld [vmem:[%s2158] sm:$0xf]
        %v2160 = vld [vmem:[%s2158 + $0x4] sm:$0xf]
        %v2161 = vld [vmem:[%s2158 + $0x8] sm:$0xf]
        %v2162 = vld [vmem:[%s2158 + $0xc] sm:$0xf]
        %v2167 = vunpack.c.l.b16 %v2159
        %v2168 = vunpack.c.l.b16 %v2160
        %v2169 = vunpack.c.l.b16 %v2161
        %v2170 = vunpack.c.l.b16 %v2162
        %v2171 = vpack.c.b16 %v2168, %v2167
        %v2172 = vpack.c.b16 %v2170, %v2169
        %2175 = vmatprep.subr.bf16.mxu0 0
        %2176 = vmatpush1.bf16.msra.mxu0 %v2171
        %2177 = vmatprep.subr.bf16.mxu0 0
        %2178 = vmatpush1.bf16.msra.mxu0 %v2172
        %2179 = vmatprep.subr.bf16.mxu0 0
        %2180 = vmatpush1.bf16.msra.mxu0 0
        %2181 = vmatprep.subr.bf16.mxu0 0
        %2182 = vmatpush1.bf16.msra.mxu0 0
        %2183 = vmatprep.subr.bf16.mxu0 0
        %2184 = vmatpush1.bf16.msra.mxu0 0
        %2185 = vmatprep.subr.bf16.mxu0 0
        %2186 = vmatpush1.bf16.msra.mxu0 0
        %2187 = vmatprep.subr.bf16.mxu0 0
        %2188 = vmatpush1.bf16.msra.mxu0 0
        %2189 = vmatprep.subr.bf16.mxu0 0
        %2190 = vmatpush1.bf16.msra.mxu0 0
        %2191 = vmatprep.subr.bf16.mxu0 0
        %2192 = vmatpush1.bf16.msra.mxu0 0
        %2193 = vmatprep.subr.bf16.mxu0 0
        %2194 = vmatpush1.bf16.msra.mxu0 0
        %2195 = vmatprep.subr.bf16.mxu0 0
        %2196 = vmatpush1.bf16.msra.mxu0 0
        %2197 = vmatprep.subr.bf16.mxu0 0
        %2198 = vmatpush1.bf16.msra.mxu0 0
        %2199 = vmatprep.subr.bf16.mxu0 0
        %2200 = vmatpush1.bf16.msra.mxu0 0
        %2201 = vmatprep.subr.bf16.mxu0 0
        %2202 = vmatpush1.bf16.msra.mxu0 0
        %2203 = vmatprep.subr.bf16.mxu0 0
        %2204 = vmatpush1.bf16.msra.mxu0 0
        %2205 = vmatprep.subr.bf16.mxu0 0
        %2206 = vmatpush1.bf16.msra.mxu0 0
        %2207 = vmatprep.mubr.bf16.mxu0 0
        %2208 = vmatmul.mubr.bf16.gmra.mrb[0].mxu0 %v1029
        %v2209 = vpop.f32.mrb[0].mxu0
        %v2210 = vadd.f32 0.0, %v2209
        %v2211 = vpop.f32.mrb[0].mxu0
        %v2212 = vpop.f32.mrb[0].mxu0
        %v2213 = vadd.f32 0.0, %v2212
        %v2214 = vpop.f32.mrb[0].mxu0
        %2215 = vmatprep.mubr.bf16.mxu0 0
        %2216 = vmatmul.mubr.bf16.gmra.mrb[0].mxu0 %v1032
        %v2217 = vpop.f32.mrb[0].mxu0
        %v2218 = vadd.f32 0.0, %v2217
        %v2219 = vpop.f32.mrb[0].mxu0
        %v2220 = vpop.f32.mrb[0].mxu0
        %v2221 = vadd.f32 0.0, %v2220
        %v2222 = vpop.f32.mrb[0].mxu0
        %2223 = vdwg.mxu0
        %v2224 = vadd.f32 %v2154, %v2210
        %v2225 = vadd.f32 %v2155, %v2213
        %v2226 = vadd.f32 %v2156, %v2218
        %v2227 = vadd.f32 %v2157, %v2221
        %s2228 = scalar_lea.vmem %s1, 368
        %v2229 = vld [vmem:[%s2228] sm:$0xf]
        %v2230 = vld [vmem:[%s2228 + $0x4] sm:$0xf]
        %v2231 = vld [vmem:[%s2228 + $0x8] sm:$0xf]
        %v2232 = vld [vmem:[%s2228 + $0xc] sm:$0xf]
        %v2237 = vunpack.c.l.b16 %v2229
        %v2238 = vunpack.c.l.b16 %v2230
        %v2239 = vunpack.c.l.b16 %v2231
        %v2240 = vunpack.c.l.b16 %v2232
        %v2241 = vpack.c.b16 %v2238, %v2237
        %v2242 = vpack.c.b16 %v2240, %v2239
        %2245 = vmatprep.subr.bf16.mxu0 0
        %2246 = vmatpush1.bf16.msra.mxu0 %v2241
        %2247 = vmatprep.subr.bf16.mxu0 0
        %2248 = vmatpush1.bf16.msra.mxu0 %v2242
        %2249 = vmatprep.subr.bf16.mxu0 0
        %2250 = vmatpush1.bf16.msra.mxu0 0
        %2251 = vmatprep.subr.bf16.mxu0 0
        %2252 = vmatpush1.bf16.msra.mxu0 0
        %2253 = vmatprep.subr.bf16.mxu0 0
        %2254 = vmatpush1.bf16.msra.mxu0 0
        %2255 = vmatprep.subr.bf16.mxu0 0
        %2256 = vmatpush1.bf16.msra.mxu0 0
        %2257 = vmatprep.subr.bf16.mxu0 0
        %2258 = vmatpush1.bf16.msra.mxu0 0
        %2259 = vmatprep.subr.bf16.mxu0 0
        %2260 = vmatpush1.bf16.msra.mxu0 0
        %2261 = vmatprep.subr.bf16.mxu0 0
        %2262 = vmatpush1.bf16.msra.mxu0 0
        %2263 = vmatprep.subr.bf16.mxu0 0
        %2264 = vmatpush1.bf16.msra.mxu0 0
        %2265 = vmatprep.subr.bf16.mxu0 0
        %2266 = vmatpush1.bf16.msra.mxu0 0
        %2267 = vmatprep.subr.bf16.mxu0 0
        %2268 = vmatpush1.bf16.msra.mxu0 0
        %2269 = vmatprep.subr.bf16.mxu0 0
        %2270 = vmatpush1.bf16.msra.mxu0 0
        %2271 = vmatprep.subr.bf16.mxu0 0
        %2272 = vmatpush1.bf16.msra.mxu0 0
        %2273 = vmatprep.subr.bf16.mxu0 0
        %2274 = vmatpush1.bf16.msra.mxu0 0
        %2275 = vmatprep.subr.bf16.mxu0 0
        %2276 = vmatpush1.bf16.msra.mxu0 0
        %2277 = vmatprep.mubr.bf16.mxu0 0
        %2278 = vmatmul.mubr.bf16.gmra.mrb[0].mxu0 %v1111
        %v2279 = vpop.f32.mrb[0].mxu0
        %v2280 = vadd.f32 0.0, %v2279
        %v2281 = vpop.f32.mrb[0].mxu0
        %v2282 = vpop.f32.mrb[0].mxu0
        %v2283 = vadd.f32 0.0, %v2282
        %v2284 = vpop.f32.mrb[0].mxu0
        %2285 = vmatprep.mubr.bf16.mxu0 0
        %2286 = vmatmul.mubr.bf16.gmra.mrb[0].mxu0 %v1114
        %v2287 = vpop.f32.mrb[0].mxu0
        %v2288 = vadd.f32 0.0, %v2287
        %v2289 = vpop.f32.mrb[0].mxu0
        %v2290 = vpop.f32.mrb[0].mxu0
        %v2291 = vadd.f32 0.0, %v2290
        %v2292 = vpop.f32.mrb[0].mxu0
        %2293 = vdwg.mxu0
        %v2294 = vadd.f32 %v2224, %v2280
        %v2295 = vadd.f32 %v2225, %v2283
        %v2296 = vadd.f32 %v2226, %v2288
        %v2297 = vadd.f32 %v2227, %v2291
        %s2298 = scalar_lea.vmem %s1, 384
        %v2299 = vld [vmem:[%s2298] sm:$0xf]
        %v2300 = vld [vmem:[%s2298 + $0x4] sm:$0xf]
        %v2301 = vld [vmem:[%s2298 + $0x8] sm:$0xf]
        %v2302 = vld [vmem:[%s2298 + $0xc] sm:$0xf]
        %v2307 = vunpack.c.l.b16 %v2299
        %v2308 = vunpack.c.l.b16 %v2300
        %v2309 = vunpack.c.l.b16 %v2301
        %v2310 = vunpack.c.l.b16 %v2302
        %v2311 = vpack.c.b16 %v2308, %v2307
        %v2312 = vpack.c.b16 %v2310, %v2309
        %2315 = vmatprep.subr.bf16.mxu0 0
        %2316 = vmatpush1.bf16.msra.mxu0 %v2311
        %2317 = vmatprep.subr.bf16.mxu0 0
        %2318 = vmatpush1.bf16.msra.mxu0 %v2312
        %2319 = vmatprep.subr.bf16.mxu0 0
        %2320 = vmatpush1.bf16.msra.mxu0 0
        %2321 = vmatprep.subr.bf16.mxu0 0
        %2322 = vmatpush1.bf16.msra.mxu0 0
        %2323 = vmatprep.subr.bf16.mxu0 0
        %2324 = vmatpush1.bf16.msra.mxu0 0
        %2325 = vmatprep.subr.bf16.mxu0 0
        %2326 = vmatpush1.bf16.msra.mxu0 0
        %2327 = vmatprep.subr.bf16.mxu0 0
        %2328 = vmatpush1.bf16.msra.mxu0 0
        %2329 = vmatprep.subr.bf16.mxu0 0
        %2330 = vmatpush1.bf16.msra.mxu0 0
        %2331 = vmatprep.subr.bf16.mxu0 0
        %2332 = vmatpush1.bf16.msra.mxu0 0
        %2333 = vmatprep.subr.bf16.mxu0 0
        %2334 = vmatpush1.bf16.msra.mxu0 0
        %2335 = vmatprep.subr.bf16.mxu0 0
        %2336 = vmatpush1.bf16.msra.mxu0 0
        %2337 = vmatprep.subr.bf16.mxu0 0
        %2338 = vmatpush1.bf16.msra.mxu0 0
        %2339 = vmatprep.subr.bf16.mxu0 0
        %2340 = vmatpush1.bf16.msra.mxu0 0
        %2341 = vmatprep.subr.bf16.mxu0 0
        %2342 = vmatpush1.bf16.msra.mxu0 0
        %2343 = vmatprep.subr.bf16.mxu0 0
        %2344 = vmatpush1.bf16.msra.mxu0 0
        %2345 = vmatprep.subr.bf16.mxu0 0
        %2346 = vmatpush1.bf16.msra.mxu0 0
        %2347 = vmatprep.mubr.bf16.mxu0 0
        %2348 = vmatmul.mubr.bf16.gmra.mrb[0].mxu0 %v1193
        %v2349 = vpop.f32.mrb[0].mxu0
        %v2350 = vadd.f32 0.0, %v2349
        %v2351 = vpop.f32.mrb[0].mxu0
        %v2352 = vpop.f32.mrb[0].mxu0
        %v2353 = vadd.f32 0.0, %v2352
        %v2354 = vpop.f32.mrb[0].mxu0
        %2355 = vmatprep.mubr.bf16.mxu0 0
        %2356 = vmatmul.mubr.bf16.gmra.mrb[0].mxu0 %v1196
        %v2357 = vpop.f32.mrb[0].mxu0
        %v2358 = vadd.f32 0.0, %v2357
        %v2359 = vpop.f32.mrb[0].mxu0
        %v2360 = vpop.f32.mrb[0].mxu0
        %v2361 = vadd.f32 0.0, %v2360
        %v2362 = vpop.f32.mrb[0].mxu0
        %2363 = vdwg.mxu0
        %v2364 = vadd.f32 %v2294, %v2350
        %v2365 = vadd.f32 %v2295, %v2353
        %v2366 = vadd.f32 %v2296, %v2358
        %v2367 = vadd.f32 %v2297, %v2361
        %s2368 = scalar_lea.vmem %s1, 400
        %v2369 = vld [vmem:[%s2368] sm:$0xf]
        %v2370 = vld [vmem:[%s2368 + $0x4] sm:$0xf]
        %v2371 = vld [vmem:[%s2368 + $0x8] sm:$0xf]
        %v2372 = vld [vmem:[%s2368 + $0xc] sm:$0xf]
        %v2377 = vunpack.c.l.b16 %v2369
        %v2378 = vunpack.c.l.b16 %v2370
        %v2379 = vunpack.c.l.b16 %v2371
        %v2380 = vunpack.c.l.b16 %v2372
        %v2381 = vpack.c.b16 %v2378, %v2377
        %v2382 = vpack.c.b16 %v2380, %v2379
        %2385 = vmatprep.subr.bf16.mxu0 0
        %2386 = vmatpush1.bf16.msra.mxu0 %v2381
        %2387 = vmatprep.subr.bf16.mxu0 0
        %2388 = vmatpush1.bf16.msra.mxu0 %v2382
        %2389 = vmatprep.subr.bf16.mxu0 0
        %2390 = vmatpush1.bf16.msra.mxu0 0
        %2391 = vmatprep.subr.bf16.mxu0 0
        %2392 = vmatpush1.bf16.msra.mxu0 0
        %2393 = vmatprep.subr.bf16.mxu0 0
        %2394 = vmatpush1.bf16.msra.mxu0 0
        %2395 = vmatprep.subr.bf16.mxu0 0
        %2396 = vmatpush1.bf16.msra.mxu0 0
        %2397 = vmatprep.subr.bf16.mxu0 0
        %2398 = vmatpush1.bf16.msra.mxu0 0
        %2399 = vmatprep.subr.bf16.mxu0 0
        %2400 = vmatpush1.bf16.msra.mxu0 0
        %2401 = vmatprep.subr.bf16.mxu0 0
        %2402 = vmatpush1.bf16.msra.mxu0 0
        %2403 = vmatprep.subr.bf16.mxu0 0
        %2404 = vmatpush1.bf16.msra.mxu0 0
        %2405 = vmatprep.subr.bf16.mxu0 0
        %2406 = vmatpush1.bf16.msra.mxu0 0
        %2407 = vmatprep.subr.bf16.mxu0 0
        %2408 = vmatpush1.bf16.msra.mxu0 0
        %2409 = vmatprep.subr.bf16.mxu0 0
        %2410 = vmatpush1.bf16.msra.mxu0 0
        %2411 = vmatprep.subr.bf16.mxu0 0
        %2412 = vmatpush1.bf16.msra.mxu0 0
        %2413 = vmatprep.subr.bf16.mxu0 0
        %2414 = vmatpush1.bf16.msra.mxu0 0
        %2415 = vmatprep.subr.bf16.mxu0 0
        %2416 = vmatpush1.bf16.msra.mxu0 0
        %2417 = vmatprep.mubr.bf16.mxu0 0
        %2418 = vmatmul.mubr.bf16.gmra.mrb[0].mxu0 %v1275
        %v2419 = vpop.f32.mrb[0].mxu0
        %v2420 = vadd.f32 0.0, %v2419
        %v2421 = vpop.f32.mrb[0].mxu0
        %v2422 = vpop.f32.mrb[0].mxu0
        %v2423 = vadd.f32 0.0, %v2422
        %v2424 = vpop.f32.mrb[0].mxu0
        %2425 = vmatprep.mubr.bf16.mxu0 0
        %2426 = vmatmul.mubr.bf16.gmra.mrb[0].mxu0 %v1278
        %v2427 = vpop.f32.mrb[0].mxu0
        %v2428 = vadd.f32 0.0, %v2427
        %v2429 = vpop.f32.mrb[0].mxu0
        %v2430 = vpop.f32.mrb[0].mxu0
        %v2431 = vadd.f32 0.0, %v2430
        %v2432 = vpop.f32.mrb[0].mxu0
        %2433 = vdwg.mxu0
        %v2434 = vadd.f32 %v2364, %v2420
        %v2435 = vadd.f32 %v2365, %v2423
        %v2436 = vadd.f32 %v2366, %v2428
        %v2437 = vadd.f32 %v2367, %v2431
        %s2438 = scalar_lea.vmem %s1, 416
        %v2439 = vld [vmem:[%s2438] sm:$0xf]
        %v2440 = vld [vmem:[%s2438 + $0x4] sm:$0xf]
        %v2441 = vld [vmem:[%s2438 + $0x8] sm:$0xf]
        %v2442 = vld [vmem:[%s2438 + $0xc] sm:$0xf]
        %v2447 = vunpack.c.l.b16 %v2439
        %v2448 = vunpack.c.l.b16 %v2440
        %v2449 = vunpack.c.l.b16 %v2441
        %v2450 = vunpack.c.l.b16 %v2442
        %v2451 = vpack.c.b16 %v2448, %v2447
        %v2452 = vpack.c.b16 %v2450, %v2449
        %2455 = vmatprep.subr.bf16.mxu0 0
        %2456 = vmatpush1.bf16.msra.mxu0 %v2451
        %2457 = vmatprep.subr.bf16.mxu0 0
        %2458 = vmatpush1.bf16.msra.mxu0 %v2452
        %2459 = vmatprep.subr.bf16.mxu0 0
        %2460 = vmatpush1.bf16.msra.mxu0 0
        %2461 = vmatprep.subr.bf16.mxu0 0
        %2462 = vmatpush1.bf16.msra.mxu0 0
        %2463 = vmatprep.subr.bf16.mxu0 0
        %2464 = vmatpush1.bf16.msra.mxu0 0
        %2465 = vmatprep.subr.bf16.mxu0 0
        %2466 = vmatpush1.bf16.msra.mxu0 0
        %2467 = vmatprep.subr.bf16.mxu0 0
        %2468 = vmatpush1.bf16.msra.mxu0 0
        %2469 = vmatprep.subr.bf16.mxu0 0
        %2470 = vmatpush1.bf16.msra.mxu0 0
        %2471 = vmatprep.subr.bf16.mxu0 0
        %2472 = vmatpush1.bf16.msra.mxu0 0
        %2473 = vmatprep.subr.bf16.mxu0 0
        %2474 = vmatpush1.bf16.msra.mxu0 0
        %2475 = vmatprep.subr.bf16.mxu0 0
        %2476 = vmatpush1.bf16.msra.mxu0 0
        %2477 = vmatprep.subr.bf16.mxu0 0
        %2478 = vmatpush1.bf16.msra.mxu0 0
        %2479 = vmatprep.subr.bf16.mxu0 0
        %2480 = vmatpush1.bf16.msra.mxu0 0
        %2481 = vmatprep.subr.bf16.mxu0 0
        %2482 = vmatpush1.bf16.msra.mxu0 0
        %2483 = vmatprep.subr.bf16.mxu0 0
        %2484 = vmatpush1.bf16.msra.mxu0 0
        %2485 = vmatprep.subr.bf16.mxu0 0
        %2486 = vmatpush1.bf16.msra.mxu0 0
        %2487 = vmatprep.mubr.bf16.mxu0 0
        %2488 = vmatmul.mubr.bf16.gmra.mrb[0].mxu0 %v1357
        %v2489 = vpop.f32.mrb[0].mxu0
        %v2490 = vadd.f32 0.0, %v2489
        %v2491 = vpop.f32.mrb[0].mxu0
        %v2492 = vpop.f32.mrb[0].mxu0
        %v2493 = vadd.f32 0.0, %v2492
        %v2494 = vpop.f32.mrb[0].mxu0
        %2495 = vmatprep.mubr.bf16.mxu0 0
        %2496 = vmatmul.mubr.bf16.gmra.mrb[0].mxu0 %v1360
        %v2497 = vpop.f32.mrb[0].mxu0
        %v2498 = vadd.f32 0.0, %v2497
        %v2499 = vpop.f32.mrb[0].mxu0
        %v2500 = vpop.f32.mrb[0].mxu0
        %v2501 = vadd.f32 0.0, %v2500
        %v2502 = vpop.f32.mrb[0].mxu0
        %2503 = vdwg.mxu0
        %v2504 = vadd.f32 %v2434, %v2490
        %v2505 = vadd.f32 %v2435, %v2493
        %v2506 = vadd.f32 %v2436, %v2498
        %v2507 = vadd.f32 %v2437, %v2501
        %s2508 = scalar_lea.vmem %s1, 432
        %v2509 = vld [vmem:[%s2508] sm:$0xf]
        %v2510 = vld [vmem:[%s2508 + $0x4] sm:$0xf]
        %v2511 = vld [vmem:[%s2508 + $0x8] sm:$0xf]
        %v2512 = vld [vmem:[%s2508 + $0xc] sm:$0xf]
        %v2517 = vunpack.c.l.b16 %v2509
        %v2518 = vunpack.c.l.b16 %v2510
        %v2519 = vunpack.c.l.b16 %v2511
        %v2520 = vunpack.c.l.b16 %v2512
        %v2521 = vpack.c.b16 %v2518, %v2517
        %v2522 = vpack.c.b16 %v2520, %v2519
        %2525 = vmatprep.subr.bf16.mxu0 0
        %2526 = vmatpush1.bf16.msra.mxu0 %v2521
        %2527 = vmatprep.subr.bf16.mxu0 0
        %2528 = vmatpush1.bf16.msra.mxu0 %v2522
        %2529 = vmatprep.subr.bf16.mxu0 0
        %2530 = vmatpush1.bf16.msra.mxu0 0
        %2531 = vmatprep.subr.bf16.mxu0 0
        %2532 = vmatpush1.bf16.msra.mxu0 0
        %2533 = vmatprep.subr.bf16.mxu0 0
        %2534 = vmatpush1.bf16.msra.mxu0 0
        %2535 = vmatprep.subr.bf16.mxu0 0
        %2536 = vmatpush1.bf16.msra.mxu0 0
        %2537 = vmatprep.subr.bf16.mxu0 0
        %2538 = vmatpush1.bf16.msra.mxu0 0
        %2539 = vmatprep.subr.bf16.mxu0 0
        %2540 = vmatpush1.bf16.msra.mxu0 0
        %2541 = vmatprep.subr.bf16.mxu0 0
        %2542 = vmatpush1.bf16.msra.mxu0 0
        %2543 = vmatprep.subr.bf16.mxu0 0
        %2544 = vmatpush1.bf16.msra.mxu0 0
        %2545 = vmatprep.subr.bf16.mxu0 0
        %2546 = vmatpush1.bf16.msra.mxu0 0
        %2547 = vmatprep.subr.bf16.mxu0 0
        %2548 = vmatpush1.bf16.msra.mxu0 0
        %2549 = vmatprep.subr.bf16.mxu0 0
        %2550 = vmatpush1.bf16.msra.mxu0 0
        %2551 = vmatprep.subr.bf16.mxu0 0
        %2552 = vmatpush1.bf16.msra.mxu0 0
        %2553 = vmatprep.subr.bf16.mxu0 0
        %2554 = vmatpush1.bf16.msra.mxu0 0
        %2555 = vmatprep.subr.bf16.mxu0 0
        %2556 = vmatpush1.bf16.msra.mxu0 0
        %2557 = vmatprep.mubr.bf16.mxu0 0
        %2558 = vmatmul.mubr.bf16.gmra.mrb[0].mxu0 %v1439
        %v2559 = vpop.f32.mrb[0].mxu0
        %v2560 = vadd.f32 0.0, %v2559
        %v2561 = vpop.f32.mrb[0].mxu0
        %v2562 = vpop.f32.mrb[0].mxu0
        %v2563 = vadd.f32 0.0, %v2562
        %v2564 = vpop.f32.mrb[0].mxu0
        %2565 = vmatprep.mubr.bf16.mxu0 0
        %2566 = vmatmul.mubr.bf16.gmra.mrb[0].mxu0 %v1442
        %v2567 = vpop.f32.mrb[0].mxu0
        %v2568 = vadd.f32 0.0, %v2567
        %v2569 = vpop.f32.mrb[0].mxu0
        %v2570 = vpop.f32.mrb[0].mxu0
        %v2571 = vadd.f32 0.0, %v2570
        %v2572 = vpop.f32.mrb[0].mxu0
        %2573 = vdwg.mxu0
        %v2574 = vadd.f32 %v2504, %v2560
        %v2575 = vadd.f32 %v2505, %v2563
        %v2576 = vadd.f32 %v2506, %v2568
        %v2577 = vadd.f32 %v2507, %v2571
        %s2578 = scalar_lea.vmem %s1, 448
        %v2579 = vld [vmem:[%s2578] sm:$0xf]
        %v2580 = vld [vmem:[%s2578 + $0x4] sm:$0xf]
        %v2581 = vld [vmem:[%s2578 + $0x8] sm:$0xf]
        %v2582 = vld [vmem:[%s2578 + $0xc] sm:$0xf]
        %v2587 = vunpack.c.l.b16 %v2579
        %v2588 = vunpack.c.l.b16 %v2580
        %v2589 = vunpack.c.l.b16 %v2581
        %v2590 = vunpack.c.l.b16 %v2582
        %v2591 = vpack.c.b16 %v2588, %v2587
        %v2592 = vpack.c.b16 %v2590, %v2589
        %2595 = vmatprep.subr.bf16.mxu0 0
        %2596 = vmatpush1.bf16.msra.mxu0 %v2591
        %2597 = vmatprep.subr.bf16.mxu0 0
        %2598 = vmatpush1.bf16.msra.mxu0 %v2592
        %2599 = vmatprep.subr.bf16.mxu0 0
        %2600 = vmatpush1.bf16.msra.mxu0 0
        %2601 = vmatprep.subr.bf16.mxu0 0
        %2602 = vmatpush1.bf16.msra.mxu0 0
        %2603 = vmatprep.subr.bf16.mxu0 0
        %2604 = vmatpush1.bf16.msra.mxu0 0
        %2605 = vmatprep.subr.bf16.mxu0 0
        %2606 = vmatpush1.bf16.msra.mxu0 0
        %2607 = vmatprep.subr.bf16.mxu0 0
        %2608 = vmatpush1.bf16.msra.mxu0 0
        %2609 = vmatprep.subr.bf16.mxu0 0
        %2610 = vmatpush1.bf16.msra.mxu0 0
        %2611 = vmatprep.subr.bf16.mxu0 0
        %2612 = vmatpush1.bf16.msra.mxu0 0
        %2613 = vmatprep.subr.bf16.mxu0 0
        %2614 = vmatpush1.bf16.msra.mxu0 0
        %2615 = vmatprep.subr.bf16.mxu0 0
        %2616 = vmatpush1.bf16.msra.mxu0 0
        %2617 = vmatprep.subr.bf16.mxu0 0
        %2618 = vmatpush1.bf16.msra.mxu0 0
        %2619 = vmatprep.subr.bf16.mxu0 0
        %2620 = vmatpush1.bf16.msra.mxu0 0
        %2621 = vmatprep.subr.bf16.mxu0 0
        %2622 = vmatpush1.bf16.msra.mxu0 0
        %2623 = vmatprep.subr.bf16.mxu0 0
        %2624 = vmatpush1.bf16.msra.mxu0 0
        %2625 = vmatprep.subr.bf16.mxu0 0
        %2626 = vmatpush1.bf16.msra.mxu0 0
        %2627 = vmatprep.mubr.bf16.mxu0 0
        %2628 = vmatmul.mubr.bf16.gmra.mrb[0].mxu0 %v1521
        %v2629 = vpop.f32.mrb[0].mxu0
        %v2630 = vadd.f32 0.0, %v2629
        %v2631 = vpop.f32.mrb[0].mxu0
        %v2632 = vpop.f32.mrb[0].mxu0
        %v2633 = vadd.f32 0.0, %v2632
        %v2634 = vpop.f32.mrb[0].mxu0
        %2635 = vmatprep.mubr.bf16.mxu0 0
        %2636 = vmatmul.mubr.bf16.gmra.mrb[0].mxu0 %v1524
        %v2637 = vpop.f32.mrb[0].mxu0
        %v2638 = vadd.f32 0.0, %v2637
        %v2639 = vpop.f32.mrb[0].mxu0
        %v2640 = vpop.f32.mrb[0].mxu0
        %v2641 = vadd.f32 0.0, %v2640
        %v2642 = vpop.f32.mrb[0].mxu0
        %2643 = vdwg.mxu0
        %v2644 = vadd.f32 %v2574, %v2630
        %v2645 = vadd.f32 %v2575, %v2633
        %v2646 = vadd.f32 %v2576, %v2638
        %v2647 = vadd.f32 %v2577, %v2641
        %s2648 = scalar_lea.vmem %s1, 464
        %v2649 = vld [vmem:[%s2648] sm:$0xf]
        %v2650 = vld [vmem:[%s2648 + $0x4] sm:$0xf]
        %v2651 = vld [vmem:[%s2648 + $0x8] sm:$0xf]
        %v2652 = vld [vmem:[%s2648 + $0xc] sm:$0xf]
        %v2657 = vunpack.c.l.b16 %v2649
        %v2658 = vunpack.c.l.b16 %v2650
        %v2659 = vunpack.c.l.b16 %v2651
        %v2660 = vunpack.c.l.b16 %v2652
        %v2661 = vpack.c.b16 %v2658, %v2657
        %v2662 = vpack.c.b16 %v2660, %v2659
        %2665 = vmatprep.subr.bf16.mxu0 0
        %2666 = vmatpush1.bf16.msra.mxu0 %v2661
        %2667 = vmatprep.subr.bf16.mxu0 0
        %2668 = vmatpush1.bf16.msra.mxu0 %v2662
        %2669 = vmatprep.subr.bf16.mxu0 0
        %2670 = vmatpush1.bf16.msra.mxu0 0
        %2671 = vmatprep.subr.bf16.mxu0 0
        %2672 = vmatpush1.bf16.msra.mxu0 0
        %2673 = vmatprep.subr.bf16.mxu0 0
        %2674 = vmatpush1.bf16.msra.mxu0 0
        %2675 = vmatprep.subr.bf16.mxu0 0
        %2676 = vmatpush1.bf16.msra.mxu0 0
        %2677 = vmatprep.subr.bf16.mxu0 0
        %2678 = vmatpush1.bf16.msra.mxu0 0
        %2679 = vmatprep.subr.bf16.mxu0 0
        %2680 = vmatpush1.bf16.msra.mxu0 0
        %2681 = vmatprep.subr.bf16.mxu0 0
        %2682 = vmatpush1.bf16.msra.mxu0 0
        %2683 = vmatprep.subr.bf16.mxu0 0
        %2684 = vmatpush1.bf16.msra.mxu0 0
        %2685 = vmatprep.subr.bf16.mxu0 0
        %2686 = vmatpush1.bf16.msra.mxu0 0
        %2687 = vmatprep.subr.bf16.mxu0 0
        %2688 = vmatpush1.bf16.msra.mxu0 0
        %2689 = vmatprep.subr.bf16.mxu0 0
        %2690 = vmatpush1.bf16.msra.mxu0 0
        %2691 = vmatprep.subr.bf16.mxu0 0
        %2692 = vmatpush1.bf16.msra.mxu0 0
        %2693 = vmatprep.subr.bf16.mxu0 0
        %2694 = vmatpush1.bf16.msra.mxu0 0
        %2695 = vmatprep.subr.bf16.mxu0 0
        %2696 = vmatpush1.bf16.msra.mxu0 0
        %2697 = vmatprep.mubr.bf16.mxu0 0
        %2698 = vmatmul.mubr.bf16.gmra.mrb[0].mxu0 %v1603
        %v2699 = vpop.f32.mrb[0].mxu0
        %v2700 = vadd.f32 0.0, %v2699
        %v2701 = vpop.f32.mrb[0].mxu0
        %v2702 = vpop.f32.mrb[0].mxu0
        %v2703 = vadd.f32 0.0, %v2702
        %v2704 = vpop.f32.mrb[0].mxu0
        %2705 = vmatprep.mubr.bf16.mxu0 0
        %2706 = vmatmul.mubr.bf16.gmra.mrb[0].mxu0 %v1606
        %v2707 = vpop.f32.mrb[0].mxu0
        %v2708 = vadd.f32 0.0, %v2707
        %v2709 = vpop.f32.mrb[0].mxu0
        %v2710 = vpop.f32.mrb[0].mxu0
        %v2711 = vadd.f32 0.0, %v2710
        %v2712 = vpop.f32.mrb[0].mxu0
        %2713 = vdwg.mxu0
        %v2714 = vadd.f32 %v2644, %v2700
        %v2715 = vadd.f32 %v2645, %v2703
        %v2716 = vadd.f32 %v2646, %v2708
        %v2717 = vadd.f32 %v2647, %v2711
        %v2718 = vadd.f32 %v2714, %v1666
        %v2719 = vadd.f32 %v2715, %v1666
        %v2720 = vadd.f32 %v2716, %v1666
        %v2721 = vadd.f32 %v2717, %v1666
        %v2722 = vmax.f32 %v2718, 0.0
        %v2723 = vmax.f32 %v2719, 0.0
        %v2724 = vmax.f32 %v2720, 0.0
        %v2725 = vmax.f32 %v2721, 0.0
        %v2726 = vmax.f32 %v1672, %v2722
        %v2727 = vmax.f32 %v1673, %v2723
        %v2728 = vmax.f32 %v1674, %v2724
        %v2729 = vmax.f32 %v1675, %v2725
        %v2730 = vpack.c.bf16 %v2727, %v2726
        %v2731 = vpack.c.bf16 %v2729, %v2728
        %v2732 = vld [vmem:[%s5] sm:$0xf]
        %v2733 = vld [vmem:[%s5 + $0x4] sm:$0x7]
        %v2736 = vunpack.c.l.b16 %v2732
        %v2737 = vunpack.c.l.b16 %v2733
        %v2738 = vpack.c.b16 %v2737, %v2736
        %vm2739 = vcmask 228352
        %v2741 = vsel %vm2739, %v2738, 0
        %vm2743 = vcmask 1045504
        %v2745 = vsel %vm2743, %v2731, 0
        %2747 = vmatprep.subr.bf16.mxu0 0
        %2748 = vmatpush1.bf16.msra.mxu0 %v2730
        %2749 = vmatprep.subr.bf16.mxu0 0
        %2750 = vmatpush1.bf16.msra.mxu0 %v2745
        %2751 = vmatprep.subr.bf16.mxu0 0
        %2752 = vmatpush1.bf16.msra.mxu0 0
        %2753 = vmatprep.subr.bf16.mxu0 0
        %2754 = vmatpush1.bf16.msra.mxu0 0
        %2755 = vmatprep.subr.bf16.mxu0 0
        %2756 = vmatpush1.bf16.msra.mxu0 0
        %2757 = vmatprep.subr.bf16.mxu0 0
        %2758 = vmatpush1.bf16.msra.mxu0 0
        %2759 = vmatprep.subr.bf16.mxu0 0
        %2760 = vmatpush1.bf16.msra.mxu0 0
        %2761 = vmatprep.subr.bf16.mxu0 0
        %2762 = vmatpush1.bf16.msra.mxu0 0
        %2763 = vmatprep.subr.bf16.mxu0 0
        %2764 = vmatpush1.bf16.msra.mxu0 0
        %2765 = vmatprep.subr.bf16.mxu0 0
        %2766 = vmatpush1.bf16.msra.mxu0 0
        %2767 = vmatprep.subr.bf16.mxu0 0
        %2768 = vmatpush1.bf16.msra.mxu0 0
        %2769 = vmatprep.subr.bf16.mxu0 0
        %2770 = vmatpush1.bf16.msra.mxu0 0
        %2771 = vmatprep.subr.bf16.mxu0 0
        %2772 = vmatpush1.bf16.msra.mxu0 0
        %2773 = vmatprep.subr.bf16.mxu0 0
        %2774 = vmatpush1.bf16.msra.mxu0 0
        %2775 = vmatprep.subr.bf16.mxu0 0
        %2776 = vmatpush1.bf16.msra.mxu0 0
        %2777 = vmatprep.subr.bf16.mxu0 0
        %2778 = vmatpush1.bf16.msra.mxu0 0
        %2779 = vmatprep.mubr.bf16.mxu0 0
        %2780 = vmatmul.mubr.bf16.gmra.mrb[0].mxu0 %v2741
        %v2781 = vpop.f32.mrb[0].mxu0
        %v2782 = vadd.f32 0.0, %v2781
        %v2783 = vpop.f32.mrb[0].mxu0
        %v2784 = vpop.f32.mrb[0].mxu0
        %v2785 = vadd.f32 0.0, %v2784
        %v2786 = vpop.f32.mrb[0].mxu0
        %2787 = vdwg.mxu0
        %s2788 = scalar_lea.vmem %s5, 8
        %v2789 = vld [vmem:[%s2788] sm:$0xf]
        %v2790 = vld [vmem:[%s2788 + $0x4] sm:$0x7]
        %v2793 = vunpack.c.l.b16 %v2789
        %v2794 = vunpack.c.l.b16 %v2790
        %v2795 = vpack.c.b16 %v2794, %v2793
        %v2797 = vsel %vm2739, %v2795, 0
        %2799 = vmatprep.subr.bf16.mxu0 0
        %2800 = vmatpush1.bf16.msra.mxu0 %v2730
        %2801 = vmatprep.subr.bf16.mxu0 0
        %2802 = vmatpush1.bf16.msra.mxu0 %v2745
        %2803 = vmatprep.subr.bf16.mxu0 0
        %2804 = vmatpush1.bf16.msra.mxu0 0
        %2805 = vmatprep.subr.bf16.mxu0 0
        %2806 = vmatpush1.bf16.msra.mxu0 0
        %2807 = vmatprep.subr.bf16.mxu0 0
        %2808 = vmatpush1.bf16.msra.mxu0 0
        %2809 = vmatprep.subr.bf16.mxu0 0
        %2810 = vmatpush1.bf16.msra.mxu0 0
        %2811 = vmatprep.subr.bf16.mxu0 0
        %2812 = vmatpush1.bf16.msra.mxu0 0
        %2813 = vmatprep.subr.bf16.mxu0 0
        %2814 = vmatpush1.bf16.msra.mxu0 0
        %2815 = vmatprep.subr.bf16.mxu0 0
        %2816 = vmatpush1.bf16.msra.mxu0 0
        %2817 = vmatprep.subr.bf16.mxu0 0
        %2818 = vmatpush1.bf16.msra.mxu0 0
        %2819 = vmatprep.subr.bf16.mxu0 0
        %2820 = vmatpush1.bf16.msra.mxu0 0
        %2821 = vmatprep.subr.bf16.mxu0 0
        %2822 = vmatpush1.bf16.msra.mxu0 0
        %2823 = vmatprep.subr.bf16.mxu0 0
        %2824 = vmatpush1.bf16.msra.mxu0 0
        %2825 = vmatprep.subr.bf16.mxu0 0
        %2826 = vmatpush1.bf16.msra.mxu0 0
        %2827 = vmatprep.subr.bf16.mxu0 0
        %2828 = vmatpush1.bf16.msra.mxu0 0
        %2829 = vmatprep.subr.bf16.mxu0 0
        %2830 = vmatpush1.bf16.msra.mxu0 0
        %2831 = vmatprep.mubr.bf16.mxu0 0
        %2832 = vmatmul.mubr.bf16.gmra.mrb[0].mxu0 %v2797
        %v2833 = vpop.f32.mrb[0].mxu0
        %v2834 = vadd.f32 0.0, %v2833
        %v2835 = vpop.f32.mrb[0].mxu0
        %v2836 = vpop.f32.mrb[0].mxu0
        %v2837 = vadd.f32 0.0, %v2836
        %v2838 = vpop.f32.mrb[0].mxu0
        %2839 = vdwg.mxu0
        %v2840 = vmax.f32 %v2782, %v2834
        %v2841 = vmax.f32 %v2785, %v2837
        %v2842 = vpack.c.bf16 %v2841, %v2840
        %v2843 = vld [vmem:[%s3] sm:$0xf]
        %v2844 = vld [vmem:[%s3 + $0x4] sm:$0xf]
        %v2845 = vld [vmem:[%s3 + $0x8] sm:$0xf]
        %v2846 = vld [vmem:[%s3 + $0xc] sm:$0xf]
        %v2847 = vld [vmem:[%s3 + $0x10] sm:$0xf]
        %v2848 = vld [vmem:[%s3 + $0x14] sm:$0xf]
        %v2849 = vld [vmem:[%s3 + $0x18] sm:$0xf]
        %v2850 = vld [vmem:[%s3 + $0x1c] sm:$0xf]
        %v2851 = vld [vmem:[%s3 + $0x20] sm:$0xf]
        %v2852 = vld [vmem:[%s3 + $0x24] sm:$0xf]
        %v2853 = vld [vmem:[%s3 + $0x28] sm:$0x3]
        %s2854 = scalar_lea.vmem %s3, 44
        %v2855 = vld [vmem:[%s2854] sm:$0xf]
        %v2856 = vld [vmem:[%s2854 + $0x4] sm:$0xf]
        %v2857 = vld [vmem:[%s2854 + $0x8] sm:$0xf]
        %v2858 = vld [vmem:[%s2854 + $0xc] sm:$0xf]
        %v2859 = vld [vmem:[%s2854 + $0x10] sm:$0xf]
        %v2860 = vld [vmem:[%s2854 + $0x14] sm:$0xf]
        %v2861 = vld [vmem:[%s2854 + $0x18] sm:$0xf]
        %v2862 = vld [vmem:[%s2854 + $0x1c] sm:$0xf]
        %v2863 = vld [vmem:[%s2854 + $0x20] sm:$0xf]
        %v2864 = vld [vmem:[%s2854 + $0x24] sm:$0xf]
        %v2865 = vld [vmem:[%s2854 + $0x28] sm:$0x3]
        %v2867 = vshrl.u32 %v2842, 16
        %v2869 = vshll.u32 %v2842, 16
        %v2871 = vrot.slane %v2869, 1
        %v2872 = vor.u32 %v2867, %v2871
        %v2884 = vunpack.c.l.b16 %v2855
        %v2885 = vunpack.c.l.b16 %v2856
        %v2886 = vunpack.c.l.b16 %v2857
        %v2887 = vunpack.c.l.b16 %v2858
        %v2888 = vunpack.c.l.b16 %v2859
        %v2889 = vunpack.c.l.b16 %v2860
        %v2890 = vunpack.c.l.b16 %v2861
        %v2891 = vunpack.c.l.b16 %v2862
        %v2892 = vunpack.c.l.b16 %v2863
        %v2893 = vunpack.c.l.b16 %v2864
        %v2894 = vunpack.c.l.b16 %v2865
        %v2895 = vpack.c.b16 %v2885, %v2884
        %v2896 = vpack.c.b16 %v2887, %v2886
        %v2897 = vpack.c.b16 %v2889, %v2888
        %v2898 = vpack.c.b16 %v2891, %v2890
        %v2899 = vpack.c.b16 %v2893, %v2892
        %v2900 = vpack.c.b16 %v2894, %v2894
        %vm2906 = vcmask 687104
        %v2908 = vsel %vm2906, %v2872, 0
        %vm2910 = vcmask 1041408
        %v2912 = vsel %vm2910, %v2900, 0
        %2914 = vmatprep.subr.bf16.mxu0 0
        %2915 = vmatpush1.bf16.msra.mxu0 %v2895
        %2916 = vmatprep.subr.bf16.mxu0 0
        %2917 = vmatpush1.bf16.msra.mxu0 %v2896
        %2918 = vmatprep.subr.bf16.mxu0 0
        %2919 = vmatpush1.bf16.msra.mxu0 %v2897
        %2920 = vmatprep.subr.bf16.mxu0 0
        %2921 = vmatpush1.bf16.msra.mxu0 %v2898
        %2922 = vmatprep.subr.bf16.mxu0 0
        %2923 = vmatpush1.bf16.msra.mxu0 %v2899
        %2924 = vmatprep.subr.bf16.mxu0 0
        %2925 = vmatpush1.bf16.msra.mxu0 %v2912
        %2926 = vmatprep.subr.bf16.mxu0 0
        %2927 = vmatpush1.bf16.msra.mxu0 0
        %2928 = vmatprep.subr.bf16.mxu0 0
        %2929 = vmatpush1.bf16.msra.mxu0 0
        %2930 = vmatprep.subr.bf16.mxu0 0
        %2931 = vmatpush1.bf16.msra.mxu0 0
        %2932 = vmatprep.subr.bf16.mxu0 0
        %2933 = vmatpush1.bf16.msra.mxu0 0
        %2934 = vmatprep.subr.bf16.mxu0 0
        %2935 = vmatpush1.bf16.msra.mxu0 0
        %2936 = vmatprep.subr.bf16.mxu0 0
        %2937 = vmatpush1.bf16.msra.mxu0 0
        %2938 = vmatprep.subr.bf16.mxu0 0
        %2939 = vmatpush1.bf16.msra.mxu0 0
        %2940 = vmatprep.subr.bf16.mxu0 0
        %2941 = vmatpush1.bf16.msra.mxu0 0
        %2942 = vmatprep.subr.bf16.mxu0 0
        %2943 = vmatpush1.bf16.msra.mxu0 0
        %2944 = vmatprep.subr.bf16.mxu0 0
        %2945 = vmatpush1.bf16.msra.mxu0 0
        %2946 = vmatprep.mubr.bf16.mxu0 0
        %2947 = vmatmul.mubr.bf16.gmra.mrb[0].mxu0 %v2908
        %v2948 = vpop.f32.mrb[0].mxu0
        %v2949 = vadd.f32 0.0, %v2948
        %v2950 = vpop.f32.mrb[0].mxu0
        %v2951 = vpop.f32.mrb[0].mxu0
        %v2952 = vadd.f32 0.0, %v2951
        %v2953 = vpop.f32.mrb[0].mxu0
        %2954 = vdwg.mxu0
        %v2966 = vunpack.c.l.b16 %v2843
        %v2967 = vunpack.c.l.b16 %v2844
        %v2968 = vunpack.c.l.b16 %v2845
        %v2969 = vunpack.c.l.b16 %v2846
        %v2970 = vunpack.c.l.b16 %v2847
        %v2971 = vunpack.c.l.b16 %v2848
        %v2972 = vunpack.c.l.b16 %v2849
        %v2973 = vunpack.c.l.b16 %v2850
        %v2974 = vunpack.c.l.b16 %v2851
        %v2975 = vunpack.c.l.b16 %v2852
        %v2976 = vunpack.c.l.b16 %v2853
        %v2977 = vpack.c.b16 %v2967, %v2966
        %v2978 = vpack.c.b16 %v2969, %v2968
        %v2979 = vpack.c.b16 %v2971, %v2970
        %v2980 = vpack.c.b16 %v2973, %v2972
        %v2981 = vpack.c.b16 %v2975, %v2974
        %v2982 = vpack.c.b16 %v2976, %v2976
        %v2988 = vsel %vm2906, %v2842, 0
        %v2991 = vsel %vm2910, %v2982, 0
        %2993 = vmatprep.subr.bf16.mxu0 0
        %2994 = vmatpush1.bf16.msra.mxu0 %v2977
        %2995 = vmatprep.subr.bf16.mxu0 0
        %2996 = vmatpush1.bf16.msra.mxu0 %v2978
        %2997 = vmatprep.subr.bf16.mxu0 0
        %2998 = vmatpush1.bf16.msra.mxu0 %v2979
        %2999 = vmatprep.subr.bf16.mxu0 0
        %3000 = vmatpush1.bf16.msra.mxu0 %v2980
        %3001 = vmatprep.subr.bf16.mxu0 0
        %3002 = vmatpush1.bf16.msra.mxu0 %v2981
        %3003 = vmatprep.subr.bf16.mxu0 0
        %3004 = vmatpush1.bf16.msra.mxu0 %v2991
        %3005 = vmatprep.subr.bf16.mxu0 0
        %3006 = vmatpush1.bf16.msra.mxu0 0
        %3007 = vmatprep.subr.bf16.mxu0 0
        %3008 = vmatpush1.bf16.msra.mxu0 0
        %3009 = vmatprep.subr.bf16.mxu0 0
        %3010 = vmatpush1.bf16.msra.mxu0 0
        %3011 = vmatprep.subr.bf16.mxu0 0
        %3012 = vmatpush1.bf16.msra.mxu0 0
        %3013 = vmatprep.subr.bf16.mxu0 0
        %3014 = vmatpush1.bf16.msra.mxu0 0
        %3015 = vmatprep.subr.bf16.mxu0 0
        %3016 = vmatpush1.bf16.msra.mxu0 0
        %3017 = vmatprep.subr.bf16.mxu0 0
        %3018 = vmatpush1.bf16.msra.mxu0 0
        %3019 = vmatprep.subr.bf16.mxu0 0
        %3020 = vmatpush1.bf16.msra.mxu0 0
        %3021 = vmatprep.subr.bf16.mxu0 0
        %3022 = vmatpush1.bf16.msra.mxu0 0
        %3023 = vmatprep.subr.bf16.mxu0 0
        %3024 = vmatpush1.bf16.msra.mxu0 0
        %3025 = vmatprep.mubr.bf16.mxu0 0
        %3026 = vmatmul.mubr.bf16.gmra.mrb[0].mxu0 %v2988
        %v3027 = vpop.f32.mrb[0].mxu0
        %v3028 = vadd.f32 %v2949, %v3027
        %v3029 = vpop.f32.mrb[0].mxu0
        %v3030 = vpop.f32.mrb[0].mxu0
        %v3031 = vadd.f32 %v2952, %v3030
        %v3032 = vpop.f32.mrb[0].mxu0
        %3033 = vdwg.mxu0
        %s3034 = scalar_lea.vmem %s3, 88
        %v3035 = vld [vmem:[%s3034] sm:$0xf]
        %v3036 = vld [vmem:[%s3034 + $0x4] sm:$0xf]
        %v3037 = vld [vmem:[%s3034 + $0x8] sm:$0xf]
        %v3038 = vld [vmem:[%s3034 + $0xc] sm:$0xf]
        %v3039 = vld [vmem:[%s3034 + $0x10] sm:$0xf]
        %v3040 = vld [vmem:[%s3034 + $0x14] sm:$0xf]
        %v3041 = vld [vmem:[%s3034 + $0x18] sm:$0xf]
        %v3042 = vld [vmem:[%s3034 + $0x1c] sm:$0xf]
        %v3043 = vld [vmem:[%s3034 + $0x20] sm:$0xf]
        %v3044 = vld [vmem:[%s3034 + $0x24] sm:$0xf]
        %v3045 = vld [vmem:[%s3034 + $0x28] sm:$0x3]
        %v3047 = vrot.slane %v2842, 1
        %v3059 = vunpack.c.l.b16 %v3035
        %v3060 = vunpack.c.l.b16 %v3036
        %v3061 = vunpack.c.l.b16 %v3037
        %v3062 = vunpack.c.l.b16 %v3038
        %v3063 = vunpack.c.l.b16 %v3039
        %v3064 = vunpack.c.l.b16 %v3040
        %v3065 = vunpack.c.l.b16 %v3041
        %v3066 = vunpack.c.l.b16 %v3042
        %v3067 = vunpack.c.l.b16 %v3043
        %v3068 = vunpack.c.l.b16 %v3044
        %v3069 = vunpack.c.l.b16 %v3045
        %v3070 = vpack.c.b16 %v3060, %v3059
        %v3071 = vpack.c.b16 %v3062, %v3061
        %v3072 = vpack.c.b16 %v3064, %v3063
        %v3073 = vpack.c.b16 %v3066, %v3065
        %v3074 = vpack.c.b16 %v3068, %v3067
        %v3075 = vpack.c.b16 %v3069, %v3069
        %v3082 = vsel %vm2906, %v3047, 0
        %v3085 = vsel %vm2910, %v3075, 0
        %3087 = vmatprep.subr.bf16.mxu0 0
        %3088 = vmatpush1.bf16.msra.mxu0 %v3070
        %3089 = vmatprep.subr.bf16.mxu0 0
        %3090 = vmatpush1.bf16.msra.mxu0 %v3071
        %3091 = vmatprep.subr.bf16.mxu0 0
        %3092 = vmatpush1.bf16.msra.mxu0 %v3072
        %3093 = vmatprep.subr.bf16.mxu0 0
        %3094 = vmatpush1.bf16.msra.mxu0 %v3073
        %3095 = vmatprep.subr.bf16.mxu0 0
        %3096 = vmatpush1.bf16.msra.mxu0 %v3074
        %3097 = vmatprep.subr.bf16.mxu0 0
        %3098 = vmatpush1.bf16.msra.mxu0 %v3085
        %3099 = vmatprep.subr.bf16.mxu0 0
        %3100 = vmatpush1.bf16.msra.mxu0 0
        %3101 = vmatprep.subr.bf16.mxu0 0
        %3102 = vmatpush1.bf16.msra.mxu0 0
        %3103 = vmatprep.subr.bf16.mxu0 0
        %3104 = vmatpush1.bf16.msra.mxu0 0
        %3105 = vmatprep.subr.bf16.mxu0 0
        %3106 = vmatpush1.bf16.msra.mxu0 0
        %3107 = vmatprep.subr.bf16.mxu0 0
        %3108 = vmatpush1.bf16.msra.mxu0 0
        %3109 = vmatprep.subr.bf16.mxu0 0
        %3110 = vmatpush1.bf16.msra.mxu0 0
        %3111 = vmatprep.subr.bf16.mxu0 0
        %3112 = vmatpush1.bf16.msra.mxu0 0
        %3113 = vmatprep.subr.bf16.mxu0 0
        %3114 = vmatpush1.bf16.msra.mxu0 0
        %3115 = vmatprep.subr.bf16.mxu0 0
        %3116 = vmatpush1.bf16.msra.mxu0 0
        %3117 = vmatprep.subr.bf16.mxu0 0
        %3118 = vmatpush1.bf16.msra.mxu0 0
        %3119 = vmatprep.mubr.bf16.mxu0 0
        %3120 = vmatmul.mubr.bf16.gmra.mrb[0].mxu0 %v3082
        %v3121 = vpop.f32.mrb[0].mxu0
        %v3122 = vadd.f32 0.0, %v3121
        %v3123 = vpop.f32.mrb[0].mxu0
        %v3124 = vpop.f32.mrb[0].mxu0
        %v3125 = vadd.f32 0.0, %v3124
        %v3126 = vpop.f32.mrb[0].mxu0
        %3127 = vdwg.mxu0
        %v3128 = vadd.f32 %v3028, %v3122
        %v3129 = vadd.f32 %v3031, %v3125
        %s3130 = scalar_lea.vmem %s3, 132
        %v3131 = vld [vmem:[%s3130] sm:$0xf]
        %v3132 = vld [vmem:[%s3130 + $0x4] sm:$0xf]
        %v3133 = vld [vmem:[%s3130 + $0x8] sm:$0xf]
        %v3134 = vld [vmem:[%s3130 + $0xc] sm:$0xf]
        %v3135 = vld [vmem:[%s3130 + $0x10] sm:$0xf]
        %v3136 = vld [vmem:[%s3130 + $0x14] sm:$0xf]
        %v3137 = vld [vmem:[%s3130 + $0x18] sm:$0xf]
        %v3138 = vld [vmem:[%s3130 + $0x1c] sm:$0xf]
        %v3139 = vld [vmem:[%s3130 + $0x20] sm:$0xf]
        %v3140 = vld [vmem:[%s3130 + $0x24] sm:$0xf]
        %v3141 = vld [vmem:[%s3130 + $0x28] sm:$0x3]
        %v3142 = vrot.slane %v2867, 1
        %v3143 = vrot.slane %v2869, 2
        %v3144 = vor.u32 %v3142, %v3143
        %v3156 = vunpack.c.l.b16 %v3131
        %v3157 = vunpack.c.l.b16 %v3132
        %v3158 = vunpack.c.l.b16 %v3133
        %v3159 = vunpack.c.l.b16 %v3134
        %v3160 = vunpack.c.l.b16 %v3135
        %v3161 = vunpack.c.l.b16 %v3136
        %v3162 = vunpack.c.l.b16 %v3137
        %v3163 = vunpack.c.l.b16 %v3138
        %v3164 = vunpack.c.l.b16 %v3139
        %v3165 = vunpack.c.l.b16 %v3140
        %v3166 = vunpack.c.l.b16 %v3141
        %v3167 = vpack.c.b16 %v3157, %v3156
        %v3168 = vpack.c.b16 %v3159, %v3158
        %v3169 = vpack.c.b16 %v3161, %v3160
        %v3170 = vpack.c.b16 %v3163, %v3162
        %v3171 = vpack.c.b16 %v3165, %v3164
        %v3172 = vpack.c.b16 %v3166, %v3166
        %v3179 = vsel %vm2906, %v3144, 0
        %v3182 = vsel %vm2910, %v3172, 0
        %3184 = vmatprep.subr.bf16.mxu0 0
        %3185 = vmatpush1.bf16.msra.mxu0 %v3167
        %3186 = vmatprep.subr.bf16.mxu0 0
        %3187 = vmatpush1.bf16.msra.mxu0 %v3168
        %3188 = vmatprep.subr.bf16.mxu0 0
        %3189 = vmatpush1.bf16.msra.mxu0 %v3169
        %3190 = vmatprep.subr.bf16.mxu0 0
        %3191 = vmatpush1.bf16.msra.mxu0 %v3170
        %3192 = vmatprep.subr.bf16.mxu0 0
        %3193 = vmatpush1.bf16.msra.mxu0 %v3171
        %3194 = vmatprep.subr.bf16.mxu0 0
        %3195 = vmatpush1.bf16.msra.mxu0 %v3182
        %3196 = vmatprep.subr.bf16.mxu0 0
        %3197 = vmatpush1.bf16.msra.mxu0 0
        %3198 = vmatprep.subr.bf16.mxu0 0
        %3199 = vmatpush1.bf16.msra.mxu0 0
        %3200 = vmatprep.subr.bf16.mxu0 0
        %3201 = vmatpush1.bf16.msra.mxu0 0
        %3202 = vmatprep.subr.bf16.mxu0 0
        %3203 = vmatpush1.bf16.msra.mxu0 0
        %3204 = vmatprep.subr.bf16.mxu0 0
        %3205 = vmatpush1.bf16.msra.mxu0 0
        %3206 = vmatprep.subr.bf16.mxu0 0
        %3207 = vmatpush1.bf16.msra.mxu0 0
        %3208 = vmatprep.subr.bf16.mxu0 0
        %3209 = vmatpush1.bf16.msra.mxu0 0
        %3210 = vmatprep.subr.bf16.mxu0 0
        %3211 = vmatpush1.bf16.msra.mxu0 0
        %3212 = vmatprep.subr.bf16.mxu0 0
        %3213 = vmatpush1.bf16.msra.mxu0 0
        %3214 = vmatprep.subr.bf16.mxu0 0
        %3215 = vmatpush1.bf16.msra.mxu0 0
        %3216 = vmatprep.mubr.bf16.mxu0 0
        %3217 = vmatmul.mubr.bf16.gmra.mrb[0].mxu0 %v3179
        %v3218 = vpop.f32.mrb[0].mxu0
        %v3219 = vadd.f32 0.0, %v3218
        %v3220 = vpop.f32.mrb[0].mxu0
        %v3221 = vpop.f32.mrb[0].mxu0
        %v3222 = vadd.f32 0.0, %v3221
        %v3223 = vpop.f32.mrb[0].mxu0
        %3224 = vdwg.mxu0
        %v3225 = vadd.f32 %v3128, %v3219
        %v3226 = vadd.f32 %v3129, %v3222
        %s3227 = scalar_lea.vmem %s3, 176
        %v3228 = vld [vmem:[%s3227] sm:$0xf]
        %v3229 = vld [vmem:[%s3227 + $0x4] sm:$0xf]
        %v3230 = vld [vmem:[%s3227 + $0x8] sm:$0xf]
        %v3231 = vld [vmem:[%s3227 + $0xc] sm:$0xf]
        %v3232 = vld [vmem:[%s3227 + $0x10] sm:$0xf]
        %v3233 = vld [vmem:[%s3227 + $0x14] sm:$0xf]
        %v3234 = vld [vmem:[%s3227 + $0x18] sm:$0xf]
        %v3235 = vld [vmem:[%s3227 + $0x1c] sm:$0xf]
        %v3236 = vld [vmem:[%s3227 + $0x20] sm:$0xf]
        %v3237 = vld [vmem:[%s3227 + $0x24] sm:$0xf]
        %v3238 = vld [vmem:[%s3227 + $0x28] sm:$0x3]
        %v3239 = vrot.slane %v2842, 2
        %v3251 = vunpack.c.l.b16 %v3228
        %v3252 = vunpack.c.l.b16 %v3229
        %v3253 = vunpack.c.l.b16 %v3230
        %v3254 = vunpack.c.l.b16 %v3231
        %v3255 = vunpack.c.l.b16 %v3232
        %v3256 = vunpack.c.l.b16 %v3233
        %v3257 = vunpack.c.l.b16 %v3234
        %v3258 = vunpack.c.l.b16 %v3235
        %v3259 = vunpack.c.l.b16 %v3236
        %v3260 = vunpack.c.l.b16 %v3237
        %v3261 = vunpack.c.l.b16 %v3238
        %v3262 = vpack.c.b16 %v3252, %v3251
        %v3263 = vpack.c.b16 %v3254, %v3253
        %v3264 = vpack.c.b16 %v3256, %v3255
        %v3265 = vpack.c.b16 %v3258, %v3257
        %v3266 = vpack.c.b16 %v3260, %v3259
        %v3267 = vpack.c.b16 %v3261, %v3261
        %v3274 = vsel %vm2906, %v3239, 0
        %v3277 = vsel %vm2910, %v3267, 0
        %3279 = vmatprep.subr.bf16.mxu0 0
        %3280 = vmatpush1.bf16.msra.mxu0 %v3262
        %3281 = vmatprep.subr.bf16.mxu0 0
        %3282 = vmatpush1.bf16.msra.mxu0 %v3263
        %3283 = vmatprep.subr.bf16.mxu0 0
        %3284 = vmatpush1.bf16.msra.mxu0 %v3264
        %3285 = vmatprep.subr.bf16.mxu0 0
        %3286 = vmatpush1.bf16.msra.mxu0 %v3265
        %3287 = vmatprep.subr.bf16.mxu0 0
        %3288 = vmatpush1.bf16.msra.mxu0 %v3266
        %3289 = vmatprep.subr.bf16.mxu0 0
        %3290 = vmatpush1.bf16.msra.mxu0 %v3277
        %3291 = vmatprep.subr.bf16.mxu0 0
        %3292 = vmatpush1.bf16.msra.mxu0 0
        %3293 = vmatprep.subr.bf16.mxu0 0
        %3294 = vmatpush1.bf16.msra.mxu0 0
        %3295 = vmatprep.subr.bf16.mxu0 0
        %3296 = vmatpush1.bf16.msra.mxu0 0
        %3297 = vmatprep.subr.bf16.mxu0 0
        %3298 = vmatpush1.bf16.msra.mxu0 0
        %3299 = vmatprep.subr.bf16.mxu0 0
        %3300 = vmatpush1.bf16.msra.mxu0 0
        %3301 = vmatprep.subr.bf16.mxu0 0
        %3302 = vmatpush1.bf16.msra.mxu0 0
        %3303 = vmatprep.subr.bf16.mxu0 0
        %3304 = vmatpush1.bf16.msra.mxu0 0
        %3305 = vmatprep.subr.bf16.mxu0 0
        %3306 = vmatpush1.bf16.msra.mxu0 0
        %3307 = vmatprep.subr.bf16.mxu0 0
        %3308 = vmatpush1.bf16.msra.mxu0 0
        %3309 = vmatprep.subr.bf16.mxu0 0
        %3310 = vmatpush1.bf16.msra.mxu0 0
        %3311 = vmatprep.mubr.bf16.mxu0 0
        %3312 = vmatmul.mubr.bf16.gmra.mrb[0].mxu0 %v3274
        %v3313 = vpop.f32.mrb[0].mxu0
        %v3314 = vadd.f32 0.0, %v3313
        %v3315 = vpop.f32.mrb[0].mxu0
        %v3316 = vpop.f32.mrb[0].mxu0
        %v3317 = vadd.f32 0.0, %v3316
        %v3318 = vpop.f32.mrb[0].mxu0
        %3319 = vdwg.mxu0
        %v3320 = vadd.f32 %v3225, %v3314
        %v3321 = vadd.f32 %v3226, %v3317
        %v3322 = vld [vmem:[%s4] sm:$0x1]
        %v3324 = vlaneseq
        %v3325 = vshrl.u32 %v3324, 7
        %v3326 = vsub.s32 0, %v3325
        %v3327 = vrot.slane %v3322, %v3326
        %v3329 = vadd.f32 %v3320, %v3327
        %v3330 = vadd.f32 %v3321, %v3327
        %v3331 = vmax.f32 %v3329, 0.0
        %v3332 = vmax.f32 %v3330, 0.0
        %s3333 = scalar_lea.vmem %s3, 220
        %v3334 = vld [vmem:[%s3333] sm:$0xf]
        %v3335 = vld [vmem:[%s3333 + $0x4] sm:$0xf]
        %v3336 = vld [vmem:[%s3333 + $0x8] sm:$0xf]
        %v3337 = vld [vmem:[%s3333 + $0xc] sm:$0xf]
        %v3338 = vld [vmem:[%s3333 + $0x10] sm:$0xf]
        %v3339 = vld [vmem:[%s3333 + $0x14] sm:$0xf]
        %v3340 = vld [vmem:[%s3333 + $0x18] sm:$0xf]
        %v3341 = vld [vmem:[%s3333 + $0x1c] sm:$0xf]
        %v3342 = vld [vmem:[%s3333 + $0x20] sm:$0xf]
        %v3343 = vld [vmem:[%s3333 + $0x24] sm:$0xf]
        %v3344 = vld [vmem:[%s3333 + $0x28] sm:$0x3]
        %s3345 = scalar_lea.vmem %s3, 264
        %v3346 = vld [vmem:[%s3345] sm:$0xf]
        %v3347 = vld [vmem:[%s3345 + $0x4] sm:$0xf]
        %v3348 = vld [vmem:[%s3345 + $0x8] sm:$0xf]
        %v3349 = vld [vmem:[%s3345 + $0xc] sm:$0xf]
        %v3350 = vld [vmem:[%s3345 + $0x10] sm:$0xf]
        %v3351 = vld [vmem:[%s3345 + $0x14] sm:$0xf]
        %v3352 = vld [vmem:[%s3345 + $0x18] sm:$0xf]
        %v3353 = vld [vmem:[%s3345 + $0x1c] sm:$0xf]
        %v3354 = vld [vmem:[%s3345 + $0x20] sm:$0xf]
        %v3355 = vld [vmem:[%s3345 + $0x24] sm:$0xf]
        %v3356 = vld [vmem:[%s3345 + $0x28] sm:$0x3]
        %v3368 = vunpack.c.l.b16 %v3346
        %v3369 = vunpack.c.l.b16 %v3347
        %v3370 = vunpack.c.l.b16 %v3348
        %v3371 = vunpack.c.l.b16 %v3349
        %v3372 = vunpack.c.l.b16 %v3350
        %v3373 = vunpack.c.l.b16 %v3351
        %v3374 = vunpack.c.l.b16 %v3352
        %v3375 = vunpack.c.l.b16 %v3353
        %v3376 = vunpack.c.l.b16 %v3354
        %v3377 = vunpack.c.l.b16 %v3355
        %v3378 = vunpack.c.l.b16 %v3356
        %v3379 = vpack.c.b16 %v3369, %v3368
        %v3380 = vpack.c.b16 %v3371, %v3370
        %v3381 = vpack.c.b16 %v3373, %v3372
        %v3382 = vpack.c.b16 %v3375, %v3374
        %v3383 = vpack.c.b16 %v3377, %v3376
        %v3384 = vpack.c.b16 %v3378, %v3378
        %v3391 = vsel %vm2910, %v3384, 0
        %3393 = vmatprep.subr.bf16.mxu0 0
        %3394 = vmatpush1.bf16.msra.mxu0 %v3379
        %3395 = vmatprep.subr.bf16.mxu0 0
        %3396 = vmatpush1.bf16.msra.mxu0 %v3380
        %3397 = vmatprep.subr.bf16.mxu0 0
        %3398 = vmatpush1.bf16.msra.mxu0 %v3381
        %3399 = vmatprep.subr.bf16.mxu0 0
        %3400 = vmatpush1.bf16.msra.mxu0 %v3382
        %3401 = vmatprep.subr.bf16.mxu0 0
        %3402 = vmatpush1.bf16.msra.mxu0 %v3383
        %3403 = vmatprep.subr.bf16.mxu0 0
        %3404 = vmatpush1.bf16.msra.mxu0 %v3391
        %3405 = vmatprep.subr.bf16.mxu0 0
        %3406 = vmatpush1.bf16.msra.mxu0 0
        %3407 = vmatprep.subr.bf16.mxu0 0
        %3408 = vmatpush1.bf16.msra.mxu0 0
        %3409 = vmatprep.subr.bf16.mxu0 0
        %3410 = vmatpush1.bf16.msra.mxu0 0
        %3411 = vmatprep.subr.bf16.mxu0 0
        %3412 = vmatpush1.bf16.msra.mxu0 0
        %3413 = vmatprep.subr.bf16.mxu0 0
        %3414 = vmatpush1.bf16.msra.mxu0 0
        %3415 = vmatprep.subr.bf16.mxu0 0
        %3416 = vmatpush1.bf16.msra.mxu0 0
        %3417 = vmatprep.subr.bf16.mxu0 0
        %3418 = vmatpush1.bf16.msra.mxu0 0
        %3419 = vmatprep.subr.bf16.mxu0 0
        %3420 = vmatpush1.bf16.msra.mxu0 0
        %3421 = vmatprep.subr.bf16.mxu0 0
        %3422 = vmatpush1.bf16.msra.mxu0 0
        %3423 = vmatprep.subr.bf16.mxu0 0
        %3424 = vmatpush1.bf16.msra.mxu0 0
        %3425 = vmatprep.mubr.bf16.mxu0 0
        %3426 = vmatmul.mubr.bf16.gmra.mrb[0].mxu0 %v2908
        %v3427 = vpop.f32.mrb[0].mxu0
        %v3428 = vadd.f32 0.0, %v3427
        %v3429 = vpop.f32.mrb[0].mxu0
        %v3430 = vpop.f32.mrb[0].mxu0
        %v3431 = vadd.f32 0.0, %v3430
        %v3432 = vpop.f32.mrb[0].mxu0
        %3433 = vdwg.mxu0
        %v3445 = vunpack.c.l.b16 %v3334
        %v3446 = vunpack.c.l.b16 %v3335
        %v3447 = vunpack.c.l.b16 %v3336
        %v3448 = vunpack.c.l.b16 %v3337
        %v3449 = vunpack.c.l.b16 %v3338
        %v3450 = vunpack.c.l.b16 %v3339
        %v3451 = vunpack.c.l.b16 %v3340
        %v3452 = vunpack.c.l.b16 %v3341
        %v3453 = vunpack.c.l.b16 %v3342
        %v3454 = vunpack.c.l.b16 %v3343
        %v3455 = vunpack.c.l.b16 %v3344
        %v3456 = vpack.c.b16 %v3446, %v3445
        %v3457 = vpack.c.b16 %v3448, %v3447
        %v3458 = vpack.c.b16 %v3450, %v3449
        %v3459 = vpack.c.b16 %v3452, %v3451
        %v3460 = vpack.c.b16 %v3454, %v3453
        %v3461 = vpack.c.b16 %v3455, %v3455
        %v3468 = vsel %vm2910, %v3461, 0
        %3470 = vmatprep.subr.bf16.mxu0 0
        %3471 = vmatpush1.bf16.msra.mxu0 %v3456
        %3472 = vmatprep.subr.bf16.mxu0 0
        %3473 = vmatpush1.bf16.msra.mxu0 %v3457
        %3474 = vmatprep.subr.bf16.mxu0 0
        %3475 = vmatpush1.bf16.msra.mxu0 %v3458
        %3476 = vmatprep.subr.bf16.mxu0 0
        %3477 = vmatpush1.bf16.msra.mxu0 %v3459
        %3478 = vmatprep.subr.bf16.mxu0 0
        %3479 = vmatpush1.bf16.msra.mxu0 %v3460
        %3480 = vmatprep.subr.bf16.mxu0 0
        %3481 = vmatpush1.bf16.msra.mxu0 %v3468
        %3482 = vmatprep.subr.bf16.mxu0 0
        %3483 = vmatpush1.bf16.msra.mxu0 0
        %3484 = vmatprep.subr.bf16.mxu0 0
        %3485 = vmatpush1.bf16.msra.mxu0 0
        %3486 = vmatprep.subr.bf16.mxu0 0
        %3487 = vmatpush1.bf16.msra.mxu0 0
        %3488 = vmatprep.subr.bf16.mxu0 0
        %3489 = vmatpush1.bf16.msra.mxu0 0
        %3490 = vmatprep.subr.bf16.mxu0 0
        %3491 = vmatpush1.bf16.msra.mxu0 0
        %3492 = vmatprep.subr.bf16.mxu0 0
        %3493 = vmatpush1.bf16.msra.mxu0 0
        %3494 = vmatprep.subr.bf16.mxu0 0
        %3495 = vmatpush1.bf16.msra.mxu0 0
        %3496 = vmatprep.subr.bf16.mxu0 0
        %3497 = vmatpush1.bf16.msra.mxu0 0
        %3498 = vmatprep.subr.bf16.mxu0 0
        %3499 = vmatpush1.bf16.msra.mxu0 0
        %3500 = vmatprep.subr.bf16.mxu0 0
        %3501 = vmatpush1.bf16.msra.mxu0 0
        %3502 = vmatprep.mubr.bf16.mxu0 0
        %3503 = vmatmul.mubr.bf16.gmra.mrb[0].mxu0 %v2988
        %v3504 = vpop.f32.mrb[0].mxu0
        %v3505 = vadd.f32 %v3428, %v3504
        %v3506 = vpop.f32.mrb[0].mxu0
        %v3507 = vpop.f32.mrb[0].mxu0
        %v3508 = vadd.f32 %v3431, %v3507
        %v3509 = vpop.f32.mrb[0].mxu0
        %3510 = vdwg.mxu0
        %s3511 = scalar_lea.vmem %s3, 308
        %v3512 = vld [vmem:[%s3511] sm:$0xf]
        %v3513 = vld [vmem:[%s3511 + $0x4] sm:$0xf]
        %v3514 = vld [vmem:[%s3511 + $0x8] sm:$0xf]
        %v3515 = vld [vmem:[%s3511 + $0xc] sm:$0xf]
        %v3516 = vld [vmem:[%s3511 + $0x10] sm:$0xf]
        %v3517 = vld [vmem:[%s3511 + $0x14] sm:$0xf]
        %v3518 = vld [vmem:[%s3511 + $0x18] sm:$0xf]
        %v3519 = vld [vmem:[%s3511 + $0x1c] sm:$0xf]
        %v3520 = vld [vmem:[%s3511 + $0x20] sm:$0xf]
        %v3521 = vld [vmem:[%s3511 + $0x24] sm:$0xf]
        %v3522 = vld [vmem:[%s3511 + $0x28] sm:$0x3]
        %v3534 = vunpack.c.l.b16 %v3512
        %v3535 = vunpack.c.l.b16 %v3513
        %v3536 = vunpack.c.l.b16 %v3514
        %v3537 = vunpack.c.l.b16 %v3515
        %v3538 = vunpack.c.l.b16 %v3516
        %v3539 = vunpack.c.l.b16 %v3517
        %v3540 = vunpack.c.l.b16 %v3518
        %v3541 = vunpack.c.l.b16 %v3519
        %v3542 = vunpack.c.l.b16 %v3520
        %v3543 = vunpack.c.l.b16 %v3521
        %v3544 = vunpack.c.l.b16 %v3522
        %v3545 = vpack.c.b16 %v3535, %v3534
        %v3546 = vpack.c.b16 %v3537, %v3536
        %v3547 = vpack.c.b16 %v3539, %v3538
        %v3548 = vpack.c.b16 %v3541, %v3540
        %v3549 = vpack.c.b16 %v3543, %v3542
        %v3550 = vpack.c.b16 %v3544, %v3544
        %v3557 = vsel %vm2910, %v3550, 0
        %3559 = vmatprep.subr.bf16.mxu0 0
        %3560 = vmatpush1.bf16.msra.mxu0 %v3545
        %3561 = vmatprep.subr.bf16.mxu0 0
        %3562 = vmatpush1.bf16.msra.mxu0 %v3546
        %3563 = vmatprep.subr.bf16.mxu0 0
        %3564 = vmatpush1.bf16.msra.mxu0 %v3547
        %3565 = vmatprep.subr.bf16.mxu0 0
        %3566 = vmatpush1.bf16.msra.mxu0 %v3548
        %3567 = vmatprep.subr.bf16.mxu0 0
        %3568 = vmatpush1.bf16.msra.mxu0 %v3549
        %3569 = vmatprep.subr.bf16.mxu0 0
        %3570 = vmatpush1.bf16.msra.mxu0 %v3557
        %3571 = vmatprep.subr.bf16.mxu0 0
        %3572 = vmatpush1.bf16.msra.mxu0 0
        %3573 = vmatprep.subr.bf16.mxu0 0
        %3574 = vmatpush1.bf16.msra.mxu0 0
        %3575 = vmatprep.subr.bf16.mxu0 0
        %3576 = vmatpush1.bf16.msra.mxu0 0
        %3577 = vmatprep.subr.bf16.mxu0 0
        %3578 = vmatpush1.bf16.msra.mxu0 0
        %3579 = vmatprep.subr.bf16.mxu0 0
        %3580 = vmatpush1.bf16.msra.mxu0 0
        %3581 = vmatprep.subr.bf16.mxu0 0
        %3582 = vmatpush1.bf16.msra.mxu0 0
        %3583 = vmatprep.subr.bf16.mxu0 0
        %3584 = vmatpush1.bf16.msra.mxu0 0
        %3585 = vmatprep.subr.bf16.mxu0 0
        %3586 = vmatpush1.bf16.msra.mxu0 0
        %3587 = vmatprep.subr.bf16.mxu0 0
        %3588 = vmatpush1.bf16.msra.mxu0 0
        %3589 = vmatprep.subr.bf16.mxu0 0
        %3590 = vmatpush1.bf16.msra.mxu0 0
        %3591 = vmatprep.mubr.bf16.mxu0 0
        %3592 = vmatmul.mubr.bf16.gmra.mrb[0].mxu0 %v3082
        %v3593 = vpop.f32.mrb[0].mxu0
        %v3594 = vadd.f32 0.0, %v3593
        %v3595 = vpop.f32.mrb[0].mxu0
        %v3596 = vpop.f32.mrb[0].mxu0
        %v3597 = vadd.f32 0.0, %v3596
        %v3598 = vpop.f32.mrb[0].mxu0
        %3599 = vdwg.mxu0
        %v3600 = vadd.f32 %v3505, %v3594
        %v3601 = vadd.f32 %v3508, %v3597
        %s3602 = scalar_lea.vmem %s3, 352
        %v3603 = vld [vmem:[%s3602] sm:$0xf]
        %v3604 = vld [vmem:[%s3602 + $0x4] sm:$0xf]
        %v3605 = vld [vmem:[%s3602 + $0x8] sm:$0xf]
        %v3606 = vld [vmem:[%s3602 + $0xc] sm:$0xf]
        %v3607 = vld [vmem:[%s3602 + $0x10] sm:$0xf]
        %v3608 = vld [vmem:[%s3602 + $0x14] sm:$0xf]
        %v3609 = vld [vmem:[%s3602 + $0x18] sm:$0xf]
        %v3610 = vld [vmem:[%s3602 + $0x1c] sm:$0xf]
        %v3611 = vld [vmem:[%s3602 + $0x20] sm:$0xf]
        %v3612 = vld [vmem:[%s3602 + $0x24] sm:$0xf]
        %v3613 = vld [vmem:[%s3602 + $0x28] sm:$0x3]
        %v3625 = vunpack.c.l.b16 %v3603
        %v3626 = vunpack.c.l.b16 %v3604
        %v3627 = vunpack.c.l.b16 %v3605
        %v3628 = vunpack.c.l.b16 %v3606
        %v3629 = vunpack.c.l.b16 %v3607
        %v3630 = vunpack.c.l.b16 %v3608
        %v3631 = vunpack.c.l.b16 %v3609
        %v3632 = vunpack.c.l.b16 %v3610
        %v3633 = vunpack.c.l.b16 %v3611
        %v3634 = vunpack.c.l.b16 %v3612
        %v3635 = vunpack.c.l.b16 %v3613
        %v3636 = vpack.c.b16 %v3626, %v3625
        %v3637 = vpack.c.b16 %v3628, %v3627
        %v3638 = vpack.c.b16 %v3630, %v3629
        %v3639 = vpack.c.b16 %v3632, %v3631
        %v3640 = vpack.c.b16 %v3634, %v3633
        %v3641 = vpack.c.b16 %v3635, %v3635
        %v3648 = vsel %vm2910, %v3641, 0
        %3650 = vmatprep.subr.bf16.mxu0 0
        %3651 = vmatpush1.bf16.msra.mxu0 %v3636
        %3652 = vmatprep.subr.bf16.mxu0 0
        %3653 = vmatpush1.bf16.msra.mxu0 %v3637
        %3654 = vmatprep.subr.bf16.mxu0 0
        %3655 = vmatpush1.bf16.msra.mxu0 %v3638
        %3656 = vmatprep.subr.bf16.mxu0 0
        %3657 = vmatpush1.bf16.msra.mxu0 %v3639
        %3658 = vmatprep.subr.bf16.mxu0 0
        %3659 = vmatpush1.bf16.msra.mxu0 %v3640
        %3660 = vmatprep.subr.bf16.mxu0 0
        %3661 = vmatpush1.bf16.msra.mxu0 %v3648
        %3662 = vmatprep.subr.bf16.mxu0 0
        %3663 = vmatpush1.bf16.msra.mxu0 0
        %3664 = vmatprep.subr.bf16.mxu0 0
        %3665 = vmatpush1.bf16.msra.mxu0 0
        %3666 = vmatprep.subr.bf16.mxu0 0
        %3667 = vmatpush1.bf16.msra.mxu0 0
        %3668 = vmatprep.subr.bf16.mxu0 0
        %3669 = vmatpush1.bf16.msra.mxu0 0
        %3670 = vmatprep.subr.bf16.mxu0 0
        %3671 = vmatpush1.bf16.msra.mxu0 0
        %3672 = vmatprep.subr.bf16.mxu0 0
        %3673 = vmatpush1.bf16.msra.mxu0 0
        %3674 = vmatprep.subr.bf16.mxu0 0
        %3675 = vmatpush1.bf16.msra.mxu0 0
        %3676 = vmatprep.subr.bf16.mxu0 0
        %3677 = vmatpush1.bf16.msra.mxu0 0
        %3678 = vmatprep.subr.bf16.mxu0 0
        %3679 = vmatpush1.bf16.msra.mxu0 0
        %3680 = vmatprep.subr.bf16.mxu0 0
        %3681 = vmatpush1.bf16.msra.mxu0 0
        %3682 = vmatprep.mubr.bf16.mxu0 0
        %3683 = vmatmul.mubr.bf16.gmra.mrb[0].mxu0 %v3179
        %v3684 = vpop.f32.mrb[0].mxu0
        %v3685 = vadd.f32 0.0, %v3684
        %v3686 = vpop.f32.mrb[0].mxu0
        %v3687 = vpop.f32.mrb[0].mxu0
        %v3688 = vadd.f32 0.0, %v3687
        %v3689 = vpop.f32.mrb[0].mxu0
        %3690 = vdwg.mxu0
        %v3691 = vadd.f32 %v3600, %v3685
        %v3692 = vadd.f32 %v3601, %v3688
        %s3693 = scalar_lea.vmem %s3, 396
        %v3694 = vld [vmem:[%s3693] sm:$0xf]
        %v3695 = vld [vmem:[%s3693 + $0x4] sm:$0xf]
        %v3696 = vld [vmem:[%s3693 + $0x8] sm:$0xf]
        %v3697 = vld [vmem:[%s3693 + $0xc] sm:$0xf]
        %v3698 = vld [vmem:[%s3693 + $0x10] sm:$0xf]
        %v3699 = vld [vmem:[%s3693 + $0x14] sm:$0xf]
        %v3700 = vld [vmem:[%s3693 + $0x18] sm:$0xf]
        %v3701 = vld [vmem:[%s3693 + $0x1c] sm:$0xf]
        %v3702 = vld [vmem:[%s3693 + $0x20] sm:$0xf]
        %v3703 = vld [vmem:[%s3693 + $0x24] sm:$0xf]
        %v3704 = vld [vmem:[%s3693 + $0x28] sm:$0x3]
        %v3716 = vunpack.c.l.b16 %v3694
        %v3717 = vunpack.c.l.b16 %v3695
        %v3718 = vunpack.c.l.b16 %v3696
        %v3719 = vunpack.c.l.b16 %v3697
        %v3720 = vunpack.c.l.b16 %v3698
        %v3721 = vunpack.c.l.b16 %v3699
        %v3722 = vunpack.c.l.b16 %v3700
        %v3723 = vunpack.c.l.b16 %v3701
        %v3724 = vunpack.c.l.b16 %v3702
        %v3725 = vunpack.c.l.b16 %v3703
        %v3726 = vunpack.c.l.b16 %v3704
        %v3727 = vpack.c.b16 %v3717, %v3716
        %v3728 = vpack.c.b16 %v3719, %v3718
        %v3729 = vpack.c.b16 %v3721, %v3720
        %v3730 = vpack.c.b16 %v3723, %v3722
        %v3731 = vpack.c.b16 %v3725, %v3724
        %v3732 = vpack.c.b16 %v3726, %v3726
        %v3739 = vsel %vm2910, %v3732, 0
        %3741 = vmatprep.subr.bf16.mxu0 0
        %3742 = vmatpush1.bf16.msra.mxu0 %v3727
        %3743 = vmatprep.subr.bf16.mxu0 0
        %3744 = vmatpush1.bf16.msra.mxu0 %v3728
        %3745 = vmatprep.subr.bf16.mxu0 0
        %3746 = vmatpush1.bf16.msra.mxu0 %v3729
        %3747 = vmatprep.subr.bf16.mxu0 0
        %3748 = vmatpush1.bf16.msra.mxu0 %v3730
        %3749 = vmatprep.subr.bf16.mxu0 0
        %3750 = vmatpush1.bf16.msra.mxu0 %v3731
        %3751 = vmatprep.subr.bf16.mxu0 0
        %3752 = vmatpush1.bf16.msra.mxu0 %v3739
        %3753 = vmatprep.subr.bf16.mxu0 0
        %3754 = vmatpush1.bf16.msra.mxu0 0
        %3755 = vmatprep.subr.bf16.mxu0 0
        %3756 = vmatpush1.bf16.msra.mxu0 0
        %3757 = vmatprep.subr.bf16.mxu0 0
        %3758 = vmatpush1.bf16.msra.mxu0 0
        %3759 = vmatprep.subr.bf16.mxu0 0
        %3760 = vmatpush1.bf16.msra.mxu0 0
        %3761 = vmatprep.subr.bf16.mxu0 0
        %3762 = vmatpush1.bf16.msra.mxu0 0
        %3763 = vmatprep.subr.bf16.mxu0 0
        %3764 = vmatpush1.bf16.msra.mxu0 0
        %3765 = vmatprep.subr.bf16.mxu0 0
        %3766 = vmatpush1.bf16.msra.mxu0 0
        %3767 = vmatprep.subr.bf16.mxu0 0
        %3768 = vmatpush1.bf16.msra.mxu0 0
        %3769 = vmatprep.subr.bf16.mxu0 0
        %3770 = vmatpush1.bf16.msra.mxu0 0
        %3771 = vmatprep.subr.bf16.mxu0 0
        %3772 = vmatpush1.bf16.msra.mxu0 0
        %3773 = vmatprep.mubr.bf16.mxu0 0
        %3774 = vmatmul.mubr.bf16.gmra.mrb[0].mxu0 %v3274
        %v3775 = vpop.f32.mrb[0].mxu0
        %v3776 = vadd.f32 0.0, %v3775
        %v3777 = vpop.f32.mrb[0].mxu0
        %v3778 = vpop.f32.mrb[0].mxu0
        %v3779 = vadd.f32 0.0, %v3778
        %v3780 = vpop.f32.mrb[0].mxu0
        %3781 = vdwg.mxu0
        %v3782 = vadd.f32 %v3691, %v3776
        %v3783 = vadd.f32 %v3692, %v3779
        %v3784 = vadd.f32 %v3782, %v3327
        %v3785 = vadd.f32 %v3783, %v3327
        %v3786 = vmax.f32 %v3784, 0.0
        %v3787 = vmax.f32 %v3785, 0.0
        %v3788 = vmax.f32 %v3331, %v3786
        %v3789 = vmax.f32 %v3332, %v3787
        %v3790 = vpack.c.bf16 %v3789, %v3788
        %v3791 = vld [vmem:[%s6] sm:$0x7]
        %vm3792 = vcmask 80896
        %v3794 = vsel %vm3792, %v3791, 0
        %vm3796 = vcmask 1044480
        %v3798 = vsel %vm3796, %v3790, 0
        %3800 = vmatprep.subr.bf16.mxu0 0
        %3801 = vmatpush1.bf16.msra.mxu0 %v3798
        %3802 = vmatprep.subr.bf16.mxu0 0
        %3803 = vmatpush1.bf16.msra.mxu0 0
        %3804 = vmatprep.subr.bf16.mxu0 0
        %3805 = vmatpush1.bf16.msra.mxu0 0
        %3806 = vmatprep.subr.bf16.mxu0 0
        %3807 = vmatpush1.bf16.msra.mxu0 0
        %3808 = vmatprep.subr.bf16.mxu0 0
        %3809 = vmatpush1.bf16.msra.mxu0 0
        %3810 = vmatprep.subr.bf16.mxu0 0
        %3811 = vmatpush1.bf16.msra.mxu0 0
        %3812 = vmatprep.subr.bf16.mxu0 0
        %3813 = vmatpush1.bf16.msra.mxu0 0
        %3814 = vmatprep.subr.bf16.mxu0 0
        %3815 = vmatpush1.bf16.msra.mxu0 0
        %3816 = vmatprep.subr.bf16.mxu0 0
        %3817 = vmatpush1.bf16.msra.mxu0 0
        %3818 = vmatprep.subr.bf16.mxu0 0
        %3819 = vmatpush1.bf16.msra.mxu0 0
        %3820 = vmatprep.subr.bf16.mxu0 0
        %3821 = vmatpush1.bf16.msra.mxu0 0
        %3822 = vmatprep.subr.bf16.mxu0 0
        %3823 = vmatpush1.bf16.msra.mxu0 0
        %3824 = vmatprep.subr.bf16.mxu0 0
        %3825 = vmatpush1.bf16.msra.mxu0 0
        %3826 = vmatprep.subr.bf16.mxu0 0
        %3827 = vmatpush1.bf16.msra.mxu0 0
        %3828 = vmatprep.subr.bf16.mxu0 0
        %3829 = vmatpush1.bf16.msra.mxu0 0
        %3830 = vmatprep.subr.bf16.mxu0 0
        %3831 = vmatpush1.bf16.msra.mxu0 0
        %3832 = vmatprep.mubr.bf16.mxu0 0
        %3833 = vmatmul.mubr.bf16.gmra.mrb[0].mxu0 %v3794
        %v3834 = vpop.f32.mrb[0].mxu0
        %v3835 = vadd.f32 0.0, %v3834
        %v3836 = vpop.f32.mrb[0].mxu0
        %v3837 = vpop.f32.mrb[0].mxu0
        %v3838 = vpop.f32.mrb[0].mxu0
        %3839 = vdwg.mxu0
        %s3840 = scalar_lea.vmem %s6, 4
        %v3841 = vld [vmem:[%s3840] sm:$0x7]
        %v3843 = vsel %vm3792, %v3841, 0
        %3845 = vmatprep.subr.bf16.mxu0 0
        %3846 = vmatpush1.bf16.msra.mxu0 %v3798
        %3847 = vmatprep.subr.bf16.mxu0 0
        %3848 = vmatpush1.bf16.msra.mxu0 0
        %3849 = vmatprep.subr.bf16.mxu0 0
        %3850 = vmatpush1.bf16.msra.mxu0 0
        %3851 = vmatprep.subr.bf16.mxu0 0
        %3852 = vmatpush1.bf16.msra.mxu0 0
        %3853 = vmatprep.subr.bf16.mxu0 0
        %3854 = vmatpush1.bf16.msra.mxu0 0
        %3855 = vmatprep.subr.bf16.mxu0 0
        %3856 = vmatpush1.bf16.msra.mxu0 0
        %3857 = vmatprep.subr.bf16.mxu0 0
        %3858 = vmatpush1.bf16.msra.mxu0 0
        %3859 = vmatprep.subr.bf16.mxu0 0
        %3860 = vmatpush1.bf16.msra.mxu0 0
        %3861 = vmatprep.subr.bf16.mxu0 0
        %3862 = vmatpush1.bf16.msra.mxu0 0
        %3863 = vmatprep.subr.bf16.mxu0 0
        %3864 = vmatpush1.bf16.msra.mxu0 0
        %3865 = vmatprep.subr.bf16.mxu0 0
        %3866 = vmatpush1.bf16.msra.mxu0 0
        %3867 = vmatprep.subr.bf16.mxu0 0
        %3868 = vmatpush1.bf16.msra.mxu0 0
        %3869 = vmatprep.subr.bf16.mxu0 0
        %3870 = vmatpush1.bf16.msra.mxu0 0
        %3871 = vmatprep.subr.bf16.mxu0 0
        %3872 = vmatpush1.bf16.msra.mxu0 0
        %3873 = vmatprep.subr.bf16.mxu0 0
        %3874 = vmatpush1.bf16.msra.mxu0 0
        %3875 = vmatprep.subr.bf16.mxu0 0
        %3876 = vmatpush1.bf16.msra.mxu0 0
        %3877 = vmatprep.mubr.bf16.mxu0 0
        %3878 = vmatmul.mubr.bf16.gmra.mrb[0].mxu0 %v3843
        %v3879 = vpop.f32.mrb[0].mxu0
        %v3880 = vadd.f32 0.0, %v3879
        %v3881 = vpop.f32.mrb[0].mxu0
        %v3882 = vpop.f32.mrb[0].mxu0
        %v3883 = vpop.f32.mrb[0].mxu0
        %3884 = vdwg.mxu0
        %v3885 = vmax.f32 %v3835, %v3880
        %v3886 = vpack.c.bf16 %v3885, %v3885
        %v3887 = vld [vmem:[%s7] sm:$0xf]
        %v3888 = vld [vmem:[%s7 + $0x4] sm:$0xf]
        %v3889 = vld [vmem:[%s7 + $0x8] sm:$0xf]
        %v3890 = vld [vmem:[%s7 + $0xc] sm:$0xf]
        %v3891 = vld [vmem:[%s7 + $0x10] sm:$0xf]
        %v3892 = vld [vmem:[%s7 + $0x14] sm:$0xf]
        %v3893 = vld [vmem:[%s7 + $0x18] sm:$0xf]
        %v3894 = vld [vmem:[%s7 + $0x1c] sm:$0xf]
        %v3895 = vld [vmem:[%s7 + $0x20] sm:$0xf]
        %v3896 = vld [vmem:[%s7 + $0x24] sm:$0xf]
        %s3897 = scalar_lea.vmem %s7, 40
        %v3898 = vld [vmem:[%s3897] sm:$0xf]
        %v3899 = vld [vmem:[%s3897 + $0x4] sm:$0xf]
        %v3900 = vld [vmem:[%s3897 + $0x8] sm:$0xf]
        %v3901 = vld [vmem:[%s3897 + $0xc] sm:$0xf]
        %v3902 = vld [vmem:[%s3897 + $0x10] sm:$0xf]
        %v3903 = vld [vmem:[%s3897 + $0x14] sm:$0xf]
        %v3904 = vld [vmem:[%s3897 + $0x18] sm:$0xf]
        %v3905 = vld [vmem:[%s3897 + $0x1c] sm:$0xf]
        %v3906 = vld [vmem:[%s3897 + $0x20] sm:$0xf]
        %v3907 = vld [vmem:[%s3897 + $0x24] sm:$0xf]
        %v3909 = vshrl.u32 %v3886, 16
        %v3921 = vunpack.c.l.b16 %v3898
        %v3922 = vunpack.c.l.b16 %v3899
        %v3923 = vunpack.c.l.b16 %v3900
        %v3924 = vunpack.c.l.b16 %v3901
        %v3925 = vunpack.c.l.b16 %v3902
        %v3926 = vunpack.c.l.b16 %v3903
        %v3927 = vunpack.c.l.b16 %v3904
        %v3928 = vunpack.c.l.b16 %v3905
        %v3929 = vunpack.c.l.b16 %v3906
        %v3930 = vunpack.c.l.b16 %v3907
        %v3931 = vpack.c.b16 %v3922, %v3921
        %v3932 = vpack.c.b16 %v3924, %v3923
        %v3933 = vpack.c.b16 %v3926, %v3925
        %v3934 = vpack.c.b16 %v3928, %v3927
        %v3935 = vpack.c.b16 %v3930, %v3929
        %vm3941 = vcmask 654336
        %v3943 = vsel %vm3941, %v3909, 0
        %3945 = vmatprep.subr.bf16.mxu0 0
        %3946 = vmatpush1.bf16.msra.mxu0 %v3931
        %3947 = vmatprep.subr.bf16.mxu0 0
        %3948 = vmatpush1.bf16.msra.mxu0 %v3932
        %3949 = vmatprep.subr.bf16.mxu0 0
        %3950 = vmatpush1.bf16.msra.mxu0 %v3933
        %3951 = vmatprep.subr.bf16.mxu0 0
        %3952 = vmatpush1.bf16.msra.mxu0 %v3934
        %3953 = vmatprep.subr.bf16.mxu0 0
        %3954 = vmatpush1.bf16.msra.mxu0 %v3935
        %3955 = vmatprep.subr.bf16.mxu0 0
        %3956 = vmatpush1.bf16.msra.mxu0 0
        %3957 = vmatprep.subr.bf16.mxu0 0
        %3958 = vmatpush1.bf16.msra.mxu0 0
        %3959 = vmatprep.subr.bf16.mxu0 0
        %3960 = vmatpush1.bf16.msra.mxu0 0
        %3961 = vmatprep.subr.bf16.mxu0 0
        %3962 = vmatpush1.bf16.msra.mxu0 0
        %3963 = vmatprep.subr.bf16.mxu0 0
        %3964 = vmatpush1.bf16.msra.mxu0 0
        %3965 = vmatprep.subr.bf16.mxu0 0
        %3966 = vmatpush1.bf16.msra.mxu0 0
        %3967 = vmatprep.subr.bf16.mxu0 0
        %3968 = vmatpush1.bf16.msra.mxu0 0
        %3969 = vmatprep.subr.bf16.mxu0 0
        %3970 = vmatpush1.bf16.msra.mxu0 0
        %3971 = vmatprep.subr.bf16.mxu0 0
        %3972 = vmatpush1.bf16.msra.mxu0 0
        %3973 = vmatprep.subr.bf16.mxu0 0
        %3974 = vmatpush1.bf16.msra.mxu0 0
        %3975 = vmatprep.subr.bf16.mxu0 0
        %3976 = vmatpush1.bf16.msra.mxu0 0
        %3977 = vmatprep.mubr.bf16.mxu0 0
        %3978 = vmatmul.mubr.bf16.gmra.mrb[0].mxu0 %v3943
        %v3979 = vpop.f32.mrb[0].mxu0
        %v3980 = vadd.f32 0.0, %v3979
        %v3981 = vpop.f32.mrb[0].mxu0
        %v3982 = vpop.f32.mrb[0].mxu0
        %v3983 = vpop.f32.mrb[0].mxu0
        %3984 = vdwg.mxu0
        %v3995 = vunpack.c.l.b16 %v3887
        %v3996 = vunpack.c.l.b16 %v3888
        %v3997 = vunpack.c.l.b16 %v3889
        %v3998 = vunpack.c.l.b16 %v3890
        %v3999 = vunpack.c.l.b16 %v3891
        %v4000 = vunpack.c.l.b16 %v3892
        %v4001 = vunpack.c.l.b16 %v3893
        %v4002 = vunpack.c.l.b16 %v3894
        %v4003 = vunpack.c.l.b16 %v3895
        %v4004 = vunpack.c.l.b16 %v3896
        %v4005 = vpack.c.b16 %v3996, %v3995
        %v4006 = vpack.c.b16 %v3998, %v3997
        %v4007 = vpack.c.b16 %v4000, %v3999
        %v4008 = vpack.c.b16 %v4002, %v4001
        %v4009 = vpack.c.b16 %v4004, %v4003
        %v4015 = vsel %vm3941, %v3886, 0
        %4017 = vmatprep.subr.bf16.mxu0 0
        %4018 = vmatpush1.bf16.msra.mxu0 %v4005
        %4019 = vmatprep.subr.bf16.mxu0 0
        %4020 = vmatpush1.bf16.msra.mxu0 %v4006
        %4021 = vmatprep.subr.bf16.mxu0 0
        %4022 = vmatpush1.bf16.msra.mxu0 %v4007
        %4023 = vmatprep.subr.bf16.mxu0 0
        %4024 = vmatpush1.bf16.msra.mxu0 %v4008
        %4025 = vmatprep.subr.bf16.mxu0 0
        %4026 = vmatpush1.bf16.msra.mxu0 %v4009
        %4027 = vmatprep.subr.bf16.mxu0 0
        %4028 = vmatpush1.bf16.msra.mxu0 0
        %4029 = vmatprep.subr.bf16.mxu0 0
        %4030 = vmatpush1.bf16.msra.mxu0 0
        %4031 = vmatprep.subr.bf16.mxu0 0
        %4032 = vmatpush1.bf16.msra.mxu0 0
        %4033 = vmatprep.subr.bf16.mxu0 0
        %4034 = vmatpush1.bf16.msra.mxu0 0
        %4035 = vmatprep.subr.bf16.mxu0 0
        %4036 = vmatpush1.bf16.msra.mxu0 0
        %4037 = vmatprep.subr.bf16.mxu0 0
        %4038 = vmatpush1.bf16.msra.mxu0 0
        %4039 = vmatprep.subr.bf16.mxu0 0
        %4040 = vmatpush1.bf16.msra.mxu0 0
        %4041 = vmatprep.subr.bf16.mxu0 0
        %4042 = vmatpush1.bf16.msra.mxu0 0
        %4043 = vmatprep.subr.bf16.mxu0 0
        %4044 = vmatpush1.bf16.msra.mxu0 0
        %4045 = vmatprep.subr.bf16.mxu0 0
        %4046 = vmatpush1.bf16.msra.mxu0 0
        %4047 = vmatprep.subr.bf16.mxu0 0
        %4048 = vmatpush1.bf16.msra.mxu0 0
        %4049 = vmatprep.mubr.bf16.mxu0 0
        %4050 = vmatmul.mubr.bf16.gmra.mrb[0].mxu0 %v4015
        %v4051 = vpop.f32.mrb[0].mxu0
        %v4052 = vadd.f32 %v3980, %v4051
        %v4053 = vpop.f32.mrb[0].mxu0
        %v4054 = vpop.f32.mrb[0].mxu0
        %v4055 = vpop.f32.mrb[0].mxu0
        %4056 = vdwg.mxu0
        %s4057 = scalar_lea.vmem %s7, 80
        %v4058 = vld [vmem:[%s4057] sm:$0xf]
        %v4059 = vld [vmem:[%s4057 + $0x4] sm:$0xf]
        %v4060 = vld [vmem:[%s4057 + $0x8] sm:$0xf]
        %v4061 = vld [vmem:[%s4057 + $0xc] sm:$0xf]
        %v4062 = vld [vmem:[%s4057 + $0x10] sm:$0xf]
        %v4063 = vld [vmem:[%s4057 + $0x14] sm:$0xf]
        %v4064 = vld [vmem:[%s4057 + $0x18] sm:$0xf]
        %v4065 = vld [vmem:[%s4057 + $0x1c] sm:$0xf]
        %v4066 = vld [vmem:[%s4057 + $0x20] sm:$0xf]
        %v4067 = vld [vmem:[%s4057 + $0x24] sm:$0xf]
        %v4069 = vrot.slane %v3886, 1
        %v4080 = vunpack.c.l.b16 %v4058
        %v4081 = vunpack.c.l.b16 %v4059
        %v4082 = vunpack.c.l.b16 %v4060
        %v4083 = vunpack.c.l.b16 %v4061
        %v4084 = vunpack.c.l.b16 %v4062
        %v4085 = vunpack.c.l.b16 %v4063
        %v4086 = vunpack.c.l.b16 %v4064
        %v4087 = vunpack.c.l.b16 %v4065
        %v4088 = vunpack.c.l.b16 %v4066
        %v4089 = vunpack.c.l.b16 %v4067
        %v4090 = vpack.c.b16 %v4081, %v4080
        %v4091 = vpack.c.b16 %v4083, %v4082
        %v4092 = vpack.c.b16 %v4085, %v4084
        %v4093 = vpack.c.b16 %v4087, %v4086
        %v4094 = vpack.c.b16 %v4089, %v4088
        %v4101 = vsel %vm3941, %v4069, 0
        %4103 = vmatprep.subr.bf16.mxu0 0
        %4104 = vmatpush1.bf16.msra.mxu0 %v4090
        %4105 = vmatprep.subr.bf16.mxu0 0
        %4106 = vmatpush1.bf16.msra.mxu0 %v4091
        %4107 = vmatprep.subr.bf16.mxu0 0
        %4108 = vmatpush1.bf16.msra.mxu0 %v4092
        %4109 = vmatprep.subr.bf16.mxu0 0
        %4110 = vmatpush1.bf16.msra.mxu0 %v4093
        %4111 = vmatprep.subr.bf16.mxu0 0
        %4112 = vmatpush1.bf16.msra.mxu0 %v4094
        %4113 = vmatprep.subr.bf16.mxu0 0
        %4114 = vmatpush1.bf16.msra.mxu0 0
        %4115 = vmatprep.subr.bf16.mxu0 0
        %4116 = vmatpush1.bf16.msra.mxu0 0
        %4117 = vmatprep.subr.bf16.mxu0 0
        %4118 = vmatpush1.bf16.msra.mxu0 0
        %4119 = vmatprep.subr.bf16.mxu0 0
        %4120 = vmatpush1.bf16.msra.mxu0 0
        %4121 = vmatprep.subr.bf16.mxu0 0
        %4122 = vmatpush1.bf16.msra.mxu0 0
        %4123 = vmatprep.subr.bf16.mxu0 0
        %4124 = vmatpush1.bf16.msra.mxu0 0
        %4125 = vmatprep.subr.bf16.mxu0 0
        %4126 = vmatpush1.bf16.msra.mxu0 0
        %4127 = vmatprep.subr.bf16.mxu0 0
        %4128 = vmatpush1.bf16.msra.mxu0 0
        %4129 = vmatprep.subr.bf16.mxu0 0
        %4130 = vmatpush1.bf16.msra.mxu0 0
        %4131 = vmatprep.subr.bf16.mxu0 0
        %4132 = vmatpush1.bf16.msra.mxu0 0
        %4133 = vmatprep.subr.bf16.mxu0 0
        %4134 = vmatpush1.bf16.msra.mxu0 0
        %4135 = vmatprep.mubr.bf16.mxu0 0
        %4136 = vmatmul.mubr.bf16.gmra.mrb[0].mxu0 %v4101
        %v4137 = vpop.f32.mrb[0].mxu0
        %v4138 = vadd.f32 0.0, %v4137
        %v4139 = vpop.f32.mrb[0].mxu0
        %v4140 = vpop.f32.mrb[0].mxu0
        %v4141 = vpop.f32.mrb[0].mxu0
        %4142 = vdwg.mxu0
        %v4143 = vadd.f32 %v4052, %v4138
        %s4144 = scalar_lea.vmem %s7, 120
        %v4145 = vld [vmem:[%s4144] sm:$0xf]
        %v4146 = vld [vmem:[%s4144 + $0x4] sm:$0xf]
        %v4147 = vld [vmem:[%s4144 + $0x8] sm:$0xf]
        %v4148 = vld [vmem:[%s4144 + $0xc] sm:$0xf]
        %v4149 = vld [vmem:[%s4144 + $0x10] sm:$0xf]
        %v4150 = vld [vmem:[%s4144 + $0x14] sm:$0xf]
        %v4151 = vld [vmem:[%s4144 + $0x18] sm:$0xf]
        %v4152 = vld [vmem:[%s4144 + $0x1c] sm:$0xf]
        %v4153 = vld [vmem:[%s4144 + $0x20] sm:$0xf]
        %v4154 = vld [vmem:[%s4144 + $0x24] sm:$0xf]
        %v4155 = vrot.slane %v3909, 1
        %v4166 = vunpack.c.l.b16 %v4145
        %v4167 = vunpack.c.l.b16 %v4146
        %v4168 = vunpack.c.l.b16 %v4147
        %v4169 = vunpack.c.l.b16 %v4148
        %v4170 = vunpack.c.l.b16 %v4149
        %v4171 = vunpack.c.l.b16 %v4150
        %v4172 = vunpack.c.l.b16 %v4151
        %v4173 = vunpack.c.l.b16 %v4152
        %v4174 = vunpack.c.l.b16 %v4153
        %v4175 = vunpack.c.l.b16 %v4154
        %v4176 = vpack.c.b16 %v4167, %v4166
        %v4177 = vpack.c.b16 %v4169, %v4168
        %v4178 = vpack.c.b16 %v4171, %v4170
        %v4179 = vpack.c.b16 %v4173, %v4172
        %v4180 = vpack.c.b16 %v4175, %v4174
        %v4187 = vsel %vm3941, %v4155, 0
        %4189 = vmatprep.subr.bf16.mxu0 0
        %4190 = vmatpush1.bf16.msra.mxu0 %v4176
        %4191 = vmatprep.subr.bf16.mxu0 0
        %4192 = vmatpush1.bf16.msra.mxu0 %v4177
        %4193 = vmatprep.subr.bf16.mxu0 0
        %4194 = vmatpush1.bf16.msra.mxu0 %v4178
        %4195 = vmatprep.subr.bf16.mxu0 0
        %4196 = vmatpush1.bf16.msra.mxu0 %v4179
        %4197 = vmatprep.subr.bf16.mxu0 0
        %4198 = vmatpush1.bf16.msra.mxu0 %v4180
        %4199 = vmatprep.subr.bf16.mxu0 0
        %4200 = vmatpush1.bf16.msra.mxu0 0
        %4201 = vmatprep.subr.bf16.mxu0 0
        %4202 = vmatpush1.bf16.msra.mxu0 0
        %4203 = vmatprep.subr.bf16.mxu0 0
        %4204 = vmatpush1.bf16.msra.mxu0 0
        %4205 = vmatprep.subr.bf16.mxu0 0
        %4206 = vmatpush1.bf16.msra.mxu0 0
        %4207 = vmatprep.subr.bf16.mxu0 0
        %4208 = vmatpush1.bf16.msra.mxu0 0
        %4209 = vmatprep.subr.bf16.mxu0 0
        %4210 = vmatpush1.bf16.msra.mxu0 0
        %4211 = vmatprep.subr.bf16.mxu0 0
        %4212 = vmatpush1.bf16.msra.mxu0 0
        %4213 = vmatprep.subr.bf16.mxu0 0
        %4214 = vmatpush1.bf16.msra.mxu0 0
        %4215 = vmatprep.subr.bf16.mxu0 0
        %4216 = vmatpush1.bf16.msra.mxu0 0
        %4217 = vmatprep.subr.bf16.mxu0 0
        %4218 = vmatpush1.bf16.msra.mxu0 0
        %4219 = vmatprep.subr.bf16.mxu0 0
        %4220 = vmatpush1.bf16.msra.mxu0 0
        %4221 = vmatprep.mubr.bf16.mxu0 0
        %4222 = vmatmul.mubr.bf16.gmra.mrb[0].mxu0 %v4187
        %v4223 = vpop.f32.mrb[0].mxu0
        %v4224 = vadd.f32 0.0, %v4223
        %v4225 = vpop.f32.mrb[0].mxu0
        %v4226 = vpop.f32.mrb[0].mxu0
        %v4227 = vpop.f32.mrb[0].mxu0
        %4228 = vdwg.mxu0
        %v4229 = vadd.f32 %v4143, %v4224
        %s4230 = scalar_lea.vmem %s7, 160
        %v4231 = vld [vmem:[%s4230] sm:$0xf]
        %v4232 = vld [vmem:[%s4230 + $0x4] sm:$0xf]
        %v4233 = vld [vmem:[%s4230 + $0x8] sm:$0xf]
        %v4234 = vld [vmem:[%s4230 + $0xc] sm:$0xf]
        %v4235 = vld [vmem:[%s4230 + $0x10] sm:$0xf]
        %v4236 = vld [vmem:[%s4230 + $0x14] sm:$0xf]
        %v4237 = vld [vmem:[%s4230 + $0x18] sm:$0xf]
        %v4238 = vld [vmem:[%s4230 + $0x1c] sm:$0xf]
        %v4239 = vld [vmem:[%s4230 + $0x20] sm:$0xf]
        %v4240 = vld [vmem:[%s4230 + $0x24] sm:$0xf]
        %v4241 = vrot.slane %v3886, 2
        %v4252 = vunpack.c.l.b16 %v4231
        %v4253 = vunpack.c.l.b16 %v4232
        %v4254 = vunpack.c.l.b16 %v4233
        %v4255 = vunpack.c.l.b16 %v4234
        %v4256 = vunpack.c.l.b16 %v4235
        %v4257 = vunpack.c.l.b16 %v4236
        %v4258 = vunpack.c.l.b16 %v4237
        %v4259 = vunpack.c.l.b16 %v4238
        %v4260 = vunpack.c.l.b16 %v4239
        %v4261 = vunpack.c.l.b16 %v4240
        %v4262 = vpack.c.b16 %v4253, %v4252
        %v4263 = vpack.c.b16 %v4255, %v4254
        %v4264 = vpack.c.b16 %v4257, %v4256
        %v4265 = vpack.c.b16 %v4259, %v4258
        %v4266 = vpack.c.b16 %v4261, %v4260
        %v4273 = vsel %vm3941, %v4241, 0
        %4275 = vmatprep.subr.bf16.mxu0 0
        %4276 = vmatpush1.bf16.msra.mxu0 %v4262
        %4277 = vmatprep.subr.bf16.mxu0 0
        %4278 = vmatpush1.bf16.msra.mxu0 %v4263
        %4279 = vmatprep.subr.bf16.mxu0 0
        %4280 = vmatpush1.bf16.msra.mxu0 %v4264
        %4281 = vmatprep.subr.bf16.mxu0 0
        %4282 = vmatpush1.bf16.msra.mxu0 %v4265
        %4283 = vmatprep.subr.bf16.mxu0 0
        %4284 = vmatpush1.bf16.msra.mxu0 %v4266
        %4285 = vmatprep.subr.bf16.mxu0 0
        %4286 = vmatpush1.bf16.msra.mxu0 0
        %4287 = vmatprep.subr.bf16.mxu0 0
        %4288 = vmatpush1.bf16.msra.mxu0 0
        %4289 = vmatprep.subr.bf16.mxu0 0
        %4290 = vmatpush1.bf16.msra.mxu0 0
        %4291 = vmatprep.subr.bf16.mxu0 0
        %4292 = vmatpush1.bf16.msra.mxu0 0
        %4293 = vmatprep.subr.bf16.mxu0 0
        %4294 = vmatpush1.bf16.msra.mxu0 0
        %4295 = vmatprep.subr.bf16.mxu0 0
        %4296 = vmatpush1.bf16.msra.mxu0 0
        %4297 = vmatprep.subr.bf16.mxu0 0
        %4298 = vmatpush1.bf16.msra.mxu0 0
        %4299 = vmatprep.subr.bf16.mxu0 0
        %4300 = vmatpush1.bf16.msra.mxu0 0
        %4301 = vmatprep.subr.bf16.mxu0 0
        %4302 = vmatpush1.bf16.msra.mxu0 0
        %4303 = vmatprep.subr.bf16.mxu0 0
        %4304 = vmatpush1.bf16.msra.mxu0 0
        %4305 = vmatprep.subr.bf16.mxu0 0
        %4306 = vmatpush1.bf16.msra.mxu0 0
        %4307 = vmatprep.mubr.bf16.mxu0 0
        %4308 = vmatmul.mubr.bf16.gmra.mrb[0].mxu0 %v4273
        %v4309 = vpop.f32.mrb[0].mxu0
        %v4310 = vadd.f32 0.0, %v4309
        %v4311 = vpop.f32.mrb[0].mxu0
        %v4312 = vpop.f32.mrb[0].mxu0
        %v4313 = vpop.f32.mrb[0].mxu0
        %4314 = vdwg.mxu0
        %v4315 = vadd.f32 %v4229, %v4310
        %v4316 = vld [vmem:[%s8] sm:$0x1]
        %v4317 = vadd.f32 %v4315, %v4316
        %v4318 = vmax.f32 %v4317, 0.0
        %v4319 = vpack.c.bf16 %v4318, %v4318
        %v4320 = vld [vmem:[%s9] sm:$0xf]
        %v4321 = vld [vmem:[%s9 + $0x4] sm:$0xf]
        %v4322 = vld [vmem:[%s9 + $0x8] sm:$0xf]
        %v4323 = vld [vmem:[%s9 + $0xc] sm:$0xf]
        %v4324 = vld [vmem:[%s9 + $0x10] sm:$0xf]
        %v4325 = vld [vmem:[%s9 + $0x14] sm:$0xf]
        %v4326 = vld [vmem:[%s9 + $0x18] sm:$0xf]
        %v4327 = vld [vmem:[%s9 + $0x1c] sm:$0xf]
        %v4328 = vld [vmem:[%s9 + $0x20] sm:$0xf]
        %v4329 = vld [vmem:[%s9 + $0x24] sm:$0xf]
        %v4330 = vld [vmem:[%s9 + $0x28] sm:$0xf]
        %v4331 = vld [vmem:[%s9 + $0x2c] sm:$0xf]
        %v4332 = vld [vmem:[%s9 + $0x30] sm:$0xf]
        %v4333 = vld [vmem:[%s9 + $0x34] sm:$0xf]
        %v4334 = vld [vmem:[%s9 + $0x38] sm:$0xf]
        %v4335 = vld [vmem:[%s9 + $0x3c] sm:$0xf]
        %v4336 = vld [vmem:[%s10] sm:$0x1]
        %v4353 = vunpack.c.l.b16 %v4320
        %v4354 = vunpack.c.l.b16 %v4321
        %v4355 = vunpack.c.l.b16 %v4322
        %v4356 = vunpack.c.l.b16 %v4323
        %v4357 = vunpack.c.l.b16 %v4324
        %v4358 = vunpack.c.l.b16 %v4325
        %v4359 = vunpack.c.l.b16 %v4326
        %v4360 = vunpack.c.l.b16 %v4327
        %v4361 = vunpack.c.l.b16 %v4328
        %v4362 = vunpack.c.l.b16 %v4329
        %v4363 = vunpack.c.l.b16 %v4330
        %v4364 = vunpack.c.l.b16 %v4331
        %v4365 = vunpack.c.l.b16 %v4332
        %v4366 = vunpack.c.l.b16 %v4333
        %v4367 = vunpack.c.l.b16 %v4334
        %v4368 = vunpack.c.l.b16 %v4335
        %v4369 = vpack.c.b16 %v4354, %v4353
        %v4370 = vpack.c.b16 %v4356, %v4355
        %v4371 = vpack.c.b16 %v4358, %v4357
        %v4372 = vpack.c.b16 %v4360, %v4359
        %v4373 = vpack.c.b16 %v4362, %v4361
        %v4374 = vpack.c.b16 %v4364, %v4363
        %v4375 = vpack.c.b16 %v4366, %v4365
        %v4376 = vpack.c.b16 %v4368, %v4367
        %4385 = vmatprep.subr.bf16.mxu0 0
        %4386 = vmatpush1.bf16.msra.mxu0 %v4369
        %4387 = vmatprep.subr.bf16.mxu0 0
        %4388 = vmatpush1.bf16.msra.mxu0 %v4370
        %4389 = vmatprep.subr.bf16.mxu0 0
        %4390 = vmatpush1.bf16.msra.mxu0 %v4371
        %4391 = vmatprep.subr.bf16.mxu0 0
        %4392 = vmatpush1.bf16.msra.mxu0 %v4372
        %4393 = vmatprep.subr.bf16.mxu0 0
        %4394 = vmatpush1.bf16.msra.mxu0 %v4373
        %4395 = vmatprep.subr.bf16.mxu0 0
        %4396 = vmatpush1.bf16.msra.mxu0 %v4374
        %4397 = vmatprep.subr.bf16.mxu0 0
        %4398 = vmatpush1.bf16.msra.mxu0 %v4375
        %4399 = vmatprep.subr.bf16.mxu0 0
        %4400 = vmatpush1.bf16.msra.mxu0 %v4376
        %4401 = vmatprep.subr.bf16.mxu0 0
        %4402 = vmatpush1.bf16.msra.mxu0 0
        %4403 = vmatprep.subr.bf16.mxu0 0
        %4404 = vmatpush1.bf16.msra.mxu0 0
        %4405 = vmatprep.subr.bf16.mxu0 0
        %4406 = vmatpush1.bf16.msra.mxu0 0
        %4407 = vmatprep.subr.bf16.mxu0 0
        %4408 = vmatpush1.bf16.msra.mxu0 0
        %4409 = vmatprep.subr.bf16.mxu0 0
        %4410 = vmatpush1.bf16.msra.mxu0 0
        %4411 = vmatprep.subr.bf16.mxu0 0
        %4412 = vmatpush1.bf16.msra.mxu0 0
        %4413 = vmatprep.subr.bf16.mxu0 0
        %4414 = vmatpush1.bf16.msra.mxu0 0
        %4415 = vmatprep.subr.bf16.mxu0 0
        %4416 = vmatpush1.bf16.msra.mxu0 0
        %4417 = vmatprep.mubr.bf16.mxu0 0
        %4418 = vmatmul.mubr.bf16.gmra.mrb[0].mxu0 %v4319
        %v4419 = vpop.f32.mrb[0].mxu0
        %v4420 = vadd.f32 %v4336, %v4419
        %v4421 = vpop.f32.mrb[0].mxu0
        %v4422 = vpop.f32.mrb[0].mxu0
        %v4423 = vpop.f32.mrb[0].mxu0
        %4424 = vdwg.mxu0
        %v4425 = vmax.f32 %v4420, 0.0
        %v4426 = vpack.c.bf16 %v4425, %v4425
        %v4427 = vld [vmem:[%s11] sm:$0xf]
        %v4428 = vld [vmem:[%s11 + $0x4] sm:$0xf]
        %v4429 = vld [vmem:[%s11 + $0x8] sm:$0xf]
        %v4430 = vld [vmem:[%s11 + $0xc] sm:$0xf]
        %v4431 = vld [vmem:[%s11 + $0x10] sm:$0xf]
        %v4432 = vld [vmem:[%s11 + $0x14] sm:$0xf]
        %v4433 = vld [vmem:[%s11 + $0x18] sm:$0xf]
        %v4434 = vld [vmem:[%s11 + $0x1c] sm:$0xf]
        %v4435 = vld [vmem:[%s11 + $0x20] sm:$0xf]
        %v4436 = vld [vmem:[%s11 + $0x24] sm:$0xf]
        %v4437 = vld [vmem:[%s11 + $0x28] sm:$0xf]
        %v4438 = vld [vmem:[%s11 + $0x2c] sm:$0xf]
        %v4439 = vld [vmem:[%s11 + $0x30] sm:$0xf]
        %v4440 = vld [vmem:[%s11 + $0x34] sm:$0xf]
        %v4441 = vld [vmem:[%s11 + $0x38] sm:$0xf]
        %v4442 = vld [vmem:[%s11 + $0x3c] sm:$0xf]
        %v4443 = vld [vmem:[%s12] sm:$0x1]
        %v4460 = vunpack.c.l.b16 %v4427
        %v4461 = vunpack.c.l.b16 %v4428
        %v4462 = vunpack.c.l.b16 %v4429
        %v4463 = vunpack.c.l.b16 %v4430
        %v4464 = vunpack.c.l.b16 %v4431
        %v4465 = vunpack.c.l.b16 %v4432
        %v4466 = vunpack.c.l.b16 %v4433
        %v4467 = vunpack.c.l.b16 %v4434
        %v4468 = vunpack.c.l.b16 %v4435
        %v4469 = vunpack.c.l.b16 %v4436
        %v4470 = vunpack.c.l.b16 %v4437
        %v4471 = vunpack.c.l.b16 %v4438
        %v4472 = vunpack.c.l.b16 %v4439
        %v4473 = vunpack.c.l.b16 %v4440
        %v4474 = vunpack.c.l.b16 %v4441
        %v4475 = vunpack.c.l.b16 %v4442
        %v4476 = vpack.c.b16 %v4461, %v4460
        %v4477 = vpack.c.b16 %v4463, %v4462
        %v4478 = vpack.c.b16 %v4465, %v4464
        %v4479 = vpack.c.b16 %v4467, %v4466
        %v4480 = vpack.c.b16 %v4469, %v4468
        %v4481 = vpack.c.b16 %v4471, %v4470
        %v4482 = vpack.c.b16 %v4473, %v4472
        %v4483 = vpack.c.b16 %v4475, %v4474
        %4492 = vmatprep.subr.bf16.mxu0 0
        %4493 = vmatpush1.bf16.msra.mxu0 %v4476
        %4494 = vmatprep.subr.bf16.mxu0 0
        %4495 = vmatpush1.bf16.msra.mxu0 %v4477
        %4496 = vmatprep.subr.bf16.mxu0 0
        %4497 = vmatpush1.bf16.msra.mxu0 %v4478
        %4498 = vmatprep.subr.bf16.mxu0 0
        %4499 = vmatpush1.bf16.msra.mxu0 %v4479
        %4500 = vmatprep.subr.bf16.mxu0 0
        %4501 = vmatpush1.bf16.msra.mxu0 %v4480
        %4502 = vmatprep.subr.bf16.mxu0 0
        %4503 = vmatpush1.bf16.msra.mxu0 %v4481
        %4504 = vmatprep.subr.bf16.mxu0 0
        %4505 = vmatpush1.bf16.msra.mxu0 %v4482
        %4506 = vmatprep.subr.bf16.mxu0 0
        %4507 = vmatpush1.bf16.msra.mxu0 %v4483
        %4508 = vmatprep.subr.bf16.mxu0 0
        %4509 = vmatpush1.bf16.msra.mxu0 0
        %4510 = vmatprep.subr.bf16.mxu0 0
        %4511 = vmatpush1.bf16.msra.mxu0 0
        %4512 = vmatprep.subr.bf16.mxu0 0
        %4513 = vmatpush1.bf16.msra.mxu0 0
        %4514 = vmatprep.subr.bf16.mxu0 0
        %4515 = vmatpush1.bf16.msra.mxu0 0
        %4516 = vmatprep.subr.bf16.mxu0 0
        %4517 = vmatpush1.bf16.msra.mxu0 0
        %4518 = vmatprep.subr.bf16.mxu0 0
        %4519 = vmatpush1.bf16.msra.mxu0 0
        %4520 = vmatprep.subr.bf16.mxu0 0
        %4521 = vmatpush1.bf16.msra.mxu0 0
        %4522 = vmatprep.subr.bf16.mxu0 0
        %4523 = vmatpush1.bf16.msra.mxu0 0
        %4524 = vmatprep.mubr.bf16.mxu0 0
        %4525 = vmatmul.mubr.bf16.gmra.mrb[0].mxu0 %v4426
        %v4526 = vpop.f32.mrb[0].mxu0
        %v4527 = vadd.f32 %v4443, %v4526
        %v4528 = vpop.f32.mrb[0].mxu0
        %v4529 = vpop.f32.mrb[0].mxu0
        %v4530 = vpop.f32.mrb[0].mxu0
        %4531 = vdwg.mxu0
        %vm4532 = vcmask 73728
        %4533 = vst.msk [vmem:[%s432] sm:$0x1] %vm4532, %v4527
        %s4534 = sand.u32 %s313, 1
        %s4535 = scalar_lea.sflag [#allocation3], %s4534
        %s4536 = sand.u32 %s313, 1
        %s4537 = scalar_lea.vmem [#allocation2], %s4536
        // Predicated region
        $region73: #{net_forward.1} parent=71 // pred_check
          %p4538 = pneg %p323
        $region74: #{net_forward.1} parent=71 // pred_check_branch
          %4540 = sbr.rel (%p4538) target = $region76
        $region75: #{net_forward.1} parent=71 // pred_region
          %s4542 = ssub.s32 16, 16
          %4543 = vsyncadd %s4535, %s4542
          %s4544 = smul.addr %s27, 16
          %s4545 = scalar_lea.hbm %s13, %s4544
          %s4547 = sshll.u32 %s4537, 4
          %s4548 = int_to_ptr.vmem [resolvable:$true] %s4547
          %4550 = dma.vmem_to_hbm [thread:$0]  %s4548, 16, %s4545, %s4535
        $region76: #{net_forward.1} parent=71 // pred_fallthru
          _
      $region72: #{net_forward.1} parent=5 // pred_fallthru
        _
      %p4551 = scmp.le.s32.totalorder 2, %s22
      // Predicated region
      $region77: #{net_forward.1} parent=5 // pred_check
        %p4552 = pneg %p4551
      $region78: #{net_forward.1} parent=5 // pred_check_branch
        %4554 = sbr.rel (%p4552) target = $region80
      $region79: #{net_forward.1} parent=5 // pred_region
        %s4555 = ssub.s32 %s22, 2
        // Predicated region
        $region81: #{net_forward.1} parent=79 // pred_check
          %p4556 = pneg %p329
        $region82: #{net_forward.1} parent=79 // pred_check_branch
          %4558 = sbr.rel (%p4556) target = $region84
        $region83: #{net_forward.1} parent=79 // pred_region
          %s4559 = sand.u32 %s314, 1
          %s4560 = scalar_lea.sflag [#allocation3], %s4559
          %s4561 = sand.u32 %s314, 1
          %s4562 = scalar_lea.vmem [#allocation2], %s4561
          %4563 = dma.done %s4560, 16
        $region84: #{net_forward.1} parent=79 // pred_fallthru
          _
      $region80: #{net_forward.1} parent=5 // pred_fallthru
        _
    $region6: #{net_forward.1} parent=1 // loop_footer
      %s26 = sadd.s32 1, %s22
    $region7: #{net_forward.1} parent=1 // loop_footer_branch
      %21 = sbr.rel target = $region3
    $region8: #{net_forward.1} parent=1 // loop_exit
      _
    %4564 = vsyncpa [#allocation3], 1
    %s4565 = scalar_lea.sflag [#allocation3], 1
    %4566 = vsyncpa %s4565, 1

</llo_original>
